<compile_context>
chip_gen: v6e
topology: v6e:2x2x1
jax: 0.10.0
libtpu: 0.0.40
codegen_flags: <defaults>
</compile_context>

<pallas_src>
import jax
import jax.numpy as jnp
from jax.experimental import pallas as pl
from jax.experimental.pallas import tpu as pltpu


def _round_up(n, m):
    return ((n + m - 1) // m) * m


# ---------------------------------------------------------------------------
# Pallas kernel: full cVAE forward (encoder -> reparam -> decoder), fused,
# one batch tile per grid step, one lane-dense output slab.
# ---------------------------------------------------------------------------
def cvae_kernel(
    # data (batch-tiled)
    x_ref, c_ref, eps_ref,
    # encoder: Linear(input+cond, h) split over x/c, Linear(h, h)
    we1x_ref, we1c_ref, be1_ref, we2_ref, be2_ref,
    # heads: fc_mu, fc_logvar
    wmu_ref, bmu_ref, wlv_ref, blv_ref,
    # decoder: Linear(z+cond, h) split over z/c, Linear(h, h), Linear(h, input)
    wd1z_ref, wd1c_ref, bd1_ref, wd2_ref, bd2_ref, wd3_ref, bd3_ref,
    # output: [xrec | mu | logvar | pad]  (lane-dense, width multiple of 128)
    out_ref,
):
    x = x_ref[...]      # bf16 (TB, input_dim)
    c = c_ref[...]      # bf16 (TB, condition_dim)
    eps = eps_ref[...]  # f32  (TB, z_dim)

    def mxu(a, w_ref):
        # bf16 MXU matmul with f32 accumulation.
        return jnp.dot(a.astype(w_ref.dtype), w_ref[...],
                       preferred_element_type=jnp.float32)

    # ----- encoder: Linear(cat([x,c])) -> ReLU -> Linear -> ReLU -----
    h1 = jnp.maximum(mxu(x, we1x_ref) + mxu(c, we1c_ref) + be1_ref[...], 0.0)
    h2 = jnp.maximum(mxu(h1, we2_ref) + be2_ref[...], 0.0)

    # ----- heads -----
    mu = mxu(h2, wmu_ref) + bmu_ref[...]        # (TB, z_dim), f32
    logvar = mxu(h2, wlv_ref) + blv_ref[...]    # (TB, z_dim), f32

    # ----- reparameterization (training mode) -----
    std = jnp.exp(0.5 * logvar)
    z = mu + eps * std

    # ----- decoder: Linear(cat([z,c])) -> ReLU -> Linear -> ReLU
    #                -> Linear -> Sigmoid -----
    d1 = jnp.maximum(mxu(z, wd1z_ref) + mxu(c, wd1c_ref) + bd1_ref[...], 0.0)
    d2 = jnp.maximum(mxu(d1, wd2_ref) + bd2_ref[...], 0.0)
    xrec = jax.nn.sigmoid(mxu(d2, wd3_ref) + bd3_ref[...])

    # ----- one lane-dense output slab: [xrec | mu | logvar | zero-pad] -----
    tb = xrec.shape[0]
    used = xrec.shape[1] + 2 * mu.shape[1]
    parts = [xrec, mu, logvar]
    pad_w = out_ref.shape[1] - used
    if pad_w:
        parts.append(jnp.zeros((tb, pad_w), jnp.float32))
    out_ref[...] = jnp.concatenate(parts, axis=1)


# ---------------------------------------------------------------------------
# Wrapper: batch-tiled grid, weights VMEM-resident across all grid steps.
# ---------------------------------------------------------------------------
def cvae_forward(x, c, eps, params, *, block_batch=256):
    B, input_dim = x.shape
    condition_dim = c.shape[1]
    z_dim = eps.shape[1]
    h_dim = params["we2"].shape[0]

    # Batch tile: multiple of 8 (sublane); keep >= 2 grid steps so the
    # "parallel" batch axis can shard across the two v7x TensorCores.
    TB = min(block_batch, _round_up(B, 8))
    if B > 8 and pl.cdiv(B, TB) < 2:
        TB = max(8, _round_up(-(-B // 2), 8))
    Bp = _round_up(B, TB)
    pad = Bp - B

    # bf16 activation DMA for matmul-only inputs (identical numerics to the
    # in-kernel cast, half the HBM bytes).  eps stays f32 (elementwise path).
    x_in = x.astype(jnp.bfloat16)
    c_in = c.astype(jnp.bfloat16)
    eps_in = eps
    if pad:
        x_in = jnp.pad(x_in, ((0, pad), (0, 0)))
        c_in = jnp.pad(c_in, ((0, pad), (0, 0)))
        eps_in = jnp.pad(eps_in, ((0, pad), (0, 0)))

    out_width = _round_up(input_dim + 2 * z_dim, 128)

    weight_order = (
        "we1x", "we1c", "be1", "we2", "be2",
        "wmu", "bmu", "wlv", "blv",
        "wd1z", "wd1c", "bd1", "wd2", "bd2", "wd3", "bd3",
    )
    weights = [params[k] for k in weight_order]

    def batch_spec(feat):
        return pl.BlockSpec((TB, feat), lambda i: (i, 0))

    def resident_spec(arr):
        # Whole-array block, constant index -> stays resident in VMEM.
        return pl.BlockSpec(arr.shape, lambda i: (0, 0))

    in_specs = [batch_spec(input_dim), batch_spec(condition_dim),
                batch_spec(z_dim)]
    in_specs += [resident_spec(w) for w in weights]

    out_specs = pl.BlockSpec((TB, out_width), lambda i: (i, 0))
    out_shape = jax.ShapeDtypeStruct((Bp, out_width), jnp.float32)

    # Advisory cost estimate for XLA scheduling around the custom call.
    flops = 2 * Bp * (
        (input_dim + condition_dim) * h_dim      # encoder 1
        + h_dim * h_dim                          # encoder 2
        + 2 * h_dim * z_dim                      # mu / logvar heads
        + (z_dim + condition_dim) * h_dim        # decoder 1
        + h_dim * h_dim                          # decoder 2
        + h_dim * input_dim                      # decoder 3
    )
    transcendentals = Bp * (z_dim + input_dim)   # exp + sigmoid
    weight_bytes = sum(int(w.size) * w.dtype.itemsize for w in weights)
    bytes_accessed = (int(x_in.size) * 2 + int(c_in.size) * 2
                      + int(eps_in.size) * 4
                      + Bp * out_width * 4 + weight_bytes)

    out = pl.pallas_call(
        cvae_kernel,
        grid=(Bp // TB,),
        in_specs=in_specs,
        out_specs=out_specs,
        out_shape=out_shape,
        compiler_params=pltpu.CompilerParams(
            dimension_semantics=("parallel",),
        ),
        cost_estimate=pl.CostEstimate(
            flops=flops,
            transcendentals=transcendentals,
            bytes_accessed=bytes_accessed,
        ),
    )(x_in, c_in, eps_in, *weights)

    xrec = out[:B, :input_dim]
    mu = out[:B, input_dim:input_dim + z_dim]
    logvar = out[:B, input_dim + z_dim:input_dim + 2 * z_dim]
    return xrec, mu, logvar


# ---------------------------------------------------------------------------
# Deterministic parameter construction (synthetic init, not a checkpoint).
# Weights in bf16 (MXU input dtype), biases in f32.
# ---------------------------------------------------------------------------
def make_params(key, input_dim, condition_dim, h_dim, z_dim):
    def w(k, shape, scale=0.05):
        return (scale * jax.random.normal(k, shape, dtype=jnp.float32)
                ).astype(jnp.bfloat16)

    def b(k, shape, scale=0.05):
        return (scale * jax.random.normal(k, shape, dtype=jnp.float32)
                ).astype(jnp.float32)

    ks = jax.random.split(key, 16)
    return {
        # encoder layer 1: (input_dim + condition_dim) -> h, split over x / c
        "we1x": w(ks[0], (input_dim, h_dim)),
        "we1c": w(ks[1], (condition_dim, h_dim)),
        "be1": b(ks[2], (1, h_dim)),
        # encoder layer 2: h -> h
        "we2": w(ks[3], (h_dim, h_dim)),
        "be2": b(ks[4], (1, h_dim)),
        # heads: fc_mu / fc_logvar
        "wmu": w(ks[5], (h_dim, z_dim)),
        "bmu": b(ks[6], (1, z_dim)),
        "wlv": w(ks[7], (h_dim, z_dim)),
        "blv": b(ks[8], (1, z_dim)),
        # decoder layer 1: (z_dim + condition_dim) -> h, split over z / c
        "wd1z": w(ks[9], (z_dim, h_dim)),
        "wd1c": w(ks[10], (condition_dim, h_dim)),
        "bd1": b(ks[11], (1, h_dim)),
        # decoder layer 2: h -> h
        "wd2": w(ks[12], (h_dim, h_dim)),
        "bd2": b(ks[13], (1, h_dim)),
        # decoder layer 3: h -> input_dim
        "wd3": w(ks[14], (h_dim, input_dim)),
        "bd3": b(ks[15], (1, input_dim)),
    }


# Pure-JAX reference with the identical mixed-precision math (bf16 weights,
# bf16 MXU inputs, f32 accumulation / elementwise), for a correctness check.
def cvae_reference(x, c, eps, p):
    def mm(a, w):
        return jnp.dot(a.astype(jnp.bfloat16), w,
                       preferred_element_type=jnp.float32)

    h1 = jnp.maximum(mm(x, p["we1x"]) + mm(c, p["we1c"]) + p["be1"], 0.0)
    h2 = jnp.maximum(mm(h1, p["we2"]) + p["be2"], 0.0)
    mu = mm(h2, p["wmu"]) + p["bmu"]
    logvar = mm(h2, p["wlv"]) + p["blv"]
    z = mu + eps * jnp.exp(0.5 * logvar)
    d1 = jnp.maximum(mm(z, p["wd1z"]) + mm(c, p["wd1c"]) + p["bd1"], 0.0)
    d2 = jnp.maximum(mm(d1, p["wd2"]) + p["bd2"], 0.0)
    xrec = jax.nn.sigmoid(mm(d2, p["wd3"]) + p["bd3"])
    return xrec, mu, logvar


if __name__ == "__main__":
    # Small shapes consistent with the module's forward:
    #   x: (batch, input_dim), c: (batch, condition_dim) one-hot.
    # input_dim + 2*z_dim = 96 -> output slab padded to 128 lanes.
    # batch=300 -> padded to 512 with TB=256: a 2-step parallel grid.
    batch, input_dim, condition_dim, h_dim, z_dim = 300, 64, 10, 128, 16

    key = jax.random.PRNGKey(0)
    kx, kc, keps, kparams = jax.random.split(key, 4)

    x = jax.nn.sigmoid(jax.random.normal(kx, (batch, input_dim))).astype(jnp.float32)
    labels = jax.random.randint(kc, (batch,), 0, condition_dim)
    c = jax.nn.one_hot(labels, condition_dim, dtype=jnp.float32)
    eps = jax.random.normal(keps, (batch, z_dim)).astype(jnp.float32)

    params = make_params(kparams, input_dim, condition_dim, h_dim, z_dim)

    xrec, mu, logvar = jax.block_until_ready(cvae_forward(x, c, eps, params))

    # sanity check against the pure-JAX reference (same mixed-precision math)
    xrec_r, mu_r, logvar_r = cvae_reference(x, c, eps, params)
    assert xrec.shape == (batch, input_dim)
    assert mu.shape == (batch, z_dim) and logvar.shape == (batch, z_dim)
    assert jnp.allclose(xrec, xrec_r, atol=2e-3, rtol=2e-3)
    assert jnp.allclose(mu, mu_r, atol=2e-3, rtol=2e-3)
    assert jnp.allclose(logvar, logvar_r, atol=2e-3, rtol=2e-3)

    # TODO(synk): loss_function / sample() and the eval-mode branch (z = mu)
    # are not part of forward(); eps is generated outside the kernel for
    # determinism (PyTorch uses torch.randn_like inside reparameterize).
    print("KERNEL_OK")
</pallas_src>

<mosaic_0001>
module attributes {stable_mosaic.version = 11 : i64} {
  func.func @cvae_kernel(%arg0: i32, %arg1: memref<256x64xbf16, #tpu.memory_space<vmem>>, %arg2: memref<256x10xbf16, #tpu.memory_space<vmem>>, %arg3: memref<256x16xf32, #tpu.memory_space<vmem>>, %arg4: memref<64x128xbf16, #tpu.memory_space<vmem>>, %arg5: memref<10x128xbf16, #tpu.memory_space<vmem>>, %arg6: memref<1x128xf32, #tpu.memory_space<vmem>>, %arg7: memref<128x128xbf16, #tpu.memory_space<vmem>>, %arg8: memref<1x128xf32, #tpu.memory_space<vmem>>, %arg9: memref<128x16xbf16, #tpu.memory_space<vmem>>, %arg10: memref<1x16xf32, #tpu.memory_space<vmem>>, %arg11: memref<128x16xbf16, #tpu.memory_space<vmem>>, %arg12: memref<1x16xf32, #tpu.memory_space<vmem>>, %arg13: memref<16x128xbf16, #tpu.memory_space<vmem>>, %arg14: memref<10x128xbf16, #tpu.memory_space<vmem>>, %arg15: memref<1x128xf32, #tpu.memory_space<vmem>>, %arg16: memref<128x128xbf16, #tpu.memory_space<vmem>>, %arg17: memref<1x128xf32, #tpu.memory_space<vmem>>, %arg18: memref<128x64xbf16, #tpu.memory_space<vmem>>, %arg19: memref<1x64xf32, #tpu.memory_space<vmem>>, %arg20: memref<256x128xf32, #tpu.memory_space<vmem>>) attributes {dimension_semantics = [#tpu.dimension_semantics<parallel>], iteration_bounds = array<i64: 2>, scalar_prefetch = 0 : i64, scratch_operands = 0 : i64, tpu.core_type = #tpu.core_type<tc>, window_params = [{transform_indices = @transform_0, window_bounds = array<i64: 256, 64>}, {transform_indices = @transform_1, window_bounds = array<i64: 256, 10>}, {transform_indices = @transform_2, window_bounds = array<i64: 256, 16>}, {pipeline_mode = #tpu.pipeline_mode<synchronous>, transform_indices = @transform_3, window_bounds = array<i64: 64, 128>}, {pipeline_mode = #tpu.pipeline_mode<synchronous>, transform_indices = @transform_4, window_bounds = array<i64: 10, 128>}, {pipeline_mode = #tpu.pipeline_mode<synchronous>, transform_indices = @transform_5, window_bounds = array<i64: 1, 128>}, {pipeline_mode = #tpu.pipeline_mode<synchronous>, transform_indices = @transform_6, window_bounds = array<i64: 128, 128>}, {pipeline_mode = #tpu.pipeline_mode<synchronous>, transform_indices = @transform_7, window_bounds = array<i64: 1, 128>}, {pipeline_mode = #tpu.pipeline_mode<synchronous>, transform_indices = @transform_8, window_bounds = array<i64: 128, 16>}, {pipeline_mode = #tpu.pipeline_mode<synchronous>, transform_indices = @transform_9, window_bounds = array<i64: 1, 16>}, {pipeline_mode = #tpu.pipeline_mode<synchronous>, transform_indices = @transform_10, window_bounds = array<i64: 128, 16>}, {pipeline_mode = #tpu.pipeline_mode<synchronous>, transform_indices = @transform_11, window_bounds = array<i64: 1, 16>}, {pipeline_mode = #tpu.pipeline_mode<synchronous>, transform_indices = @transform_12, window_bounds = array<i64: 16, 128>}, {pipeline_mode = #tpu.pipeline_mode<synchronous>, transform_indices = @transform_13, window_bounds = array<i64: 10, 128>}, {pipeline_mode = #tpu.pipeline_mode<synchronous>, transform_indices = @transform_14, window_bounds = array<i64: 1, 128>}, {pipeline_mode = #tpu.pipeline_mode<synchronous>, transform_indices = @transform_15, window_bounds = array<i64: 128, 128>}, {pipeline_mode = #tpu.pipeline_mode<synchronous>, transform_indices = @transform_16, window_bounds = array<i64: 1, 128>}, {pipeline_mode = #tpu.pipeline_mode<synchronous>, transform_indices = @transform_17, window_bounds = array<i64: 128, 64>}, {pipeline_mode = #tpu.pipeline_mode<synchronous>, transform_indices = @transform_18, window_bounds = array<i64: 1, 64>}, {transform_indices = @transform_19, window_bounds = array<i64: 256, 128>}]} {
    %c0 = arith.constant 0 : index
    %c0_0 = arith.constant 0 : index
    %0 = vector.load %arg1[%c0, %c0_0] : memref<256x64xbf16, #tpu.memory_space<vmem>>, vector<256x64xbf16>
    %c0_1 = arith.constant 0 : index
    %c0_2 = arith.constant 0 : index
    %1 = vector.load %arg2[%c0_1, %c0_2] : memref<256x10xbf16, #tpu.memory_space<vmem>>, vector<256x10xbf16>
    %c0_3 = arith.constant 0 : index
    %c0_4 = arith.constant 0 : index
    %2 = vector.load %arg3[%c0_3, %c0_4] : memref<256x16xf32, #tpu.memory_space<vmem>>, vector<256x16xf32>
    %c0_5 = arith.constant 0 : index
    %c0_6 = arith.constant 0 : index
    %3 = vector.load %arg4[%c0_5, %c0_6] : memref<64x128xbf16, #tpu.memory_space<vmem>>, vector<64x128xbf16>
    %cst = arith.constant dense<0.000000e+00> : vector<256x128xf32>
    %4 = tpu.matmul %0, %3, %cst {dimension_numbers = #tpu.dot_dimension_numbers<[1], [0], [0], [1], [0, 0, 1, 1], [], []>} : vector<256x64xbf16>, vector<64x128xbf16>, vector<256x128xf32> -> vector<256x128xf32>
    %c0_7 = arith.constant 0 : index
    %c0_8 = arith.constant 0 : index
    %5 = vector.load %arg5[%c0_7, %c0_8] : memref<10x128xbf16, #tpu.memory_space<vmem>>, vector<10x128xbf16>
    %cst_9 = arith.constant dense<0.000000e+00> : vector<256x128xf32>
    %6 = tpu.matmul %1, %5, %cst_9 {dimension_numbers = #tpu.dot_dimension_numbers<[1], [0], [0], [1], [0, 0, 1, 1], [], []>} : vector<256x10xbf16>, vector<10x128xbf16>, vector<256x128xf32> -> vector<256x128xf32>
    %7 = arith.addf %4, %6 : vector<256x128xf32>
    %c0_10 = arith.constant 0 : index
    %c0_11 = arith.constant 0 : index
    %8 = vector.load %arg6[%c0_10, %c0_11] : memref<1x128xf32, #tpu.memory_space<vmem>>, vector<1x128xf32>
    %9 = vector.broadcast %8 : vector<1x128xf32> to vector<256x128xf32>
    %10 = arith.addf %7, %9 : vector<256x128xf32>
    %cst_12 = arith.constant 0.000000e+00 : f32
    %11 = vector.broadcast %cst_12 : f32 to vector<256x128xf32>
    %12 = arith.maximumf %10, %11 : vector<256x128xf32>
    %13 = arith.truncf %12 : vector<256x128xf32> to vector<256x128xbf16>
    %c0_13 = arith.constant 0 : index
    %c0_14 = arith.constant 0 : index
    %14 = vector.load %arg7[%c0_13, %c0_14] : memref<128x128xbf16, #tpu.memory_space<vmem>>, vector<128x128xbf16>
    %cst_15 = arith.constant dense<0.000000e+00> : vector<256x128xf32>
    %15 = tpu.matmul %13, %14, %cst_15 {dimension_numbers = #tpu.dot_dimension_numbers<[1], [0], [0], [1], [0, 0, 1, 1], [], []>} : vector<256x128xbf16>, vector<128x128xbf16>, vector<256x128xf32> -> vector<256x128xf32>
    %c0_16 = arith.constant 0 : index
    %c0_17 = arith.constant 0 : index
    %16 = vector.load %arg8[%c0_16, %c0_17] : memref<1x128xf32, #tpu.memory_space<vmem>>, vector<1x128xf32>
    %17 = vector.broadcast %16 : vector<1x128xf32> to vector<256x128xf32>
    %18 = arith.addf %15, %17 : vector<256x128xf32>
    %cst_18 = arith.constant 0.000000e+00 : f32
    %19 = vector.broadcast %cst_18 : f32 to vector<256x128xf32>
    %20 = arith.maximumf %18, %19 : vector<256x128xf32>
    %21 = arith.truncf %20 : vector<256x128xf32> to vector<256x128xbf16>
    %c0_19 = arith.constant 0 : index
    %c0_20 = arith.constant 0 : index
    %22 = vector.load %arg9[%c0_19, %c0_20] : memref<128x16xbf16, #tpu.memory_space<vmem>>, vector<128x16xbf16>
    %cst_21 = arith.constant dense<0.000000e+00> : vector<256x16xf32>
    %23 = tpu.matmul %21, %22, %cst_21 {dimension_numbers = #tpu.dot_dimension_numbers<[1], [0], [0], [1], [0, 0, 1, 1], [], []>} : vector<256x128xbf16>, vector<128x16xbf16>, vector<256x16xf32> -> vector<256x16xf32>
    %c0_22 = arith.constant 0 : index
    %c0_23 = arith.constant 0 : index
    %24 = vector.load %arg10[%c0_22, %c0_23] : memref<1x16xf32, #tpu.memory_space<vmem>>, vector<1x16xf32>
    %25 = vector.broadcast %24 : vector<1x16xf32> to vector<256x16xf32>
    %26 = arith.addf %23, %25 : vector<256x16xf32>
    %27 = arith.truncf %20 : vector<256x128xf32> to vector<256x128xbf16>
    %c0_24 = arith.constant 0 : index
    %c0_25 = arith.constant 0 : index
    %28 = vector.load %arg11[%c0_24, %c0_25] : memref<128x16xbf16, #tpu.memory_space<vmem>>, vector<128x16xbf16>
    %cst_26 = arith.constant dense<0.000000e+00> : vector<256x16xf32>
    %29 = tpu.matmul %27, %28, %cst_26 {dimension_numbers = #tpu.dot_dimension_numbers<[1], [0], [0], [1], [0, 0, 1, 1], [], []>} : vector<256x128xbf16>, vector<128x16xbf16>, vector<256x16xf32> -> vector<256x16xf32>
    %c0_27 = arith.constant 0 : index
    %c0_28 = arith.constant 0 : index
    %30 = vector.load %arg12[%c0_27, %c0_28] : memref<1x16xf32, #tpu.memory_space<vmem>>, vector<1x16xf32>
    %31 = vector.broadcast %30 : vector<1x16xf32> to vector<256x16xf32>
    %32 = arith.addf %29, %31 : vector<256x16xf32>
    %cst_29 = arith.constant 5.000000e-01 : f32
    %33 = vector.broadcast %cst_29 : f32 to vector<256x16xf32>
    %34 = arith.mulf %33, %32 : vector<256x16xf32>
    %35 = math.exp %34 : vector<256x16xf32>
    %36 = arith.mulf %2, %35 : vector<256x16xf32>
    %37 = arith.addf %26, %36 : vector<256x16xf32>
    %38 = arith.truncf %37 : vector<256x16xf32> to vector<256x16xbf16>
    %c0_30 = arith.constant 0 : index
    %c0_31 = arith.constant 0 : index
    %39 = vector.load %arg13[%c0_30, %c0_31] : memref<16x128xbf16, #tpu.memory_space<vmem>>, vector<16x128xbf16>
    %cst_32 = arith.constant dense<0.000000e+00> : vector<256x128xf32>
    %40 = tpu.matmul %38, %39, %cst_32 {dimension_numbers = #tpu.dot_dimension_numbers<[1], [0], [0], [1], [0, 0, 1, 1], [], []>} : vector<256x16xbf16>, vector<16x128xbf16>, vector<256x128xf32> -> vector<256x128xf32>
    %c0_33 = arith.constant 0 : index
    %c0_34 = arith.constant 0 : index
    %41 = vector.load %arg14[%c0_33, %c0_34] : memref<10x128xbf16, #tpu.memory_space<vmem>>, vector<10x128xbf16>
    %cst_35 = arith.constant dense<0.000000e+00> : vector<256x128xf32>
    %42 = tpu.matmul %1, %41, %cst_35 {dimension_numbers = #tpu.dot_dimension_numbers<[1], [0], [0], [1], [0, 0, 1, 1], [], []>} : vector<256x10xbf16>, vector<10x128xbf16>, vector<256x128xf32> -> vector<256x128xf32>
    %43 = arith.addf %40, %42 : vector<256x128xf32>
    %c0_36 = arith.constant 0 : index
    %c0_37 = arith.constant 0 : index
    %44 = vector.load %arg15[%c0_36, %c0_37] : memref<1x128xf32, #tpu.memory_space<vmem>>, vector<1x128xf32>
    %45 = vector.broadcast %44 : vector<1x128xf32> to vector<256x128xf32>
    %46 = arith.addf %43, %45 : vector<256x128xf32>
    %cst_38 = arith.constant 0.000000e+00 : f32
    %47 = vector.broadcast %cst_38 : f32 to vector<256x128xf32>
    %48 = arith.maximumf %46, %47 : vector<256x128xf32>
    %49 = arith.truncf %48 : vector<256x128xf32> to vector<256x128xbf16>
    %c0_39 = arith.constant 0 : index
    %c0_40 = arith.constant 0 : index
    %50 = vector.load %arg16[%c0_39, %c0_40] : memref<128x128xbf16, #tpu.memory_space<vmem>>, vector<128x128xbf16>
    %cst_41 = arith.constant dense<0.000000e+00> : vector<256x128xf32>
    %51 = tpu.matmul %49, %50, %cst_41 {dimension_numbers = #tpu.dot_dimension_numbers<[1], [0], [0], [1], [0, 0, 1, 1], [], []>} : vector<256x128xbf16>, vector<128x128xbf16>, vector<256x128xf32> -> vector<256x128xf32>
    %c0_42 = arith.constant 0 : index
    %c0_43 = arith.constant 0 : index
    %52 = vector.load %arg17[%c0_42, %c0_43] : memref<1x128xf32, #tpu.memory_space<vmem>>, vector<1x128xf32>
    %53 = vector.broadcast %52 : vector<1x128xf32> to vector<256x128xf32>
    %54 = arith.addf %51, %53 : vector<256x128xf32>
    %cst_44 = arith.constant 0.000000e+00 : f32
    %55 = vector.broadcast %cst_44 : f32 to vector<256x128xf32>
    %56 = arith.maximumf %54, %55 : vector<256x128xf32>
    %57 = arith.truncf %56 : vector<256x128xf32> to vector<256x128xbf16>
    %c0_45 = arith.constant 0 : index
    %c0_46 = arith.constant 0 : index
    %58 = vector.load %arg18[%c0_45, %c0_46] : memref<128x64xbf16, #tpu.memory_space<vmem>>, vector<128x64xbf16>
    %cst_47 = arith.constant dense<0.000000e+00> : vector<256x64xf32>
    %59 = tpu.matmul %57, %58, %cst_47 {dimension_numbers = #tpu.dot_dimension_numbers<[1], [0], [0], [1], [0, 0, 1, 1], [], []>} : vector<256x128xbf16>, vector<128x64xbf16>, vector<256x64xf32> -> vector<256x64xf32>
    %c0_48 = arith.constant 0 : index
    %c0_49 = arith.constant 0 : index
    %60 = vector.load %arg19[%c0_48, %c0_49] : memref<1x64xf32, #tpu.memory_space<vmem>>, vector<1x64xf32>
    %61 = vector.broadcast %60 : vector<1x64xf32> to vector<256x64xf32>
    %62 = arith.addf %59, %61 : vector<256x64xf32>
    %63 = arith.negf %62 : vector<256x64xf32>
    %64 = math.exp %63 : vector<256x64xf32>
    %cst_50 = arith.constant 1.000000e+00 : f32
    %65 = vector.broadcast %cst_50 : f32 to vector<256x64xf32>
    %66 = arith.addf %65, %64 : vector<256x64xf32>
    %67 = arith.divf %65, %66 : vector<256x64xf32>
    %cst_51 = arith.constant 0.000000e+00 : f32
    %68 = vector.broadcast %cst_51 : f32 to vector<256x32xf32>
    %69 = tpu.concatenate %67, %26, %32, %68 in 1 : vector<256x64xf32>, vector<256x16xf32>, vector<256x16xf32>, vector<256x32xf32> -> vector<256x128xf32>
    %c0_52 = arith.constant 0 : index
    %c0_53 = arith.constant 0 : index
    %70 = vector.load %arg20[%c0_52, %c0_53] : memref<256x128xf32, #tpu.memory_space<vmem>>, vector<256x128xf32>
    tpu.vector_store %arg20[%c0_52, %c0_53], %69 {strides = array<i32>} : memref<256x128xf32, #tpu.memory_space<vmem>>, vector<256x128xf32>,
    return
  }
  func.func @transform_0(%arg0: i32) -> (i32, i32) {
    %c0_i32 = arith.constant 0 : i32
    %c0_i32_0 = arith.constant 0 : i32
    return %arg0, %c0_i32 : i32, i32
  }
  func.func @transform_1(%arg0: i32) -> (i32, i32) {
    %c0_i32 = arith.constant 0 : i32
    %c0_i32_0 = arith.constant 0 : i32
    return %arg0, %c0_i32 : i32, i32
  }
  func.func @transform_2(%arg0: i32) -> (i32, i32) {
    %c0_i32 = arith.constant 0 : i32
    %c0_i32_0 = arith.constant 0 : i32
    return %arg0, %c0_i32 : i32, i32
  }
  func.func @transform_3(%arg0: i32) -> (i32, i32) {
    %c0_i32 = arith.constant 0 : i32
    %c0_i32_0 = arith.constant 0 : i32
    %c0_i32_1 = arith.constant 0 : i32
    return %c0_i32, %c0_i32_0 : i32, i32
  }
  func.func @transform_4(%arg0: i32) -> (i32, i32) {
    %c0_i32 = arith.constant 0 : i32
    %c0_i32_0 = arith.constant 0 : i32
    %c0_i32_1 = arith.constant 0 : i32
    return %c0_i32, %c0_i32_0 : i32, i32
  }
  func.func @transform_5(%arg0: i32) -> (i32, i32) {
    %c0_i32 = arith.constant 0 : i32
    %c0_i32_0 = arith.constant 0 : i32
    %c0_i32_1 = arith.constant 0 : i32
    return %c0_i32, %c0_i32_0 : i32, i32
  }
  func.func @transform_6(%arg0: i32) -> (i32, i32) {
    %c0_i32 = arith.constant 0 : i32
    %c0_i32_0 = arith.constant 0 : i32
    %c0_i32_1 = arith.constant 0 : i32
    return %c0_i32, %c0_i32_0 : i32, i32
  }
  func.func @transform_7(%arg0: i32) -> (i32, i32) {
    %c0_i32 = arith.constant 0 : i32
    %c0_i32_0 = arith.constant 0 : i32
    %c0_i32_1 = arith.constant 0 : i32
    return %c0_i32, %c0_i32_0 : i32, i32
  }
  func.func @transform_8(%arg0: i32) -> (i32, i32) {
    %c0_i32 = arith.constant 0 : i32
    %c0_i32_0 = arith.constant 0 : i32
    %c0_i32_1 = arith.constant 0 : i32
    return %c0_i32, %c0_i32_0 : i32, i32
  }
  func.func @transform_9(%arg0: i32) -> (i32, i32) {
    %c0_i32 = arith.constant 0 : i32
    %c0_i32_0 = arith.constant 0 : i32
    %c0_i32_1 = arith.constant 0 : i32
    return %c0_i32, %c0_i32_0 : i32, i32
  }
  func.func @transform_10(%arg0: i32) -> (i32, i32) {
    %c0_i32 = arith.constant 0 : i32
    %c0_i32_0 = arith.constant 0 : i32
    %c0_i32_1 = arith.constant 0 : i32
    return %c0_i32, %c0_i32_0 : i32, i32
  }
  func.func @transform_11(%arg0: i32) -> (i32, i32) {
    %c0_i32 = arith.constant 0 : i32
    %c0_i32_0 = arith.constant 0 : i32
    %c0_i32_1 = arith.constant 0 : i32
    return %c0_i32, %c0_i32_0 : i32, i32
  }
  func.func @transform_12(%arg0: i32) -> (i32, i32) {
    %c0_i32 = arith.constant 0 : i32
    %c0_i32_0 = arith.constant 0 : i32
    %c0_i32_1 = arith.constant 0 : i32
    return %c0_i32, %c0_i32_0 : i32, i32
  }
  func.func @transform_13(%arg0: i32) -> (i32, i32) {
    %c0_i32 = arith.constant 0 : i32
    %c0_i32_0 = arith.constant 0 : i32
    %c0_i32_1 = arith.constant 0 : i32
    return %c0_i32, %c0_i32_0 : i32, i32
  }
  func.func @transform_14(%arg0: i32) -> (i32, i32) {
    %c0_i32 = arith.constant 0 : i32
    %c0_i32_0 = arith.constant 0 : i32
    %c0_i32_1 = arith.constant 0 : i32
    return %c0_i32, %c0_i32_0 : i32, i32
  }
  func.func @transform_15(%arg0: i32) -> (i32, i32) {
    %c0_i32 = arith.constant 0 : i32
    %c0_i32_0 = arith.constant 0 : i32
    %c0_i32_1 = arith.constant 0 : i32
    return %c0_i32, %c0_i32_0 : i32, i32
  }
  func.func @transform_16(%arg0: i32) -> (i32, i32) {
    %c0_i32 = arith.constant 0 : i32
    %c0_i32_0 = arith.constant 0 : i32
    %c0_i32_1 = arith.constant 0 : i32
    return %c0_i32, %c0_i32_0 : i32, i32
  }
  func.func @transform_17(%arg0: i32) -> (i32, i32) {
    %c0_i32 = arith.constant 0 : i32
    %c0_i32_0 = arith.constant 0 : i32
    %c0_i32_1 = arith.constant 0 : i32
    return %c0_i32, %c0_i32_0 : i32, i32
  }
  func.func @transform_18(%arg0: i32) -> (i32, i32) {
    %c0_i32 = arith.constant 0 : i32
    %c0_i32_0 = arith.constant 0 : i32
    %c0_i32_1 = arith.constant 0 : i32
    return %c0_i32, %c0_i32_0 : i32, i32
  }
  func.func @transform_19(%arg0: i32) -> (i32, i32) {
    %c0_i32 = arith.constant 0 : i32
    %c0_i32_0 = arith.constant 0 : i32
    return %arg0, %c0_i32 : i32, i32
  }
}

</mosaic_0001>

<llo_original>
// kernel: tpu_custom_call.1
$region0: #{tpu_custom_call.1}
  #allocation0 [shape = 'u32[]', space=smem, size = 0x4, offset = 0x4, fixed_abs, tag = 'smem constant byte address 0x4 - core index']
  #allocation1 [shape = 'u32[144,128]{1,0:T(1,128)}', space=vmem, size = 0x12000, scoped, tag = 'internal scratch']
  %s0 = inlined_call_operand.vmem [shape: bf16[512,64], index: 0, kind: input, shape index: {}]
  %s1 = inlined_call_operand.vmem [shape: bf16[512,10], index: 1, kind: input, shape index: {}]
  %s2 = inlined_call_operand.vmem [shape: f32[512,16], index: 2, kind: input, shape index: {}]
  %s3 = inlined_call_operand.vmem [shape: bf16[64,128], index: 3, kind: input, shape index: {}]
  %s4 = inlined_call_operand.vmem [shape: bf16[10,128], index: 4, kind: input, shape index: {}]
  %s5 = inlined_call_operand.vmem [shape: f32[1,128], index: 5, kind: input, shape index: {}]
  %s6 = inlined_call_operand.vmem [shape: bf16[128,128], index: 6, kind: input, shape index: {}]
  %s7 = inlined_call_operand.vmem [shape: f32[1,128], index: 7, kind: input, shape index: {}]
  %s8 = inlined_call_operand.vmem [shape: bf16[128,16], index: 8, kind: input, shape index: {}]
  %s9 = inlined_call_operand.vmem [shape: f32[1,16], index: 9, kind: input, shape index: {}]
  %s10 = inlined_call_operand.vmem [shape: bf16[128,16], index: 10, kind: input, shape index: {}]
  %s11 = inlined_call_operand.vmem [shape: f32[1,16], index: 11, kind: input, shape index: {}]
  %s12 = inlined_call_operand.vmem [shape: bf16[16,128], index: 12, kind: input, shape index: {}]
  %s13 = inlined_call_operand.vmem [shape: bf16[10,128], index: 13, kind: input, shape index: {}]
  %s14 = inlined_call_operand.vmem [shape: f32[1,128], index: 14, kind: input, shape index: {}]
  %s15 = inlined_call_operand.vmem [shape: bf16[128,128], index: 15, kind: input, shape index: {}]
  %s16 = inlined_call_operand.vmem [shape: f32[1,128], index: 16, kind: input, shape index: {}]
  %s17 = inlined_call_operand.vmem [shape: bf16[128,64], index: 17, kind: input, shape index: {}]
  %s18 = inlined_call_operand.vmem [shape: f32[1,64], index: 18, kind: input, shape index: {}]
  %s19 = inlined_call_operand.hbm [shape: f32[512,128], index: 19, kind: output, shape index: {}]
  %s20 = sld [smem:[#allocation0]]
  $region109: #{tpu_custom_call.1} parent=0
    _
  %s22 = ssub.s32 1, %s20
  %s23 = scalar_select 0, %s22, %s20
  $region1: #{tpu_custom_call.1} parent=0
    #allocation2 [shape = 'u8[262144]{0}', space=vmem, size = 0x40000, scoped, tag = 'output window, operand 0']
    #allocation3 [shape = 's32[2]{0}', space=sflag, size = 0x8, scoped, tag = 'scoped memory for tpu_custom_call.1']
    %24 = vsyncpa [#allocation3], 0
    %s25 = scalar_lea.sflag [#allocation3], 1
    %26 = vsyncpa %s25, 0
    loop: start=0, step=1, limit=4
    $region2: #{tpu_custom_call.1} parent=1 // loop_pre_header
      _
    $region3: #{tpu_custom_call.1} parent=1 // loop_header
      %s28 = sphi 0, %s32
      %p29 = scmp.ge.s32.totalorder %s28, 4
      %s38 = sphi 0, %s40
      %s41 = sphi 0, %s38
      %s42 = sphi 0, %s41
      %s58 = sphi 0, %s42
      %s64 = sphi 0, %s66
      %s67 = sphi 0, %s64
      %s68 = sphi 0, %s67
      %s84 = sphi 0, %s68
      %s90 = sphi 0, %s92
      %s93 = sphi 0, %s90
      %s94 = sphi 0, %s93
      %s110 = sphi 0, %s94
      %s114 = sphi 0, %s114
      %s116 = sphi 0, %s114
      %s117 = sphi 0, %s116
      %s131 = sphi 0, %s117
      %s135 = sphi 0, %s135
      %s137 = sphi 0, %s135
      %s138 = sphi 0, %s137
      %s152 = sphi 0, %s138
      %s156 = sphi 0, %s156
      %s158 = sphi 0, %s156
      %s159 = sphi 0, %s158
      %s173 = sphi 0, %s159
      %s177 = sphi 0, %s177
      %s179 = sphi 0, %s177
      %s180 = sphi 0, %s179
      %s194 = sphi 0, %s180
      %s198 = sphi 0, %s198
      %s200 = sphi 0, %s198
      %s201 = sphi 0, %s200
      %s215 = sphi 0, %s201
      %s219 = sphi 0, %s219
      %s221 = sphi 0, %s219
      %s222 = sphi 0, %s221
      %s236 = sphi 0, %s222
      %s240 = sphi 0, %s240
      %s242 = sphi 0, %s240
      %s243 = sphi 0, %s242
      %s257 = sphi 0, %s243
      %s261 = sphi 0, %s261
      %s263 = sphi 0, %s261
      %s264 = sphi 0, %s263
      %s278 = sphi 0, %s264
      %s282 = sphi 0, %s282
      %s284 = sphi 0, %s282
      %s285 = sphi 0, %s284
      %s299 = sphi 0, %s285
      %s303 = sphi 0, %s303
      %s305 = sphi 0, %s303
      %s306 = sphi 0, %s305
      %s320 = sphi 0, %s306
      %s324 = sphi 0, %s324
      %s326 = sphi 0, %s324
      %s327 = sphi 0, %s326
      %s341 = sphi 0, %s327
      %s345 = sphi 0, %s345
      %s347 = sphi 0, %s345
      %s348 = sphi 0, %s347
      %s362 = sphi 0, %s348
      %s366 = sphi 0, %s366
      %s368 = sphi 0, %s366
      %s369 = sphi 0, %s368
      %s383 = sphi 0, %s369
      %s387 = sphi 0, %s387
      %s389 = sphi 0, %s387
      %s390 = sphi 0, %s389
      %s404 = sphi 0, %s390
      %s408 = sphi 0, %s408
      %s410 = sphi 0, %s408
      %s411 = sphi 0, %s410
      %s425 = sphi 0, %s411
      %s429 = sphi 0, %s429
      %s431 = sphi 0, %s429
      %s432 = sphi 0, %s431
      %s446 = sphi 0, %s432
      %s452 = sphi 0, %s454
      %s455 = sphi 0, %s452
      %s456 = sphi 0, %s455
      %s472 = sphi 0, %s456
    $region4: #{tpu_custom_call.1} parent=1 // loop_header_branch
      %31 = sbr.rel (%p29) target = $region8
    $region5: #{tpu_custom_call.1} parent=1 // loop_body
      %s33 = ssub.s32 %s28, 1
      %s34 = ssub.s32 %s28, 2
      %s35 = sadd.s32 %s28, 1
      %s36 = ssub.s32 %s28, %s35
      %p37 = scmp.eq.s32.totalorder %s36, 0
      %s39 = sadd.s32 %s38, 1
      %s40 = scalar_select %p37, %s38, %s39
      %p43 = pneg %p37
      %p44 = scmp.eq.s32.totalorder %s28, 1
      %p45 = por %p43, %p44
      %p46 = scmp.ne.s32.totalorder %s38, %s41
      %p47 = scmp.eq.s32.totalorder %s28, 0
      %p48 = por %p46, %p47
      %p49 = scmp.ne.s32.totalorder %s38, %s41
      %p50 = scmp.eq.s32.totalorder %s33, 1
      %p51 = por %p49, %p50
      %p52 = scmp.ne.s32.totalorder %s41, %s42
      %p53 = scmp.eq.s32.totalorder %s33, 0
      %p54 = por %p52, %p53
      %p55 = scmp.ne.s32.totalorder %s41, %s42
      %p56 = scmp.eq.s32.totalorder %s34, 1
      %p57 = por %p55, %p56
      %p59 = scmp.ne.s32.totalorder %s42, %s58
      %p60 = scmp.eq.s32.totalorder %s34, 0
      %p61 = por %p59, %p60
      %s62 = ssub.s32 %s28, %s35
      %p63 = scmp.eq.s32.totalorder %s62, 0
      %s65 = sadd.s32 %s64, 1
      %s66 = scalar_select %p63, %s64, %s65
      %p69 = pneg %p63
      %p70 = scmp.eq.s32.totalorder %s28, 1
      %p71 = por %p69, %p70
      %p72 = scmp.ne.s32.totalorder %s64, %s67
      %p73 = scmp.eq.s32.totalorder %s28, 0
      %p74 = por %p72, %p73
      %p75 = scmp.ne.s32.totalorder %s64, %s67
      %p76 = scmp.eq.s32.totalorder %s33, 1
      %p77 = por %p75, %p76
      %p78 = scmp.ne.s32.totalorder %s67, %s68
      %p79 = scmp.eq.s32.totalorder %s33, 0
      %p80 = por %p78, %p79
      %p81 = scmp.ne.s32.totalorder %s67, %s68
      %p82 = scmp.eq.s32.totalorder %s34, 1
      %p83 = por %p81, %p82
      %p85 = scmp.ne.s32.totalorder %s68, %s84
      %p86 = scmp.eq.s32.totalorder %s34, 0
      %p87 = por %p85, %p86
      %s88 = ssub.s32 %s28, %s35
      %p89 = scmp.eq.s32.totalorder %s88, 0
      %s91 = sadd.s32 %s90, 1
      %s92 = scalar_select %p89, %s90, %s91
      %p95 = pneg %p89
      %p96 = scmp.eq.s32.totalorder %s28, 1
      %p97 = por %p95, %p96
      %p98 = scmp.ne.s32.totalorder %s90, %s93
      %p99 = scmp.eq.s32.totalorder %s28, 0
      %p100 = por %p98, %p99
      %p101 = scmp.ne.s32.totalorder %s90, %s93
      %p102 = scmp.eq.s32.totalorder %s33, 1
      %p103 = por %p101, %p102
      %p104 = scmp.ne.s32.totalorder %s93, %s94
      %p105 = scmp.eq.s32.totalorder %s33, 0
      %p106 = por %p104, %p105
      %p107 = scmp.ne.s32.totalorder %s93, %s94
      %p108 = scmp.eq.s32.totalorder %s34, 1
      %p109 = por %p107, %p108
      %p111 = scmp.ne.s32.totalorder %s94, %s110
      %p112 = scmp.eq.s32.totalorder %s34, 0
      %p113 = por %p111, %p112
      %s115 = sadd.s32 %s114, 1
      %p118 = scmp.eq.s32.totalorder %s28, 1
      %p119 = scmp.ne.s32.totalorder %s114, %s116
      %p120 = scmp.eq.s32.totalorder %s28, 0
      %p121 = por %p119, %p120
      %p122 = scmp.ne.s32.totalorder %s114, %s116
      %p123 = scmp.eq.s32.totalorder %s33, 1
      %p124 = por %p122, %p123
      %p125 = scmp.ne.s32.totalorder %s116, %s117
      %p126 = scmp.eq.s32.totalorder %s33, 0
      %p127 = por %p125, %p126
      %p128 = scmp.ne.s32.totalorder %s116, %s117
      %p129 = scmp.eq.s32.totalorder %s34, 1
      %p130 = por %p128, %p129
      %p132 = scmp.ne.s32.totalorder %s117, %s131
      %p133 = scmp.eq.s32.totalorder %s34, 0
      %p134 = por %p132, %p133
      %s136 = sadd.s32 %s135, 1
      %p139 = scmp.eq.s32.totalorder %s28, 1
      %p140 = scmp.ne.s32.totalorder %s135, %s137
      %p141 = scmp.eq.s32.totalorder %s28, 0
      %p142 = por %p140, %p141
      %p143 = scmp.ne.s32.totalorder %s135, %s137
      %p144 = scmp.eq.s32.totalorder %s33, 1
      %p145 = por %p143, %p144
      %p146 = scmp.ne.s32.totalorder %s137, %s138
      %p147 = scmp.eq.s32.totalorder %s33, 0
      %p148 = por %p146, %p147
      %p149 = scmp.ne.s32.totalorder %s137, %s138
      %p150 = scmp.eq.s32.totalorder %s34, 1
      %p151 = por %p149, %p150
      %p153 = scmp.ne.s32.totalorder %s138, %s152
      %p154 = scmp.eq.s32.totalorder %s34, 0
      %p155 = por %p153, %p154
      %s157 = sadd.s32 %s156, 1
      %p160 = scmp.eq.s32.totalorder %s28, 1
      %p161 = scmp.ne.s32.totalorder %s156, %s158
      %p162 = scmp.eq.s32.totalorder %s28, 0
      %p163 = por %p161, %p162
      %p164 = scmp.ne.s32.totalorder %s156, %s158
      %p165 = scmp.eq.s32.totalorder %s33, 1
      %p166 = por %p164, %p165
      %p167 = scmp.ne.s32.totalorder %s158, %s159
      %p168 = scmp.eq.s32.totalorder %s33, 0
      %p169 = por %p167, %p168
      %p170 = scmp.ne.s32.totalorder %s158, %s159
      %p171 = scmp.eq.s32.totalorder %s34, 1
      %p172 = por %p170, %p171
      %p174 = scmp.ne.s32.totalorder %s159, %s173
      %p175 = scmp.eq.s32.totalorder %s34, 0
      %p176 = por %p174, %p175
      %s178 = sadd.s32 %s177, 1
      %p181 = scmp.eq.s32.totalorder %s28, 1
      %p182 = scmp.ne.s32.totalorder %s177, %s179
      %p183 = scmp.eq.s32.totalorder %s28, 0
      %p184 = por %p182, %p183
      %p185 = scmp.ne.s32.totalorder %s177, %s179
      %p186 = scmp.eq.s32.totalorder %s33, 1
      %p187 = por %p185, %p186
      %p188 = scmp.ne.s32.totalorder %s179, %s180
      %p189 = scmp.eq.s32.totalorder %s33, 0
      %p190 = por %p188, %p189
      %p191 = scmp.ne.s32.totalorder %s179, %s180
      %p192 = scmp.eq.s32.totalorder %s34, 1
      %p193 = por %p191, %p192
      %p195 = scmp.ne.s32.totalorder %s180, %s194
      %p196 = scmp.eq.s32.totalorder %s34, 0
      %p197 = por %p195, %p196
      %s199 = sadd.s32 %s198, 1
      %p202 = scmp.eq.s32.totalorder %s28, 1
      %p203 = scmp.ne.s32.totalorder %s198, %s200
      %p204 = scmp.eq.s32.totalorder %s28, 0
      %p205 = por %p203, %p204
      %p206 = scmp.ne.s32.totalorder %s198, %s200
      %p207 = scmp.eq.s32.totalorder %s33, 1
      %p208 = por %p206, %p207
      %p209 = scmp.ne.s32.totalorder %s200, %s201
      %p210 = scmp.eq.s32.totalorder %s33, 0
      %p211 = por %p209, %p210
      %p212 = scmp.ne.s32.totalorder %s200, %s201
      %p213 = scmp.eq.s32.totalorder %s34, 1
      %p214 = por %p212, %p213
      %p216 = scmp.ne.s32.totalorder %s201, %s215
      %p217 = scmp.eq.s32.totalorder %s34, 0
      %p218 = por %p216, %p217
      %s220 = sadd.s32 %s219, 1
      %p223 = scmp.eq.s32.totalorder %s28, 1
      %p224 = scmp.ne.s32.totalorder %s219, %s221
      %p225 = scmp.eq.s32.totalorder %s28, 0
      %p226 = por %p224, %p225
      %p227 = scmp.ne.s32.totalorder %s219, %s221
      %p228 = scmp.eq.s32.totalorder %s33, 1
      %p229 = por %p227, %p228
      %p230 = scmp.ne.s32.totalorder %s221, %s222
      %p231 = scmp.eq.s32.totalorder %s33, 0
      %p232 = por %p230, %p231
      %p233 = scmp.ne.s32.totalorder %s221, %s222
      %p234 = scmp.eq.s32.totalorder %s34, 1
      %p235 = por %p233, %p234
      %p237 = scmp.ne.s32.totalorder %s222, %s236
      %p238 = scmp.eq.s32.totalorder %s34, 0
      %p239 = por %p237, %p238
      %s241 = sadd.s32 %s240, 1
      %p244 = scmp.eq.s32.totalorder %s28, 1
      %p245 = scmp.ne.s32.totalorder %s240, %s242
      %p246 = scmp.eq.s32.totalorder %s28, 0
      %p247 = por %p245, %p246
      %p248 = scmp.ne.s32.totalorder %s240, %s242
      %p249 = scmp.eq.s32.totalorder %s33, 1
      %p250 = por %p248, %p249
      %p251 = scmp.ne.s32.totalorder %s242, %s243
      %p252 = scmp.eq.s32.totalorder %s33, 0
      %p253 = por %p251, %p252
      %p254 = scmp.ne.s32.totalorder %s242, %s243
      %p255 = scmp.eq.s32.totalorder %s34, 1
      %p256 = por %p254, %p255
      %p258 = scmp.ne.s32.totalorder %s243, %s257
      %p259 = scmp.eq.s32.totalorder %s34, 0
      %p260 = por %p258, %p259
      %s262 = sadd.s32 %s261, 1
      %p265 = scmp.eq.s32.totalorder %s28, 1
      %p266 = scmp.ne.s32.totalorder %s261, %s263
      %p267 = scmp.eq.s32.totalorder %s28, 0
      %p268 = por %p266, %p267
      %p269 = scmp.ne.s32.totalorder %s261, %s263
      %p270 = scmp.eq.s32.totalorder %s33, 1
      %p271 = por %p269, %p270
      %p272 = scmp.ne.s32.totalorder %s263, %s264
      %p273 = scmp.eq.s32.totalorder %s33, 0
      %p274 = por %p272, %p273
      %p275 = scmp.ne.s32.totalorder %s263, %s264
      %p276 = scmp.eq.s32.totalorder %s34, 1
      %p277 = por %p275, %p276
      %p279 = scmp.ne.s32.totalorder %s264, %s278
      %p280 = scmp.eq.s32.totalorder %s34, 0
      %p281 = por %p279, %p280
      %s283 = sadd.s32 %s282, 1
      %p286 = scmp.eq.s32.totalorder %s28, 1
      %p287 = scmp.ne.s32.totalorder %s282, %s284
      %p288 = scmp.eq.s32.totalorder %s28, 0
      %p289 = por %p287, %p288
      %p290 = scmp.ne.s32.totalorder %s282, %s284
      %p291 = scmp.eq.s32.totalorder %s33, 1
      %p292 = por %p290, %p291
      %p293 = scmp.ne.s32.totalorder %s284, %s285
      %p294 = scmp.eq.s32.totalorder %s33, 0
      %p295 = por %p293, %p294
      %p296 = scmp.ne.s32.totalorder %s284, %s285
      %p297 = scmp.eq.s32.totalorder %s34, 1
      %p298 = por %p296, %p297
      %p300 = scmp.ne.s32.totalorder %s285, %s299
      %p301 = scmp.eq.s32.totalorder %s34, 0
      %p302 = por %p300, %p301
      %s304 = sadd.s32 %s303, 1
      %p307 = scmp.eq.s32.totalorder %s28, 1
      %p308 = scmp.ne.s32.totalorder %s303, %s305
      %p309 = scmp.eq.s32.totalorder %s28, 0
      %p310 = por %p308, %p309
      %p311 = scmp.ne.s32.totalorder %s303, %s305
      %p312 = scmp.eq.s32.totalorder %s33, 1
      %p313 = por %p311, %p312
      %p314 = scmp.ne.s32.totalorder %s305, %s306
      %p315 = scmp.eq.s32.totalorder %s33, 0
      %p316 = por %p314, %p315
      %p317 = scmp.ne.s32.totalorder %s305, %s306
      %p318 = scmp.eq.s32.totalorder %s34, 1
      %p319 = por %p317, %p318
      %p321 = scmp.ne.s32.totalorder %s306, %s320
      %p322 = scmp.eq.s32.totalorder %s34, 0
      %p323 = por %p321, %p322
      %s325 = sadd.s32 %s324, 1
      %p328 = scmp.eq.s32.totalorder %s28, 1
      %p329 = scmp.ne.s32.totalorder %s324, %s326
      %p330 = scmp.eq.s32.totalorder %s28, 0
      %p331 = por %p329, %p330
      %p332 = scmp.ne.s32.totalorder %s324, %s326
      %p333 = scmp.eq.s32.totalorder %s33, 1
      %p334 = por %p332, %p333
      %p335 = scmp.ne.s32.totalorder %s326, %s327
      %p336 = scmp.eq.s32.totalorder %s33, 0
      %p337 = por %p335, %p336
      %p338 = scmp.ne.s32.totalorder %s326, %s327
      %p339 = scmp.eq.s32.totalorder %s34, 1
      %p340 = por %p338, %p339
      %p342 = scmp.ne.s32.totalorder %s327, %s341
      %p343 = scmp.eq.s32.totalorder %s34, 0
      %p344 = por %p342, %p343
      %s346 = sadd.s32 %s345, 1
      %p349 = scmp.eq.s32.totalorder %s28, 1
      %p350 = scmp.ne.s32.totalorder %s345, %s347
      %p351 = scmp.eq.s32.totalorder %s28, 0
      %p352 = por %p350, %p351
      %p353 = scmp.ne.s32.totalorder %s345, %s347
      %p354 = scmp.eq.s32.totalorder %s33, 1
      %p355 = por %p353, %p354
      %p356 = scmp.ne.s32.totalorder %s347, %s348
      %p357 = scmp.eq.s32.totalorder %s33, 0
      %p358 = por %p356, %p357
      %p359 = scmp.ne.s32.totalorder %s347, %s348
      %p360 = scmp.eq.s32.totalorder %s34, 1
      %p361 = por %p359, %p360
      %p363 = scmp.ne.s32.totalorder %s348, %s362
      %p364 = scmp.eq.s32.totalorder %s34, 0
      %p365 = por %p363, %p364
      %s367 = sadd.s32 %s366, 1
      %p370 = scmp.eq.s32.totalorder %s28, 1
      %p371 = scmp.ne.s32.totalorder %s366, %s368
      %p372 = scmp.eq.s32.totalorder %s28, 0
      %p373 = por %p371, %p372
      %p374 = scmp.ne.s32.totalorder %s366, %s368
      %p375 = scmp.eq.s32.totalorder %s33, 1
      %p376 = por %p374, %p375
      %p377 = scmp.ne.s32.totalorder %s368, %s369
      %p378 = scmp.eq.s32.totalorder %s33, 0
      %p379 = por %p377, %p378
      %p380 = scmp.ne.s32.totalorder %s368, %s369
      %p381 = scmp.eq.s32.totalorder %s34, 1
      %p382 = por %p380, %p381
      %p384 = scmp.ne.s32.totalorder %s369, %s383
      %p385 = scmp.eq.s32.totalorder %s34, 0
      %p386 = por %p384, %p385
      %s388 = sadd.s32 %s387, 1
      %p391 = scmp.eq.s32.totalorder %s28, 1
      %p392 = scmp.ne.s32.totalorder %s387, %s389
      %p393 = scmp.eq.s32.totalorder %s28, 0
      %p394 = por %p392, %p393
      %p395 = scmp.ne.s32.totalorder %s387, %s389
      %p396 = scmp.eq.s32.totalorder %s33, 1
      %p397 = por %p395, %p396
      %p398 = scmp.ne.s32.totalorder %s389, %s390
      %p399 = scmp.eq.s32.totalorder %s33, 0
      %p400 = por %p398, %p399
      %p401 = scmp.ne.s32.totalorder %s389, %s390
      %p402 = scmp.eq.s32.totalorder %s34, 1
      %p403 = por %p401, %p402
      %p405 = scmp.ne.s32.totalorder %s390, %s404
      %p406 = scmp.eq.s32.totalorder %s34, 0
      %p407 = por %p405, %p406
      %s409 = sadd.s32 %s408, 1
      %p412 = scmp.eq.s32.totalorder %s28, 1
      %p413 = scmp.ne.s32.totalorder %s408, %s410
      %p414 = scmp.eq.s32.totalorder %s28, 0
      %p415 = por %p413, %p414
      %p416 = scmp.ne.s32.totalorder %s408, %s410
      %p417 = scmp.eq.s32.totalorder %s33, 1
      %p418 = por %p416, %p417
      %p419 = scmp.ne.s32.totalorder %s410, %s411
      %p420 = scmp.eq.s32.totalorder %s33, 0
      %p421 = por %p419, %p420
      %p422 = scmp.ne.s32.totalorder %s410, %s411
      %p423 = scmp.eq.s32.totalorder %s34, 1
      %p424 = por %p422, %p423
      %p426 = scmp.ne.s32.totalorder %s411, %s425
      %p427 = scmp.eq.s32.totalorder %s34, 0
      %p428 = por %p426, %p427
      %s430 = sadd.s32 %s429, 1
      %p433 = scmp.eq.s32.totalorder %s28, 1
      %p434 = scmp.ne.s32.totalorder %s429, %s431
      %p435 = scmp.eq.s32.totalorder %s28, 0
      %p436 = por %p434, %p435
      %p437 = scmp.ne.s32.totalorder %s429, %s431
      %p438 = scmp.eq.s32.totalorder %s33, 1
      %p439 = por %p437, %p438
      %p440 = scmp.ne.s32.totalorder %s431, %s432
      %p441 = scmp.eq.s32.totalorder %s33, 0
      %p442 = por %p440, %p441
      %p443 = scmp.ne.s32.totalorder %s431, %s432
      %p444 = scmp.eq.s32.totalorder %s34, 1
      %p445 = por %p443, %p444
      %p447 = scmp.ne.s32.totalorder %s432, %s446
      %p448 = scmp.eq.s32.totalorder %s34, 0
      %p449 = por %p447, %p448
      %s450 = ssub.s32 %s28, %s35
      %p451 = scmp.eq.s32.totalorder %s450, 0
      %s453 = sadd.s32 %s452, 1
      %s454 = scalar_select %p451, %s452, %s453
      %p457 = pneg %p451
      %p458 = scmp.eq.s32.totalorder %s28, 1
      %p459 = por %p457, %p458
      %p460 = scmp.ne.s32.totalorder %s452, %s455
      %p461 = scmp.eq.s32.totalorder %s28, 0
      %p462 = por %p460, %p461
      %p463 = scmp.ne.s32.totalorder %s452, %s455
      %p464 = scmp.eq.s32.totalorder %s33, 1
      %p465 = por %p463, %p464
      %p466 = scmp.ne.s32.totalorder %s455, %s456
      %p467 = scmp.eq.s32.totalorder %s33, 0
      %p468 = por %p466, %p467
      %p469 = scmp.ne.s32.totalorder %s455, %s456
      %p470 = scmp.eq.s32.totalorder %s34, 1
      %p471 = por %p469, %p470
      %p473 = scmp.ne.s32.totalorder %s456, %s472
      %p474 = scmp.eq.s32.totalorder %s34, 0
      %p475 = por %p473, %p474
      %p476 = scmp.le.s32.totalorder 1, %s28
      %p477 = scmp.lt.s32.totalorder %s28, 3
      %p478 = pnand %p476, %p477
      %p479 = pneg %p478
      // Predicated region
      $region9: #{tpu_custom_call.1} parent=5 // pred_check
        _
      $region10: #{tpu_custom_call.1} parent=5 // pred_check_branch
        %481 = sbr.rel (%p478) target = $region12
      $region11: #{tpu_custom_call.1} parent=5 // pred_region
        %s482 = ssub.s32 %s28, 1
        // Predicated region
        $region13: #{tpu_custom_call.1} parent=11 // pred_check
          %p483 = pneg %p127
        $region14: #{tpu_custom_call.1} parent=11 // pred_check_branch
          %485 = sbr.rel (%p483) target = $region16
        $region15: #{tpu_custom_call.1} parent=11 // pred_region
          _
        $region16: #{tpu_custom_call.1} parent=11 // pred_fallthru
          _
        // Predicated region
        $region17: #{tpu_custom_call.1} parent=11 // pred_check
          %p486 = pneg %p148
        $region18: #{tpu_custom_call.1} parent=11 // pred_check_branch
          %488 = sbr.rel (%p486) target = $region20
        $region19: #{tpu_custom_call.1} parent=11 // pred_region
          _
        $region20: #{tpu_custom_call.1} parent=11 // pred_fallthru
          _
        // Predicated region
        $region21: #{tpu_custom_call.1} parent=11 // pred_check
          %p489 = pneg %p169
        $region22: #{tpu_custom_call.1} parent=11 // pred_check_branch
          %491 = sbr.rel (%p489) target = $region24
        $region23: #{tpu_custom_call.1} parent=11 // pred_region
          _
        $region24: #{tpu_custom_call.1} parent=11 // pred_fallthru
          _
        // Predicated region
        $region25: #{tpu_custom_call.1} parent=11 // pred_check
          %p492 = pneg %p190
        $region26: #{tpu_custom_call.1} parent=11 // pred_check_branch
          %494 = sbr.rel (%p492) target = $region28
        $region27: #{tpu_custom_call.1} parent=11 // pred_region
          _
        $region28: #{tpu_custom_call.1} parent=11 // pred_fallthru
          _
        // Predicated region
        $region29: #{tpu_custom_call.1} parent=11 // pred_check
          %p495 = pneg %p211
        $region30: #{tpu_custom_call.1} parent=11 // pred_check_branch
          %497 = sbr.rel (%p495) target = $region32
        $region31: #{tpu_custom_call.1} parent=11 // pred_region
          _
        $region32: #{tpu_custom_call.1} parent=11 // pred_fallthru
          _
        // Predicated region
        $region33: #{tpu_custom_call.1} parent=11 // pred_check
          %p498 = pneg %p232
        $region34: #{tpu_custom_call.1} parent=11 // pred_check_branch
          %500 = sbr.rel (%p498) target = $region36
        $region35: #{tpu_custom_call.1} parent=11 // pred_region
          _
        $region36: #{tpu_custom_call.1} parent=11 // pred_fallthru
          _
        // Predicated region
        $region37: #{tpu_custom_call.1} parent=11 // pred_check
          %p501 = pneg %p253
        $region38: #{tpu_custom_call.1} parent=11 // pred_check_branch
          %503 = sbr.rel (%p501) target = $region40
        $region39: #{tpu_custom_call.1} parent=11 // pred_region
          _
        $region40: #{tpu_custom_call.1} parent=11 // pred_fallthru
          _
        // Predicated region
        $region41: #{tpu_custom_call.1} parent=11 // pred_check
          %p504 = pneg %p274
        $region42: #{tpu_custom_call.1} parent=11 // pred_check_branch
          %506 = sbr.rel (%p504) target = $region44
        $region43: #{tpu_custom_call.1} parent=11 // pred_region
          _
        $region44: #{tpu_custom_call.1} parent=11 // pred_fallthru
          _
        // Predicated region
        $region45: #{tpu_custom_call.1} parent=11 // pred_check
          %p507 = pneg %p295
        $region46: #{tpu_custom_call.1} parent=11 // pred_check_branch
          %509 = sbr.rel (%p507) target = $region48
        $region47: #{tpu_custom_call.1} parent=11 // pred_region
          _
        $region48: #{tpu_custom_call.1} parent=11 // pred_fallthru
          _
        // Predicated region
        $region49: #{tpu_custom_call.1} parent=11 // pred_check
          %p510 = pneg %p316
        $region50: #{tpu_custom_call.1} parent=11 // pred_check_branch
          %512 = sbr.rel (%p510) target = $region52
        $region51: #{tpu_custom_call.1} parent=11 // pred_region
          _
        $region52: #{tpu_custom_call.1} parent=11 // pred_fallthru
          _
        // Predicated region
        $region53: #{tpu_custom_call.1} parent=11 // pred_check
          %p513 = pneg %p337
        $region54: #{tpu_custom_call.1} parent=11 // pred_check_branch
          %515 = sbr.rel (%p513) target = $region56
        $region55: #{tpu_custom_call.1} parent=11 // pred_region
          _
        $region56: #{tpu_custom_call.1} parent=11 // pred_fallthru
          _
        // Predicated region
        $region57: #{tpu_custom_call.1} parent=11 // pred_check
          %p516 = pneg %p358
        $region58: #{tpu_custom_call.1} parent=11 // pred_check_branch
          %518 = sbr.rel (%p516) target = $region60
        $region59: #{tpu_custom_call.1} parent=11 // pred_region
          _
        $region60: #{tpu_custom_call.1} parent=11 // pred_fallthru
          _
        // Predicated region
        $region61: #{tpu_custom_call.1} parent=11 // pred_check
          %p519 = pneg %p379
        $region62: #{tpu_custom_call.1} parent=11 // pred_check_branch
          %521 = sbr.rel (%p519) target = $region64
        $region63: #{tpu_custom_call.1} parent=11 // pred_region
          _
        $region64: #{tpu_custom_call.1} parent=11 // pred_fallthru
          _
        // Predicated region
        $region65: #{tpu_custom_call.1} parent=11 // pred_check
          %p522 = pneg %p400
        $region66: #{tpu_custom_call.1} parent=11 // pred_check_branch
          %524 = sbr.rel (%p522) target = $region68
        $region67: #{tpu_custom_call.1} parent=11 // pred_region
          _
        $region68: #{tpu_custom_call.1} parent=11 // pred_fallthru
          _
        // Predicated region
        $region69: #{tpu_custom_call.1} parent=11 // pred_check
          %p525 = pneg %p421
        $region70: #{tpu_custom_call.1} parent=11 // pred_check_branch
          %527 = sbr.rel (%p525) target = $region72
        $region71: #{tpu_custom_call.1} parent=11 // pred_region
          _
        $region72: #{tpu_custom_call.1} parent=11 // pred_fallthru
          _
        // Predicated region
        $region73: #{tpu_custom_call.1} parent=11 // pred_check
          %p528 = pneg %p442
        $region74: #{tpu_custom_call.1} parent=11 // pred_check_branch
          %530 = sbr.rel (%p528) target = $region76
        $region75: #{tpu_custom_call.1} parent=11 // pred_region
          _
        $region76: #{tpu_custom_call.1} parent=11 // pred_fallthru
          _
      $region12: #{tpu_custom_call.1} parent=5 // pred_fallthru
        _
      %p531 = scmp.lt.s32.totalorder %s28, 2
      // Predicated region
      $region77: #{tpu_custom_call.1} parent=5 // pred_check
        %p532 = pneg %p531
      $region78: #{tpu_custom_call.1} parent=5 // pred_check_branch
        %534 = sbr.rel (%p532) target = $region80
      $region79: #{tpu_custom_call.1} parent=5 // pred_region
        // Predicated region
        $region81: #{tpu_custom_call.1} parent=79 // pred_check
          %p535 = pneg %p48
        $region82: #{tpu_custom_call.1} parent=79 // pred_check_branch
          %537 = sbr.rel (%p535) target = $region84
        $region83: #{tpu_custom_call.1} parent=79 // pred_region
          %s538 = smul.u32 32, %s28
          %p539 = scmp.lt.s32.totalorder %s538, 63
          %s540 = scalar_select %p539, %s538, 63
          %s541 = smul.addr %s540, 4
          %s542 = scalar_lea.vmem %s0, %s541
          %s543 = smul.u32 32, %s28
        $region84: #{tpu_custom_call.1} parent=79 // pred_fallthru
          _
        // Predicated region
        $region85: #{tpu_custom_call.1} parent=79 // pred_check
          %p544 = pneg %p74
        $region86: #{tpu_custom_call.1} parent=79 // pred_check_branch
          %546 = sbr.rel (%p544) target = $region88
        $region87: #{tpu_custom_call.1} parent=79 // pred_region
          %s547 = smul.u32 32, %s28
          %p548 = scmp.lt.s32.totalorder %s547, 63
          %s549 = scalar_select %p548, %s547, 63
          %s550 = smul.addr %s549, 4
          %s551 = scalar_lea.vmem %s1, %s550
          %s552 = smul.u32 32, %s28
        $region88: #{tpu_custom_call.1} parent=79 // pred_fallthru
          _
        // Predicated region
        $region89: #{tpu_custom_call.1} parent=79 // pred_check
          %p553 = pneg %p100
        $region90: #{tpu_custom_call.1} parent=79 // pred_check_branch
          %555 = sbr.rel (%p553) target = $region92
        $region91: #{tpu_custom_call.1} parent=79 // pred_region
          %s556 = smul.u32 32, %s28
          %p557 = scmp.lt.s32.totalorder %s556, 63
          %s558 = scalar_select %p557, %s556, 63
          %s559 = smul.addr %s558, 8
          %s560 = scalar_lea.vmem %s2, %s559
          %s561 = smul.u32 32, %s28
        $region92: #{tpu_custom_call.1} parent=79 // pred_fallthru
          _
      $region80: #{tpu_custom_call.1} parent=5 // pred_fallthru
        _
      %p562 = scmp.le.s32.totalorder 1, %s28
      %p563 = scmp.lt.s32.totalorder %s28, 3
      %p564 = pnand %p562, %p563
      %p565 = pneg %p564
      // Predicated region
      $region93: #{tpu_custom_call.1} parent=5 // pred_check
        _
      $region94: #{tpu_custom_call.1} parent=5 // pred_check_branch
        %567 = sbr.rel (%p564) target = $region96
      $region95: #{tpu_custom_call.1} parent=5 // pred_region
        %s568 = ssub.s32 %s28, 1
        %s569 = smul.u32 32, %s33
        %p570 = scmp.lt.s32.totalorder %s569, 63
        %s571 = scalar_select %p570, %s569, 63
        %s572 = smul.addr %s571, 4
        %s573 = scalar_lea.vmem %s0, %s572
        %p574 = pneg %p54
        %p575 = pneg %p51
        %s576 = smul.u32 32, %s33
        %p577 = scmp.lt.s32.totalorder %s576, 63
        %s578 = scalar_select %p577, %s576, 63
        %s579 = smul.addr %s578, 4
        %s580 = scalar_lea.vmem %s1, %s579
        %p581 = pneg %p80
        %p582 = pneg %p77
        %s583 = smul.u32 32, %s33
        %p584 = scmp.lt.s32.totalorder %s583, 63
        %s585 = scalar_select %p584, %s583, 63
        %s586 = smul.addr %s585, 8
        %s587 = scalar_lea.vmem %s2, %s586
        %p588 = pneg %p106
        %p589 = pneg %p103
        %p590 = pneg %p127
        %p591 = pneg %p124
        %p592 = pneg %p148
        %p593 = pneg %p145
        %p594 = pneg %p169
        %p595 = pneg %p166
        %p596 = pneg %p190
        %p597 = pneg %p187
        %p598 = pneg %p211
        %p599 = pneg %p208
        %p600 = pneg %p232
        %p601 = pneg %p229
        %p602 = pneg %p253
        %p603 = pneg %p250
        %p604 = pneg %p274
        %p605 = pneg %p271
        %p606 = pneg %p295
        %p607 = pneg %p292
        %p608 = pneg %p316
        %p609 = pneg %p313
        %p610 = pneg %p337
        %p611 = pneg %p334
        %p612 = pneg %p358
        %p613 = pneg %p355
        %p614 = pneg %p379
        %p615 = pneg %p376
        %p616 = pneg %p400
        %p617 = pneg %p397
        %p618 = pneg %p421
        %p619 = pneg %p418
        %p620 = pneg %p442
        %p621 = pneg %p439
        %p622 = pneg %p468
        %p623 = pneg %p465
        %s624 = sand.u32 %s455, 1
        %s625 = scalar_lea.sflag [#allocation3], %s624
        %s626 = sand.u32 %s455, 1
        %s627 = smul.addr %s626, 256
        %s628 = scalar_lea.vmem [#allocation2], %s627
        %s629 = smul.u32 32, %s33
        %p630 = scmp.lt.s32.totalorder %s629, 63
        %s631 = scalar_select %p630, %s629, 63
        %s632 = smul.addr %s631, 4
        %s633 = scalar_lea.vmem %s0, %s632
        %s634 = smul.u32 32, %s33
        %s635 = smul.u32 32, %s33
        %p636 = scmp.lt.s32.totalorder %s635, 63
        %s637 = scalar_select %p636, %s635, 63
        %s638 = smul.addr %s637, 4
        %s639 = scalar_lea.vmem %s1, %s638
        %s640 = smul.u32 32, %s33
        %s641 = smul.u32 32, %s33
        %p642 = scmp.lt.s32.totalorder %s641, 63
        %s643 = scalar_select %p642, %s641, 63
        %s644 = smul.addr %s643, 8
        %s645 = scalar_lea.vmem %s2, %s644
        %s646 = smul.u32 32, %s33
        %s647 = smul.u32 32, %s33
        %v649 = vld [vmem:[%s633] sm:$0xf]
        %v650 = vld [vmem:[%s633 + $0x4] sm:$0xf]
        %v651 = vld [vmem:[%s633 + $0x8] sm:$0xf]
        %v652 = vld [vmem:[%s633 + $0xc] sm:$0xf]
        %v653 = vld [vmem:[%s633 + $0x10] sm:$0xf]
        %v654 = vld [vmem:[%s633 + $0x14] sm:$0xf]
        %v655 = vld [vmem:[%s633 + $0x18] sm:$0xf]
        %v656 = vld [vmem:[%s633 + $0x1c] sm:$0xf]
        %v657 = vld [vmem:[%s633 + $0x20] sm:$0xf]
        %v658 = vld [vmem:[%s633 + $0x24] sm:$0xf]
        %v659 = vld [vmem:[%s633 + $0x28] sm:$0xf]
        %v660 = vld [vmem:[%s633 + $0x2c] sm:$0xf]
        %v661 = vld [vmem:[%s633 + $0x30] sm:$0xf]
        %v662 = vld [vmem:[%s633 + $0x34] sm:$0xf]
        %v663 = vld [vmem:[%s633 + $0x38] sm:$0xf]
        %v664 = vld [vmem:[%s633 + $0x3c] sm:$0xf]
        %v665 = vld [vmem:[%s633 + $0x40] sm:$0xf]
        %v666 = vld [vmem:[%s633 + $0x44] sm:$0xf]
        %v667 = vld [vmem:[%s633 + $0x48] sm:$0xf]
        %v668 = vld [vmem:[%s633 + $0x4c] sm:$0xf]
        %v669 = vld [vmem:[%s633 + $0x50] sm:$0xf]
        %v670 = vld [vmem:[%s633 + $0x54] sm:$0xf]
        %v671 = vld [vmem:[%s633 + $0x58] sm:$0xf]
        %v672 = vld [vmem:[%s633 + $0x5c] sm:$0xf]
        %v673 = vld [vmem:[%s633 + $0x60] sm:$0xf]
        %v674 = vld [vmem:[%s633 + $0x64] sm:$0xf]
        %v675 = vld [vmem:[%s633 + $0x68] sm:$0xf]
        %v676 = vld [vmem:[%s633 + $0x6c] sm:$0xf]
        %v677 = vld [vmem:[%s633 + $0x70] sm:$0xf]
        %v678 = vld [vmem:[%s633 + $0x74] sm:$0xf]
        %v679 = vld [vmem:[%s633 + $0x78] sm:$0xf]
        %v680 = vld [vmem:[%s633 + $0x7c] sm:$0xf]
        %v681 = vld [vmem:[%s639] sm:$0xf]
        %v682 = vld [vmem:[%s639 + $0x4] sm:$0xf]
        %v683 = vld [vmem:[%s639 + $0x8] sm:$0xf]
        %v684 = vld [vmem:[%s639 + $0xc] sm:$0xf]
        %v685 = vld [vmem:[%s639 + $0x10] sm:$0xf]
        %v686 = vld [vmem:[%s639 + $0x14] sm:$0xf]
        %v687 = vld [vmem:[%s639 + $0x18] sm:$0xf]
        %v688 = vld [vmem:[%s639 + $0x1c] sm:$0xf]
        %v689 = vld [vmem:[%s639 + $0x20] sm:$0xf]
        %v690 = vld [vmem:[%s639 + $0x24] sm:$0xf]
        %v691 = vld [vmem:[%s639 + $0x28] sm:$0xf]
        %v692 = vld [vmem:[%s639 + $0x2c] sm:$0xf]
        %v693 = vld [vmem:[%s639 + $0x30] sm:$0xf]
        %v694 = vld [vmem:[%s639 + $0x34] sm:$0xf]
        %v695 = vld [vmem:[%s639 + $0x38] sm:$0xf]
        %v696 = vld [vmem:[%s639 + $0x3c] sm:$0xf]
        %v697 = vld [vmem:[%s639 + $0x40] sm:$0xf]
        %v698 = vld [vmem:[%s639 + $0x44] sm:$0xf]
        %v699 = vld [vmem:[%s639 + $0x48] sm:$0xf]
        %v700 = vld [vmem:[%s639 + $0x4c] sm:$0xf]
        %v701 = vld [vmem:[%s639 + $0x50] sm:$0xf]
        %v702 = vld [vmem:[%s639 + $0x54] sm:$0xf]
        %v703 = vld [vmem:[%s639 + $0x58] sm:$0xf]
        %v704 = vld [vmem:[%s639 + $0x5c] sm:$0xf]
        %v705 = vld [vmem:[%s639 + $0x60] sm:$0xf]
        %v706 = vld [vmem:[%s639 + $0x64] sm:$0xf]
        %v707 = vld [vmem:[%s639 + $0x68] sm:$0xf]
        %v708 = vld [vmem:[%s639 + $0x6c] sm:$0xf]
        %v709 = vld [vmem:[%s639 + $0x70] sm:$0xf]
        %v710 = vld [vmem:[%s639 + $0x74] sm:$0xf]
        %v711 = vld [vmem:[%s639 + $0x78] sm:$0xf]
        %v712 = vld [vmem:[%s639 + $0x7c] sm:$0xf]
        %v713 = vld [vmem:[%s645] sm:$0xff]
        %v714 = vld [vmem:[%s645 + $0x8] sm:$0xff]
        %v715 = vld [vmem:[%s645 + $0x10] sm:$0xff]
        %v716 = vld [vmem:[%s645 + $0x18] sm:$0xff]
        %v717 = vld [vmem:[%s645 + $0x20] sm:$0xff]
        %v718 = vld [vmem:[%s645 + $0x28] sm:$0xff]
        %v719 = vld [vmem:[%s645 + $0x30] sm:$0xff]
        %v720 = vld [vmem:[%s645 + $0x38] sm:$0xff]
        %v721 = vld [vmem:[%s645 + $0x40] sm:$0xff]
        %v722 = vld [vmem:[%s645 + $0x48] sm:$0xff]
        %v723 = vld [vmem:[%s645 + $0x50] sm:$0xff]
        %v724 = vld [vmem:[%s645 + $0x58] sm:$0xff]
        %v725 = vld [vmem:[%s645 + $0x60] sm:$0xff]
        %v726 = vld [vmem:[%s645 + $0x68] sm:$0xff]
        %v727 = vld [vmem:[%s645 + $0x70] sm:$0xff]
        %v728 = vld [vmem:[%s645 + $0x78] sm:$0xff]
        %v729 = vld [vmem:[%s645 + $0x80] sm:$0xff]
        %v730 = vld [vmem:[%s645 + $0x88] sm:$0xff]
        %v731 = vld [vmem:[%s645 + $0x90] sm:$0xff]
        %v732 = vld [vmem:[%s645 + $0x98] sm:$0xff]
        %v733 = vld [vmem:[%s645 + $0xa0] sm:$0xff]
        %v734 = vld [vmem:[%s645 + $0xa8] sm:$0xff]
        %v735 = vld [vmem:[%s645 + $0xb0] sm:$0xff]
        %v736 = vld [vmem:[%s645 + $0xb8] sm:$0xff]
        %v737 = vld [vmem:[%s645 + $0xc0] sm:$0xff]
        %v738 = vld [vmem:[%s645 + $0xc8] sm:$0xff]
        %v739 = vld [vmem:[%s645 + $0xd0] sm:$0xff]
        %v740 = vld [vmem:[%s645 + $0xd8] sm:$0xff]
        %v741 = vld [vmem:[%s645 + $0xe0] sm:$0xff]
        %v742 = vld [vmem:[%s645 + $0xe8] sm:$0xff]
        %v743 = vld [vmem:[%s645 + $0xf0] sm:$0xff]
        %v744 = vld [vmem:[%s645 + $0xf8] sm:$0xff]
        %v745 = vld [vmem:[%s3] sm:$0xf]
        %v746 = vld [vmem:[%s3 + $0x4] sm:$0xf]
        %v747 = vld [vmem:[%s3 + $0x8] sm:$0xf]
        %v748 = vld [vmem:[%s3 + $0xc] sm:$0xf]
        %v749 = vld [vmem:[%s3 + $0x10] sm:$0xf]
        %v750 = vld [vmem:[%s3 + $0x14] sm:$0xf]
        %v751 = vld [vmem:[%s3 + $0x18] sm:$0xf]
        %v752 = vld [vmem:[%s3 + $0x1c] sm:$0xf]
        %v753 = vld [vmem:[%s4] sm:$0xf]
        %v754 = vld [vmem:[%s4 + $0x4] sm:$0x1]
        %v787 = vunpack.c.l.b16 %v681
        %v788 = vunpack.c.l.b16 %v682
        %v789 = vunpack.c.l.b16 %v683
        %v790 = vunpack.c.l.b16 %v684
        %v791 = vunpack.c.l.b16 %v685
        %v792 = vunpack.c.l.b16 %v686
        %v793 = vunpack.c.l.b16 %v687
        %v794 = vunpack.c.l.b16 %v688
        %v795 = vunpack.c.l.b16 %v689
        %v796 = vunpack.c.l.b16 %v690
        %v797 = vunpack.c.l.b16 %v691
        %v798 = vunpack.c.l.b16 %v692
        %v799 = vunpack.c.l.b16 %v693
        %v800 = vunpack.c.l.b16 %v694
        %v801 = vunpack.c.l.b16 %v695
        %v802 = vunpack.c.l.b16 %v696
        %v803 = vunpack.c.l.b16 %v697
        %v804 = vunpack.c.l.b16 %v698
        %v805 = vunpack.c.l.b16 %v699
        %v806 = vunpack.c.l.b16 %v700
        %v807 = vunpack.c.l.b16 %v701
        %v808 = vunpack.c.l.b16 %v702
        %v809 = vunpack.c.l.b16 %v703
        %v810 = vunpack.c.l.b16 %v704
        %v811 = vunpack.c.l.b16 %v705
        %v812 = vunpack.c.l.b16 %v706
        %v813 = vunpack.c.l.b16 %v707
        %v814 = vunpack.c.l.b16 %v708
        %v815 = vunpack.c.l.b16 %v709
        %v816 = vunpack.c.l.b16 %v710
        %v817 = vunpack.c.l.b16 %v711
        %v818 = vunpack.c.l.b16 %v712
        %v819 = vpack.c.b16 %v788, %v787
        %v820 = vpack.c.b16 %v790, %v789
        %v821 = vpack.c.b16 %v792, %v791
        %v822 = vpack.c.b16 %v794, %v793
        %v823 = vpack.c.b16 %v796, %v795
        %v824 = vpack.c.b16 %v798, %v797
        %v825 = vpack.c.b16 %v800, %v799
        %v826 = vpack.c.b16 %v802, %v801
        %v827 = vpack.c.b16 %v804, %v803
        %v828 = vpack.c.b16 %v806, %v805
        %v829 = vpack.c.b16 %v808, %v807
        %v830 = vpack.c.b16 %v810, %v809
        %v831 = vpack.c.b16 %v812, %v811
        %v832 = vpack.c.b16 %v814, %v813
        %v833 = vpack.c.b16 %v816, %v815
        %v834 = vpack.c.b16 %v818, %v817
        %v837 = vunpack.c.l.b16 %v753
        %v838 = vunpack.c.l.b16 %v754
        %v839 = vpack.c.b16 %v838, %v837
        %vm840 = vcmask 80896
        %v842 = vsel %vm840, %v819, 0
        %v845 = vsel %vm840, %v820, 0
        %v848 = vsel %vm840, %v821, 0
        %v851 = vsel %vm840, %v822, 0
        %v854 = vsel %vm840, %v823, 0
        %v857 = vsel %vm840, %v824, 0
        %v860 = vsel %vm840, %v825, 0
        %v863 = vsel %vm840, %v826, 0
        %v866 = vsel %vm840, %v827, 0
        %v869 = vsel %vm840, %v828, 0
        %v872 = vsel %vm840, %v829, 0
        %v875 = vsel %vm840, %v830, 0
        %v878 = vsel %vm840, %v831, 0
        %v881 = vsel %vm840, %v832, 0
        %v884 = vsel %vm840, %v833, 0
        %v887 = vsel %vm840, %v834, 0
        %vm889 = vcmask 1044480
        %v891 = vsel %vm889, %v839, 0
        %893 = vmatprep.subr.bf16.mxu0 0
        %894 = vmatpush1.bf16.msra.mxu0 0
        %895 = vmatprep.subr.bf16.mxu0 0
        %896 = vmatpush1.bf16.msra.mxu0 0
        %897 = vmatprep.subr.bf16.mxu0 0
        %898 = vmatpush1.bf16.msra.mxu0 0
        %899 = vmatprep.subr.bf16.mxu0 0
        %900 = vmatpush1.bf16.msra.mxu0 0
        %901 = vmatprep.subr.bf16.mxu0 0
        %902 = vmatpush1.bf16.msra.mxu0 0
        %903 = vmatprep.subr.bf16.mxu0 0
        %904 = vmatpush1.bf16.msra.mxu0 0
        %905 = vmatprep.subr.bf16.mxu0 0
        %906 = vmatpush1.bf16.msra.mxu0 0
        %907 = vmatprep.subr.bf16.mxu0 0
        %908 = vmatpush1.bf16.msra.mxu0 %v891
        %909 = vmatprep.subr.bf16.mxu0 0
        %910 = vmatpush2.bf16.msra.mxu0 0
        %911 = vmatprep.subr.bf16.mxu0 0
        %912 = vmatpush2.bf16.msra.mxu0 0
        %913 = vmatprep.subr.bf16.mxu0 0
        %914 = vmatpush2.bf16.msra.mxu0 0
        %915 = vmatprep.subr.bf16.mxu0 0
        %916 = vmatpush2.bf16.msra.mxu0 0
        %917 = vmatprep.subr.bf16.mxu0 0
        %918 = vmatpush2.bf16.msra.mxu0 0
        %919 = vmatprep.subr.bf16.mxu0 0
        %920 = vmatpush2.bf16.msra.mxu0 0
        %921 = vmatprep.subr.bf16.mxu0 0
        %922 = vmatpush2.bf16.msra.mxu0 0
        %923 = vmatprep.subr.bf16.mxu0 0
        %924 = vmatpush2.bf16.msra.mxu0 0
        %925 = vmatprep.mubr.bf16.mxu0 0
        %926 = vmatmul.mubr.bf16.gmra.mxu0 %v842
        %v927 = vpop.f32.mrf.mxu0
        %v928 = vadd.f32 0.0, %v927
        %v929 = vpop.f32.mrf.mxu0
        %v930 = vpop.f32.mrf.mxu0
        %v931 = vadd.f32 0.0, %v930
        %v932 = vpop.f32.mrf.mxu0
        %933 = vmatprep.mubr.bf16.mxu0 0
        %934 = vmatmul.mubr.bf16.gmra.mxu0 %v845
        %v935 = vpop.f32.mrf.mxu0
        %v936 = vadd.f32 0.0, %v935
        %v937 = vpop.f32.mrf.mxu0
        %v938 = vpop.f32.mrf.mxu0
        %v939 = vadd.f32 0.0, %v938
        %v940 = vpop.f32.mrf.mxu0
        %941 = vmatprep.mubr.bf16.mxu0 0
        %942 = vmatmul.mubr.bf16.gmra.mxu0 %v848
        %v943 = vpop.f32.mrf.mxu0
        %v944 = vadd.f32 0.0, %v943
        %v945 = vpop.f32.mrf.mxu0
        %v946 = vpop.f32.mrf.mxu0
        %v947 = vadd.f32 0.0, %v946
        %v948 = vpop.f32.mrf.mxu0
        %949 = vmatprep.mubr.bf16.mxu0 0
        %950 = vmatmul.mubr.bf16.gmra.mxu0 %v851
        %v951 = vpop.f32.mrf.mxu0
        %v952 = vadd.f32 0.0, %v951
        %v953 = vpop.f32.mrf.mxu0
        %v954 = vpop.f32.mrf.mxu0
        %v955 = vadd.f32 0.0, %v954
        %v956 = vpop.f32.mrf.mxu0
        %957 = vmatprep.mubr.bf16.mxu0 0
        %958 = vmatmul.mubr.bf16.gmra.mxu0 %v854
        %v959 = vpop.f32.mrf.mxu0
        %v960 = vadd.f32 0.0, %v959
        %v961 = vpop.f32.mrf.mxu0
        %v962 = vpop.f32.mrf.mxu0
        %v963 = vadd.f32 0.0, %v962
        %v964 = vpop.f32.mrf.mxu0
        %965 = vmatprep.mubr.bf16.mxu0 0
        %966 = vmatmul.mubr.bf16.gmra.mxu0 %v857
        %v967 = vpop.f32.mrf.mxu0
        %v968 = vadd.f32 0.0, %v967
        %v969 = vpop.f32.mrf.mxu0
        %v970 = vpop.f32.mrf.mxu0
        %v971 = vadd.f32 0.0, %v970
        %v972 = vpop.f32.mrf.mxu0
        %973 = vmatprep.mubr.bf16.mxu0 0
        %974 = vmatmul.mubr.bf16.gmra.mxu0 %v860
        %v975 = vpop.f32.mrf.mxu0
        %v976 = vadd.f32 0.0, %v975
        %v977 = vpop.f32.mrf.mxu0
        %v978 = vpop.f32.mrf.mxu0
        %v979 = vadd.f32 0.0, %v978
        %v980 = vpop.f32.mrf.mxu0
        %981 = vmatprep.mubr.bf16.mxu0 0
        %982 = vmatmul.mubr.bf16.gmra.mxu0 %v863
        %v983 = vpop.f32.mrf.mxu0
        %v984 = vadd.f32 0.0, %v983
        %v985 = vpop.f32.mrf.mxu0
        %v986 = vpop.f32.mrf.mxu0
        %v987 = vadd.f32 0.0, %v986
        %v988 = vpop.f32.mrf.mxu0
        %989 = vmatprep.mubr.bf16.mxu0 0
        %990 = vmatmul.mubr.bf16.gmra.mxu0 %v866
        %v991 = vpop.f32.mrf.mxu0
        %v992 = vadd.f32 0.0, %v991
        %v993 = vpop.f32.mrf.mxu0
        %v994 = vpop.f32.mrf.mxu0
        %v995 = vadd.f32 0.0, %v994
        %v996 = vpop.f32.mrf.mxu0
        %997 = vmatprep.mubr.bf16.mxu0 0
        %998 = vmatmul.mubr.bf16.gmra.mxu0 %v869
        %v999 = vpop.f32.mrf.mxu0
        %v1000 = vadd.f32 0.0, %v999
        %v1001 = vpop.f32.mrf.mxu0
        %v1002 = vpop.f32.mrf.mxu0
        %v1003 = vadd.f32 0.0, %v1002
        %v1004 = vpop.f32.mrf.mxu0
        %1005 = vmatprep.mubr.bf16.mxu0 0
        %1006 = vmatmul.mubr.bf16.gmra.mxu0 %v872
        %v1007 = vpop.f32.mrf.mxu0
        %v1008 = vadd.f32 0.0, %v1007
        %v1009 = vpop.f32.mrf.mxu0
        %v1010 = vpop.f32.mrf.mxu0
        %v1011 = vadd.f32 0.0, %v1010
        %v1012 = vpop.f32.mrf.mxu0
        %1013 = vmatprep.mubr.bf16.mxu0 0
        %1014 = vmatmul.mubr.bf16.gmra.mxu0 %v875
        %v1015 = vpop.f32.mrf.mxu0
        %v1016 = vadd.f32 0.0, %v1015
        %v1017 = vpop.f32.mrf.mxu0
        %v1018 = vpop.f32.mrf.mxu0
        %v1019 = vadd.f32 0.0, %v1018
        %v1020 = vpop.f32.mrf.mxu0
        %1021 = vmatprep.mubr.bf16.mxu0 0
        %1022 = vmatmul.mubr.bf16.gmra.mxu0 %v878
        %v1023 = vpop.f32.mrf.mxu0
        %v1024 = vadd.f32 0.0, %v1023
        %v1025 = vpop.f32.mrf.mxu0
        %v1026 = vpop.f32.mrf.mxu0
        %v1027 = vadd.f32 0.0, %v1026
        %v1028 = vpop.f32.mrf.mxu0
        %1029 = vmatprep.mubr.bf16.mxu0 0
        %1030 = vmatmul.mubr.bf16.gmra.mxu0 %v881
        %v1031 = vpop.f32.mrf.mxu0
        %v1032 = vadd.f32 0.0, %v1031
        %v1033 = vpop.f32.mrf.mxu0
        %v1034 = vpop.f32.mrf.mxu0
        %v1035 = vadd.f32 0.0, %v1034
        %v1036 = vpop.f32.mrf.mxu0
        %1037 = vmatprep.mubr.bf16.mxu0 0
        %1038 = vmatmul.mubr.bf16.gmra.mxu0 %v884
        %v1039 = vpop.f32.mrf.mxu0
        %v1040 = vadd.f32 0.0, %v1039
        %v1041 = vpop.f32.mrf.mxu0
        %v1042 = vpop.f32.mrf.mxu0
        %v1043 = vadd.f32 0.0, %v1042
        %v1044 = vpop.f32.mrf.mxu0
        %1045 = vmatprep.mubr.bf16.mxu0 0
        %1046 = vmatmul.mubr.bf16.gmra.mxu0 %v887
        %v1047 = vpop.f32.mrf.mxu0
        %v1048 = vadd.f32 0.0, %v1047
        %v1049 = vpop.f32.mrf.mxu0
        %v1050 = vpop.f32.mrf.mxu0
        %v1051 = vadd.f32 0.0, %v1050
        %v1052 = vpop.f32.mrf.mxu0
        %1053 = vdwg.mxu0
        %v1086 = vunpack.c.l.b16 %v649
        %v1087 = vunpack.c.l.b16 %v650
        %v1088 = vunpack.c.l.b16 %v651
        %v1089 = vunpack.c.l.b16 %v652
        %v1090 = vunpack.c.l.b16 %v653
        %v1091 = vunpack.c.l.b16 %v654
        %v1092 = vunpack.c.l.b16 %v655
        %v1093 = vunpack.c.l.b16 %v656
        %v1094 = vunpack.c.l.b16 %v657
        %v1095 = vunpack.c.l.b16 %v658
        %v1096 = vunpack.c.l.b16 %v659
        %v1097 = vunpack.c.l.b16 %v660
        %v1098 = vunpack.c.l.b16 %v661
        %v1099 = vunpack.c.l.b16 %v662
        %v1100 = vunpack.c.l.b16 %v663
        %v1101 = vunpack.c.l.b16 %v664
        %v1102 = vunpack.c.l.b16 %v665
        %v1103 = vunpack.c.l.b16 %v666
        %v1104 = vunpack.c.l.b16 %v667
        %v1105 = vunpack.c.l.b16 %v668
        %v1106 = vunpack.c.l.b16 %v669
        %v1107 = vunpack.c.l.b16 %v670
        %v1108 = vunpack.c.l.b16 %v671
        %v1109 = vunpack.c.l.b16 %v672
        %v1110 = vunpack.c.l.b16 %v673
        %v1111 = vunpack.c.l.b16 %v674
        %v1112 = vunpack.c.l.b16 %v675
        %v1113 = vunpack.c.l.b16 %v676
        %v1114 = vunpack.c.l.b16 %v677
        %v1115 = vunpack.c.l.b16 %v678
        %v1116 = vunpack.c.l.b16 %v679
        %v1117 = vunpack.c.l.b16 %v680
        %v1118 = vpack.c.b16 %v1087, %v1086
        %v1119 = vpack.c.b16 %v1089, %v1088
        %v1120 = vpack.c.b16 %v1091, %v1090
        %v1121 = vpack.c.b16 %v1093, %v1092
        %v1122 = vpack.c.b16 %v1095, %v1094
        %v1123 = vpack.c.b16 %v1097, %v1096
        %v1124 = vpack.c.b16 %v1099, %v1098
        %v1125 = vpack.c.b16 %v1101, %v1100
        %v1126 = vpack.c.b16 %v1103, %v1102
        %v1127 = vpack.c.b16 %v1105, %v1104
        %v1128 = vpack.c.b16 %v1107, %v1106
        %v1129 = vpack.c.b16 %v1109, %v1108
        %v1130 = vpack.c.b16 %v1111, %v1110
        %v1131 = vpack.c.b16 %v1113, %v1112
        %v1132 = vpack.c.b16 %v1115, %v1114
        %v1133 = vpack.c.b16 %v1117, %v1116
        %v1142 = vunpack.c.l.b16 %v745
        %v1143 = vunpack.c.l.b16 %v746
        %v1144 = vunpack.c.l.b16 %v747
        %v1145 = vunpack.c.l.b16 %v748
        %v1146 = vunpack.c.l.b16 %v749
        %v1147 = vunpack.c.l.b16 %v750
        %v1148 = vunpack.c.l.b16 %v751
        %v1149 = vunpack.c.l.b16 %v752
        %v1150 = vpack.c.b16 %v1143, %v1142
        %v1151 = vpack.c.b16 %v1145, %v1144
        %v1152 = vpack.c.b16 %v1147, %v1146
        %v1153 = vpack.c.b16 %v1149, %v1148
        %vm1158 = vcmask 523264
        %v1160 = vsel %vm1158, %v1118, 0
        %v1163 = vsel %vm1158, %v1119, 0
        %v1166 = vsel %vm1158, %v1120, 0
        %v1169 = vsel %vm1158, %v1121, 0
        %v1172 = vsel %vm1158, %v1122, 0
        %v1175 = vsel %vm1158, %v1123, 0
        %v1178 = vsel %vm1158, %v1124, 0
        %v1181 = vsel %vm1158, %v1125, 0
        %v1184 = vsel %vm1158, %v1126, 0
        %v1187 = vsel %vm1158, %v1127, 0
        %v1190 = vsel %vm1158, %v1128, 0
        %v1193 = vsel %vm1158, %v1129, 0
        %v1196 = vsel %vm1158, %v1130, 0
        %v1199 = vsel %vm1158, %v1131, 0
        %v1202 = vsel %vm1158, %v1132, 0
        %v1205 = vsel %vm1158, %v1133, 0
        %1207 = vmatprep.subr.bf16.mxu0 0
        %1208 = vmatpush1.bf16.msra.mxu0 0
        %1209 = vmatprep.subr.bf16.mxu0 0
        %1210 = vmatpush1.bf16.msra.mxu0 0
        %1211 = vmatprep.subr.bf16.mxu0 0
        %1212 = vmatpush1.bf16.msra.mxu0 0
        %1213 = vmatprep.subr.bf16.mxu0 0
        %1214 = vmatpush1.bf16.msra.mxu0 0
        %1215 = vmatprep.subr.bf16.mxu0 0
        %1216 = vmatpush1.bf16.msra.mxu0 %v1153
        %1217 = vmatprep.subr.bf16.mxu0 0
        %1218 = vmatpush1.bf16.msra.mxu0 %v1152
        %1219 = vmatprep.subr.bf16.mxu0 0
        %1220 = vmatpush1.bf16.msra.mxu0 %v1151
        %1221 = vmatprep.subr.bf16.mxu0 0
        %1222 = vmatpush1.bf16.msra.mxu0 %v1150
        %1223 = vmatprep.subr.bf16.mxu0 0
        %1224 = vmatpush2.bf16.msra.mxu0 0
        %1225 = vmatprep.subr.bf16.mxu0 0
        %1226 = vmatpush2.bf16.msra.mxu0 0
        %1227 = vmatprep.subr.bf16.mxu0 0
        %1228 = vmatpush2.bf16.msra.mxu0 0
        %1229 = vmatprep.subr.bf16.mxu0 0
        %1230 = vmatpush2.bf16.msra.mxu0 0
        %1231 = vmatprep.subr.bf16.mxu0 0
        %1232 = vmatpush2.bf16.msra.mxu0 0
        %1233 = vmatprep.subr.bf16.mxu0 0
        %1234 = vmatpush2.bf16.msra.mxu0 0
        %1235 = vmatprep.subr.bf16.mxu0 0
        %1236 = vmatpush2.bf16.msra.mxu0 0
        %1237 = vmatprep.subr.bf16.mxu0 0
        %1238 = vmatpush2.bf16.msra.mxu0 0
        %1239 = vmatprep.mubr.bf16.mxu0 0
        %1240 = vmatmul.mubr.bf16.gmra.mxu0 %v1160
        %v1241 = vpop.f32.mrf.mxu0
        %v1242 = vadd.f32 %v928, %v1241
        %v1243 = vpop.f32.mrf.mxu0
        %v1244 = vpop.f32.mrf.mxu0
        %v1245 = vadd.f32 %v931, %v1244
        %v1246 = vpop.f32.mrf.mxu0
        %1247 = vmatprep.mubr.bf16.mxu0 0
        %1248 = vmatmul.mubr.bf16.gmra.mxu0 %v1163
        %v1249 = vpop.f32.mrf.mxu0
        %v1250 = vadd.f32 %v936, %v1249
        %v1251 = vpop.f32.mrf.mxu0
        %v1252 = vpop.f32.mrf.mxu0
        %v1253 = vadd.f32 %v939, %v1252
        %v1254 = vpop.f32.mrf.mxu0
        %1255 = vmatprep.mubr.bf16.mxu0 0
        %1256 = vmatmul.mubr.bf16.gmra.mxu0 %v1166
        %v1257 = vpop.f32.mrf.mxu0
        %v1258 = vadd.f32 %v944, %v1257
        %v1259 = vpop.f32.mrf.mxu0
        %v1260 = vpop.f32.mrf.mxu0
        %v1261 = vadd.f32 %v947, %v1260
        %v1262 = vpop.f32.mrf.mxu0
        %1263 = vmatprep.mubr.bf16.mxu0 0
        %1264 = vmatmul.mubr.bf16.gmra.mxu0 %v1169
        %v1265 = vpop.f32.mrf.mxu0
        %v1266 = vadd.f32 %v952, %v1265
        %v1267 = vpop.f32.mrf.mxu0
        %v1268 = vpop.f32.mrf.mxu0
        %v1269 = vadd.f32 %v955, %v1268
        %v1270 = vpop.f32.mrf.mxu0
        %1271 = vmatprep.mubr.bf16.mxu0 0
        %1272 = vmatmul.mubr.bf16.gmra.mxu0 %v1172
        %v1273 = vpop.f32.mrf.mxu0
        %v1274 = vadd.f32 %v960, %v1273
        %v1275 = vpop.f32.mrf.mxu0
        %v1276 = vpop.f32.mrf.mxu0
        %v1277 = vadd.f32 %v963, %v1276
        %v1278 = vpop.f32.mrf.mxu0
        %1279 = vmatprep.mubr.bf16.mxu0 0
        %1280 = vmatmul.mubr.bf16.gmra.mxu0 %v1175
        %v1281 = vpop.f32.mrf.mxu0
        %v1282 = vadd.f32 %v968, %v1281
        %v1283 = vpop.f32.mrf.mxu0
        %v1284 = vpop.f32.mrf.mxu0
        %v1285 = vadd.f32 %v971, %v1284
        %v1286 = vpop.f32.mrf.mxu0
        %1287 = vmatprep.mubr.bf16.mxu0 0
        %1288 = vmatmul.mubr.bf16.gmra.mxu0 %v1178
        %v1289 = vpop.f32.mrf.mxu0
        %v1290 = vadd.f32 %v976, %v1289
        %v1291 = vpop.f32.mrf.mxu0
        %v1292 = vpop.f32.mrf.mxu0
        %v1293 = vadd.f32 %v979, %v1292
        %v1294 = vpop.f32.mrf.mxu0
        %1295 = vmatprep.mubr.bf16.mxu0 0
        %1296 = vmatmul.mubr.bf16.gmra.mxu0 %v1181
        %v1297 = vpop.f32.mrf.mxu0
        %v1298 = vadd.f32 %v984, %v1297
        %v1299 = vpop.f32.mrf.mxu0
        %v1300 = vpop.f32.mrf.mxu0
        %v1301 = vadd.f32 %v987, %v1300
        %v1302 = vpop.f32.mrf.mxu0
        %1303 = vmatprep.mubr.bf16.mxu0 0
        %1304 = vmatmul.mubr.bf16.gmra.mxu0 %v1184
        %v1305 = vpop.f32.mrf.mxu0
        %v1306 = vadd.f32 %v992, %v1305
        %v1307 = vpop.f32.mrf.mxu0
        %v1308 = vpop.f32.mrf.mxu0
        %v1309 = vadd.f32 %v995, %v1308
        %v1310 = vpop.f32.mrf.mxu0
        %1311 = vmatprep.mubr.bf16.mxu0 0
        %1312 = vmatmul.mubr.bf16.gmra.mxu0 %v1187
        %v1313 = vpop.f32.mrf.mxu0
        %v1314 = vadd.f32 %v1000, %v1313
        %v1315 = vpop.f32.mrf.mxu0
        %v1316 = vpop.f32.mrf.mxu0
        %v1317 = vadd.f32 %v1003, %v1316
        %v1318 = vpop.f32.mrf.mxu0
        %1319 = vmatprep.mubr.bf16.mxu0 0
        %1320 = vmatmul.mubr.bf16.gmra.mxu0 %v1190
        %v1321 = vpop.f32.mrf.mxu0
        %v1322 = vadd.f32 %v1008, %v1321
        %v1323 = vpop.f32.mrf.mxu0
        %v1324 = vpop.f32.mrf.mxu0
        %v1325 = vadd.f32 %v1011, %v1324
        %v1326 = vpop.f32.mrf.mxu0
        %1327 = vmatprep.mubr.bf16.mxu0 0
        %1328 = vmatmul.mubr.bf16.gmra.mxu0 %v1193
        %v1329 = vpop.f32.mrf.mxu0
        %v1330 = vadd.f32 %v1016, %v1329
        %v1331 = vpop.f32.mrf.mxu0
        %v1332 = vpop.f32.mrf.mxu0
        %v1333 = vadd.f32 %v1019, %v1332
        %v1334 = vpop.f32.mrf.mxu0
        %1335 = vmatprep.mubr.bf16.mxu0 0
        %1336 = vmatmul.mubr.bf16.gmra.mxu0 %v1196
        %v1337 = vpop.f32.mrf.mxu0
        %v1338 = vadd.f32 %v1024, %v1337
        %v1339 = vpop.f32.mrf.mxu0
        %v1340 = vpop.f32.mrf.mxu0
        %v1341 = vadd.f32 %v1027, %v1340
        %v1342 = vpop.f32.mrf.mxu0
        %1343 = vmatprep.mubr.bf16.mxu0 0
        %1344 = vmatmul.mubr.bf16.gmra.mxu0 %v1199
        %v1345 = vpop.f32.mrf.mxu0
        %v1346 = vadd.f32 %v1032, %v1345
        %v1347 = vpop.f32.mrf.mxu0
        %v1348 = vpop.f32.mrf.mxu0
        %v1349 = vadd.f32 %v1035, %v1348
        %v1350 = vpop.f32.mrf.mxu0
        %1351 = vmatprep.mubr.bf16.mxu0 0
        %1352 = vmatmul.mubr.bf16.gmra.mxu0 %v1202
        %v1353 = vpop.f32.mrf.mxu0
        %v1354 = vadd.f32 %v1040, %v1353
        %v1355 = vpop.f32.mrf.mxu0
        %v1356 = vpop.f32.mrf.mxu0
        %v1357 = vadd.f32 %v1043, %v1356
        %v1358 = vpop.f32.mrf.mxu0
        %1359 = vmatprep.mubr.bf16.mxu0 0
        %1360 = vmatmul.mubr.bf16.gmra.mxu0 %v1205
        %v1361 = vpop.f32.mrf.mxu0
        %v1362 = vadd.f32 %v1048, %v1361
        %v1363 = vpop.f32.mrf.mxu0
        %v1364 = vpop.f32.mrf.mxu0
        %v1365 = vadd.f32 %v1051, %v1364
        %v1366 = vpop.f32.mrf.mxu0
        %1367 = vdwg.mxu0
        %v1368 = vld [vmem:[%s5] sm:$0x1]
        %v1370 = vlaneseq
        %v1371 = vshrl.u32 %v1370, 7
        %v1372 = vsub.s32 0, %v1371
        %v1373 = vrot.slane %v1368, %v1372
        %v1375 = vadd.f32 %v1242, %v1373
        %v1376 = vadd.f32 %v1245, %v1373
        %v1377 = vadd.f32 %v1250, %v1373
        %v1378 = vadd.f32 %v1253, %v1373
        %v1379 = vadd.f32 %v1258, %v1373
        %v1380 = vadd.f32 %v1261, %v1373
        %v1381 = vadd.f32 %v1266, %v1373
        %v1382 = vadd.f32 %v1269, %v1373
        %v1383 = vadd.f32 %v1274, %v1373
        %v1384 = vadd.f32 %v1277, %v1373
        %v1385 = vadd.f32 %v1282, %v1373
        %v1386 = vadd.f32 %v1285, %v1373
        %v1387 = vadd.f32 %v1290, %v1373
        %v1388 = vadd.f32 %v1293, %v1373
        %v1389 = vadd.f32 %v1298, %v1373
        %v1390 = vadd.f32 %v1301, %v1373
        %v1391 = vadd.f32 %v1306, %v1373
        %v1392 = vadd.f32 %v1309, %v1373
        %v1393 = vadd.f32 %v1314, %v1373
        %v1394 = vadd.f32 %v1317, %v1373
        %v1395 = vadd.f32 %v1322, %v1373
        %v1396 = vadd.f32 %v1325, %v1373
        %v1397 = vadd.f32 %v1330, %v1373
        %v1398 = vadd.f32 %v1333, %v1373
        %v1399 = vadd.f32 %v1338, %v1373
        %v1400 = vadd.f32 %v1341, %v1373
        %v1401 = vadd.f32 %v1346, %v1373
        %v1402 = vadd.f32 %v1349, %v1373
        %v1403 = vadd.f32 %v1354, %v1373
        %v1404 = vadd.f32 %v1357, %v1373
        %v1405 = vadd.f32 %v1362, %v1373
        %v1406 = vadd.f32 %v1365, %v1373
        %v1407 = vmax.f32 %v1375, 0.0
        %v1408 = vmax.f32 %v1376, 0.0
        %v1409 = vmax.f32 %v1377, 0.0
        %v1410 = vmax.f32 %v1378, 0.0
        %v1411 = vmax.f32 %v1379, 0.0
        %v1412 = vmax.f32 %v1380, 0.0
        %v1413 = vmax.f32 %v1381, 0.0
        %v1414 = vmax.f32 %v1382, 0.0
        %v1415 = vmax.f32 %v1383, 0.0
        %v1416 = vmax.f32 %v1384, 0.0
        %v1417 = vmax.f32 %v1385, 0.0
        %v1418 = vmax.f32 %v1386, 0.0
        %v1419 = vmax.f32 %v1387, 0.0
        %v1420 = vmax.f32 %v1388, 0.0
        %v1421 = vmax.f32 %v1389, 0.0
        %v1422 = vmax.f32 %v1390, 0.0
        %v1423 = vmax.f32 %v1391, 0.0
        %v1424 = vmax.f32 %v1392, 0.0
        %v1425 = vmax.f32 %v1393, 0.0
        %v1426 = vmax.f32 %v1394, 0.0
        %v1427 = vmax.f32 %v1395, 0.0
        %v1428 = vmax.f32 %v1396, 0.0
        %v1429 = vmax.f32 %v1397, 0.0
        %v1430 = vmax.f32 %v1398, 0.0
        %v1431 = vmax.f32 %v1399, 0.0
        %v1432 = vmax.f32 %v1400, 0.0
        %v1433 = vmax.f32 %v1401, 0.0
        %v1434 = vmax.f32 %v1402, 0.0
        %v1435 = vmax.f32 %v1403, 0.0
        %v1436 = vmax.f32 %v1404, 0.0
        %v1437 = vmax.f32 %v1405, 0.0
        %v1438 = vmax.f32 %v1406, 0.0
        %v1439 = vpack.c.bf16 %v1408, %v1407
        %v1440 = vpack.c.bf16 %v1410, %v1409
        %v1441 = vpack.c.bf16 %v1412, %v1411
        %v1442 = vpack.c.bf16 %v1414, %v1413
        %v1443 = vpack.c.bf16 %v1416, %v1415
        %v1444 = vpack.c.bf16 %v1418, %v1417
        %v1445 = vpack.c.bf16 %v1420, %v1419
        %v1446 = vpack.c.bf16 %v1422, %v1421
        %v1447 = vpack.c.bf16 %v1424, %v1423
        %v1448 = vpack.c.bf16 %v1426, %v1425
        %v1449 = vpack.c.bf16 %v1428, %v1427
        %v1450 = vpack.c.bf16 %v1430, %v1429
        %v1451 = vpack.c.bf16 %v1432, %v1431
        %v1452 = vpack.c.bf16 %v1434, %v1433
        %v1453 = vpack.c.bf16 %v1436, %v1435
        %v1454 = vpack.c.bf16 %v1438, %v1437
        %v1455 = vld [vmem:[%s6] sm:$0xf]
        %v1456 = vld [vmem:[%s6 + $0x4] sm:$0xf]
        %v1457 = vld [vmem:[%s6 + $0x8] sm:$0xf]
        %v1458 = vld [vmem:[%s6 + $0xc] sm:$0xf]
        %v1459 = vld [vmem:[%s6 + $0x10] sm:$0xf]
        %v1460 = vld [vmem:[%s6 + $0x14] sm:$0xf]
        %v1461 = vld [vmem:[%s6 + $0x18] sm:$0xf]
        %v1462 = vld [vmem:[%s6 + $0x1c] sm:$0xf]
        %v1463 = vld [vmem:[%s6 + $0x20] sm:$0xf]
        %v1464 = vld [vmem:[%s6 + $0x24] sm:$0xf]
        %v1465 = vld [vmem:[%s6 + $0x28] sm:$0xf]
        %v1466 = vld [vmem:[%s6 + $0x2c] sm:$0xf]
        %v1467 = vld [vmem:[%s6 + $0x30] sm:$0xf]
        %v1468 = vld [vmem:[%s6 + $0x34] sm:$0xf]
        %v1469 = vld [vmem:[%s6 + $0x38] sm:$0xf]
        %v1470 = vld [vmem:[%s6 + $0x3c] sm:$0xf]
        %v1471 = vld [vmem:[%s7] sm:$0x1]
        %v1473 = vlaneseq
        %v1474 = vshrl.u32 %v1473, 7
        %v1475 = vsub.s32 0, %v1474
        %v1476 = vrot.slane %v1471, %v1475
        %v1494 = vunpack.c.l.b16 %v1455
        %v1495 = vunpack.c.l.b16 %v1456
        %v1496 = vunpack.c.l.b16 %v1457
        %v1497 = vunpack.c.l.b16 %v1458
        %v1498 = vunpack.c.l.b16 %v1459
        %v1499 = vunpack.c.l.b16 %v1460
        %v1500 = vunpack.c.l.b16 %v1461
        %v1501 = vunpack.c.l.b16 %v1462
        %v1502 = vunpack.c.l.b16 %v1463
        %v1503 = vunpack.c.l.b16 %v1464
        %v1504 = vunpack.c.l.b16 %v1465
        %v1505 = vunpack.c.l.b16 %v1466
        %v1506 = vunpack.c.l.b16 %v1467
        %v1507 = vunpack.c.l.b16 %v1468
        %v1508 = vunpack.c.l.b16 %v1469
        %v1509 = vunpack.c.l.b16 %v1470
        %v1510 = vpack.c.b16 %v1495, %v1494
        %v1511 = vpack.c.b16 %v1497, %v1496
        %v1512 = vpack.c.b16 %v1499, %v1498
        %v1513 = vpack.c.b16 %v1501, %v1500
        %v1514 = vpack.c.b16 %v1503, %v1502
        %v1515 = vpack.c.b16 %v1505, %v1504
        %v1516 = vpack.c.b16 %v1507, %v1506
        %v1517 = vpack.c.b16 %v1509, %v1508
        %1526 = vmatprep.subr.bf16.mxu0 0
        %1527 = vmatpush1.bf16.msra.mxu0 %v1517
        %1528 = vmatprep.subr.bf16.mxu0 0
        %1529 = vmatpush1.bf16.msra.mxu0 %v1516
        %1530 = vmatprep.subr.bf16.mxu0 0
        %1531 = vmatpush1.bf16.msra.mxu0 %v1515
        %1532 = vmatprep.subr.bf16.mxu0 0
        %1533 = vmatpush1.bf16.msra.mxu0 %v1514
        %1534 = vmatprep.subr.bf16.mxu0 0
        %1535 = vmatpush1.bf16.msra.mxu0 %v1513
        %1536 = vmatprep.subr.bf16.mxu0 0
        %1537 = vmatpush1.bf16.msra.mxu0 %v1512
        %1538 = vmatprep.subr.bf16.mxu0 0
        %1539 = vmatpush1.bf16.msra.mxu0 %v1511
        %1540 = vmatprep.subr.bf16.mxu0 0
        %1541 = vmatpush1.bf16.msra.mxu0 %v1510
        %1542 = vmatprep.subr.bf16.mxu0 0
        %1543 = vmatpush2.bf16.msra.mxu0 0
        %1544 = vmatprep.subr.bf16.mxu0 0
        %1545 = vmatpush2.bf16.msra.mxu0 0
        %1546 = vmatprep.subr.bf16.mxu0 0
        %1547 = vmatpush2.bf16.msra.mxu0 0
        %1548 = vmatprep.subr.bf16.mxu0 0
        %1549 = vmatpush2.bf16.msra.mxu0 0
        %1550 = vmatprep.subr.bf16.mxu0 0
        %1551 = vmatpush2.bf16.msra.mxu0 0
        %1552 = vmatprep.subr.bf16.mxu0 0
        %1553 = vmatpush2.bf16.msra.mxu0 0
        %1554 = vmatprep.subr.bf16.mxu0 0
        %1555 = vmatpush2.bf16.msra.mxu0 0
        %1556 = vmatprep.subr.bf16.mxu0 0
        %1557 = vmatpush2.bf16.msra.mxu0 0
        %1558 = vmatprep.mubr.bf16.mxu0 0
        %1559 = vmatmul.mubr.bf16.gmra.mxu0 %v1439
        %v1560 = vpop.f32.mrf.mxu0
        %v1561 = vadd.f32 %v1476, %v1560
        %v1562 = vpop.f32.mrf.mxu0
        %v1563 = vpop.f32.mrf.mxu0
        %v1564 = vadd.f32 %v1476, %v1563
        %v1565 = vpop.f32.mrf.mxu0
        %1566 = vmatprep.mubr.bf16.mxu0 0
        %1567 = vmatmul.mubr.bf16.gmra.mxu0 %v1440
        %v1568 = vpop.f32.mrf.mxu0
        %v1569 = vadd.f32 %v1476, %v1568
        %v1570 = vpop.f32.mrf.mxu0
        %v1571 = vpop.f32.mrf.mxu0
        %v1572 = vadd.f32 %v1476, %v1571
        %v1573 = vpop.f32.mrf.mxu0
        %1574 = vmatprep.mubr.bf16.mxu0 0
        %1575 = vmatmul.mubr.bf16.gmra.mxu0 %v1441
        %v1576 = vpop.f32.mrf.mxu0
        %v1577 = vadd.f32 %v1476, %v1576
        %v1578 = vpop.f32.mrf.mxu0
        %v1579 = vpop.f32.mrf.mxu0
        %v1580 = vadd.f32 %v1476, %v1579
        %v1581 = vpop.f32.mrf.mxu0
        %1582 = vmatprep.mubr.bf16.mxu0 0
        %1583 = vmatmul.mubr.bf16.gmra.mxu0 %v1442
        %v1584 = vpop.f32.mrf.mxu0
        %v1585 = vadd.f32 %v1476, %v1584
        %v1586 = vpop.f32.mrf.mxu0
        %v1587 = vpop.f32.mrf.mxu0
        %v1588 = vadd.f32 %v1476, %v1587
        %v1589 = vpop.f32.mrf.mxu0
        %1590 = vmatprep.mubr.bf16.mxu0 0
        %1591 = vmatmul.mubr.bf16.gmra.mxu0 %v1443
        %v1592 = vpop.f32.mrf.mxu0
        %v1593 = vadd.f32 %v1476, %v1592
        %v1594 = vpop.f32.mrf.mxu0
        %v1595 = vpop.f32.mrf.mxu0
        %v1596 = vadd.f32 %v1476, %v1595
        %v1597 = vpop.f32.mrf.mxu0
        %1598 = vmatprep.mubr.bf16.mxu0 0
        %1599 = vmatmul.mubr.bf16.gmra.mxu0 %v1444
        %v1600 = vpop.f32.mrf.mxu0
        %v1601 = vadd.f32 %v1476, %v1600
        %v1602 = vpop.f32.mrf.mxu0
        %v1603 = vpop.f32.mrf.mxu0
        %v1604 = vadd.f32 %v1476, %v1603
        %v1605 = vpop.f32.mrf.mxu0
        %1606 = vmatprep.mubr.bf16.mxu0 0
        %1607 = vmatmul.mubr.bf16.gmra.mxu0 %v1445
        %v1608 = vpop.f32.mrf.mxu0
        %v1609 = vadd.f32 %v1476, %v1608
        %v1610 = vpop.f32.mrf.mxu0
        %v1611 = vpop.f32.mrf.mxu0
        %v1612 = vadd.f32 %v1476, %v1611
        %v1613 = vpop.f32.mrf.mxu0
        %1614 = vmatprep.mubr.bf16.mxu0 0
        %1615 = vmatmul.mubr.bf16.gmra.mxu0 %v1446
        %v1616 = vpop.f32.mrf.mxu0
        %v1617 = vadd.f32 %v1476, %v1616
        %v1618 = vpop.f32.mrf.mxu0
        %v1619 = vpop.f32.mrf.mxu0
        %v1620 = vadd.f32 %v1476, %v1619
        %v1621 = vpop.f32.mrf.mxu0
        %1622 = vmatprep.mubr.bf16.mxu0 0
        %1623 = vmatmul.mubr.bf16.gmra.mxu0 %v1447
        %v1624 = vpop.f32.mrf.mxu0
        %v1625 = vadd.f32 %v1476, %v1624
        %v1626 = vpop.f32.mrf.mxu0
        %v1627 = vpop.f32.mrf.mxu0
        %v1628 = vadd.f32 %v1476, %v1627
        %v1629 = vpop.f32.mrf.mxu0
        %1630 = vmatprep.mubr.bf16.mxu0 0
        %1631 = vmatmul.mubr.bf16.gmra.mxu0 %v1448
        %v1632 = vpop.f32.mrf.mxu0
        %v1633 = vadd.f32 %v1476, %v1632
        %v1634 = vpop.f32.mrf.mxu0
        %v1635 = vpop.f32.mrf.mxu0
        %v1636 = vadd.f32 %v1476, %v1635
        %v1637 = vpop.f32.mrf.mxu0
        %1638 = vmatprep.mubr.bf16.mxu0 0
        %1639 = vmatmul.mubr.bf16.gmra.mxu0 %v1449
        %v1640 = vpop.f32.mrf.mxu0
        %v1641 = vadd.f32 %v1476, %v1640
        %v1642 = vpop.f32.mrf.mxu0
        %v1643 = vpop.f32.mrf.mxu0
        %v1644 = vadd.f32 %v1476, %v1643
        %v1645 = vpop.f32.mrf.mxu0
        %1646 = vmatprep.mubr.bf16.mxu0 0
        %1647 = vmatmul.mubr.bf16.gmra.mxu0 %v1450
        %v1648 = vpop.f32.mrf.mxu0
        %v1649 = vadd.f32 %v1476, %v1648
        %v1650 = vpop.f32.mrf.mxu0
        %v1651 = vpop.f32.mrf.mxu0
        %v1652 = vadd.f32 %v1476, %v1651
        %v1653 = vpop.f32.mrf.mxu0
        %1654 = vmatprep.mubr.bf16.mxu0 0
        %1655 = vmatmul.mubr.bf16.gmra.mxu0 %v1451
        %v1656 = vpop.f32.mrf.mxu0
        %v1657 = vadd.f32 %v1476, %v1656
        %v1658 = vpop.f32.mrf.mxu0
        %v1659 = vpop.f32.mrf.mxu0
        %v1660 = vadd.f32 %v1476, %v1659
        %v1661 = vpop.f32.mrf.mxu0
        %1662 = vmatprep.mubr.bf16.mxu0 0
        %1663 = vmatmul.mubr.bf16.gmra.mxu0 %v1452
        %v1664 = vpop.f32.mrf.mxu0
        %v1665 = vadd.f32 %v1476, %v1664
        %v1666 = vpop.f32.mrf.mxu0
        %v1667 = vpop.f32.mrf.mxu0
        %v1668 = vadd.f32 %v1476, %v1667
        %v1669 = vpop.f32.mrf.mxu0
        %1670 = vmatprep.mubr.bf16.mxu0 0
        %1671 = vmatmul.mubr.bf16.gmra.mxu0 %v1453
        %v1672 = vpop.f32.mrf.mxu0
        %v1673 = vadd.f32 %v1476, %v1672
        %v1674 = vpop.f32.mrf.mxu0
        %v1675 = vpop.f32.mrf.mxu0
        %v1676 = vadd.f32 %v1476, %v1675
        %v1677 = vpop.f32.mrf.mxu0
        %1678 = vmatprep.mubr.bf16.mxu0 0
        %1679 = vmatmul.mubr.bf16.gmra.mxu0 %v1454
        %v1680 = vpop.f32.mrf.mxu0
        %v1681 = vadd.f32 %v1476, %v1680
        %v1682 = vpop.f32.mrf.mxu0
        %v1683 = vpop.f32.mrf.mxu0
        %v1684 = vadd.f32 %v1476, %v1683
        %v1685 = vpop.f32.mrf.mxu0
        %1686 = vdwg.mxu0
        %v1687 = vmax.f32 %v1561, 0.0
        %v1688 = vmax.f32 %v1564, 0.0
        %v1689 = vmax.f32 %v1569, 0.0
        %v1690 = vmax.f32 %v1572, 0.0
        %v1691 = vmax.f32 %v1577, 0.0
        %v1692 = vmax.f32 %v1580, 0.0
        %v1693 = vmax.f32 %v1585, 0.0
        %v1694 = vmax.f32 %v1588, 0.0
        %v1695 = vmax.f32 %v1593, 0.0
        %v1696 = vmax.f32 %v1596, 0.0
        %v1697 = vmax.f32 %v1601, 0.0
        %v1698 = vmax.f32 %v1604, 0.0
        %v1699 = vmax.f32 %v1609, 0.0
        %v1700 = vmax.f32 %v1612, 0.0
        %v1701 = vmax.f32 %v1617, 0.0
        %v1702 = vmax.f32 %v1620, 0.0
        %v1703 = vmax.f32 %v1625, 0.0
        %v1704 = vmax.f32 %v1628, 0.0
        %v1705 = vmax.f32 %v1633, 0.0
        %v1706 = vmax.f32 %v1636, 0.0
        %v1707 = vmax.f32 %v1641, 0.0
        %v1708 = vmax.f32 %v1644, 0.0
        %v1709 = vmax.f32 %v1649, 0.0
        %v1710 = vmax.f32 %v1652, 0.0
        %v1711 = vmax.f32 %v1657, 0.0
        %v1712 = vmax.f32 %v1660, 0.0
        %v1713 = vmax.f32 %v1665, 0.0
        %v1714 = vmax.f32 %v1668, 0.0
        %v1715 = vmax.f32 %v1673, 0.0
        %v1716 = vmax.f32 %v1676, 0.0
        %v1717 = vmax.f32 %v1681, 0.0
        %v1718 = vmax.f32 %v1684, 0.0
        %v1719 = vpack.c.bf16 %v1688, %v1687
        %v1720 = vpack.c.bf16 %v1690, %v1689
        %v1721 = vpack.c.bf16 %v1692, %v1691
        %v1722 = vpack.c.bf16 %v1694, %v1693
        %v1723 = vpack.c.bf16 %v1696, %v1695
        %v1724 = vpack.c.bf16 %v1698, %v1697
        %v1725 = vpack.c.bf16 %v1700, %v1699
        %v1726 = vpack.c.bf16 %v1702, %v1701
        %v1727 = vpack.c.bf16 %v1704, %v1703
        %v1728 = vpack.c.bf16 %v1706, %v1705
        %v1729 = vpack.c.bf16 %v1708, %v1707
        %v1730 = vpack.c.bf16 %v1710, %v1709
        %v1731 = vpack.c.bf16 %v1712, %v1711
        %v1732 = vpack.c.bf16 %v1714, %v1713
        %v1733 = vpack.c.bf16 %v1716, %v1715
        %v1734 = vpack.c.bf16 %v1718, %v1717
        %v1735 = vld [vmem:[%s8] sm:$0xf]
        %v1736 = vld [vmem:[%s8 + $0x4] sm:$0xf]
        %v1737 = vld [vmem:[%s8 + $0x8] sm:$0xf]
        %v1738 = vld [vmem:[%s8 + $0xc] sm:$0xf]
        %v1739 = vld [vmem:[%s8 + $0x10] sm:$0xf]
        %v1740 = vld [vmem:[%s8 + $0x14] sm:$0xf]
        %v1741 = vld [vmem:[%s8 + $0x18] sm:$0xf]
        %v1742 = vld [vmem:[%s8 + $0x1c] sm:$0xf]
        %v1743 = vld [vmem:[%s8 + $0x20] sm:$0xf]
        %v1744 = vld [vmem:[%s8 + $0x24] sm:$0xf]
        %v1745 = vld [vmem:[%s8 + $0x28] sm:$0xf]
        %v1746 = vld [vmem:[%s8 + $0x2c] sm:$0xf]
        %v1747 = vld [vmem:[%s8 + $0x30] sm:$0xf]
        %v1748 = vld [vmem:[%s8 + $0x34] sm:$0xf]
        %v1749 = vld [vmem:[%s8 + $0x38] sm:$0xf]
        %v1750 = vld [vmem:[%s8 + $0x3c] sm:$0xf]
        %v1751 = vld [vmem:[%s9] sm:$0x1]
        %v1753 = vlaneseq
        %v1754 = vshrl.u32 %v1753, 7
        %v1755 = vsub.s32 0, %v1754
        %v1756 = vrot.slane %v1751, %v1755
        %v1774 = vunpack.c.l.b16 %v1735
        %v1775 = vunpack.c.l.b16 %v1736
        %v1776 = vunpack.c.l.b16 %v1737
        %v1777 = vunpack.c.l.b16 %v1738
        %v1778 = vunpack.c.l.b16 %v1739
        %v1779 = vunpack.c.l.b16 %v1740
        %v1780 = vunpack.c.l.b16 %v1741
        %v1781 = vunpack.c.l.b16 %v1742
        %v1782 = vunpack.c.l.b16 %v1743
        %v1783 = vunpack.c.l.b16 %v1744
        %v1784 = vunpack.c.l.b16 %v1745
        %v1785 = vunpack.c.l.b16 %v1746
        %v1786 = vunpack.c.l.b16 %v1747
        %v1787 = vunpack.c.l.b16 %v1748
        %v1788 = vunpack.c.l.b16 %v1749
        %v1789 = vunpack.c.l.b16 %v1750
        %v1790 = vpack.c.b16 %v1775, %v1774
        %v1791 = vpack.c.b16 %v1777, %v1776
        %v1792 = vpack.c.b16 %v1779, %v1778
        %v1793 = vpack.c.b16 %v1781, %v1780
        %v1794 = vpack.c.b16 %v1783, %v1782
        %v1795 = vpack.c.b16 %v1785, %v1784
        %v1796 = vpack.c.b16 %v1787, %v1786
        %v1797 = vpack.c.b16 %v1789, %v1788
        %1806 = vmatprep.subr.bf16.mxu0 0
        %1807 = vmatpush1.bf16.msra.mxu0 %v1797
        %1808 = vmatprep.subr.bf16.mxu0 0
        %1809 = vmatpush1.bf16.msra.mxu0 %v1796
        %1810 = vmatprep.subr.bf16.mxu0 0
        %1811 = vmatpush1.bf16.msra.mxu0 %v1795
        %1812 = vmatprep.subr.bf16.mxu0 0
        %1813 = vmatpush1.bf16.msra.mxu0 %v1794
        %1814 = vmatprep.subr.bf16.mxu0 0
        %1815 = vmatpush1.bf16.msra.mxu0 %v1793
        %1816 = vmatprep.subr.bf16.mxu0 0
        %1817 = vmatpush1.bf16.msra.mxu0 %v1792
        %1818 = vmatprep.subr.bf16.mxu0 0
        %1819 = vmatpush1.bf16.msra.mxu0 %v1791
        %1820 = vmatprep.subr.bf16.mxu0 0
        %1821 = vmatpush1.bf16.msra.mxu0 %v1790
        %1822 = vmatprep.subr.bf16.mxu0 0
        %1823 = vmatpush2.bf16.msra.mxu0 0
        %1824 = vmatprep.subr.bf16.mxu0 0
        %1825 = vmatpush2.bf16.msra.mxu0 0
        %1826 = vmatprep.subr.bf16.mxu0 0
        %1827 = vmatpush2.bf16.msra.mxu0 0
        %1828 = vmatprep.subr.bf16.mxu0 0
        %1829 = vmatpush2.bf16.msra.mxu0 0
        %1830 = vmatprep.subr.bf16.mxu0 0
        %1831 = vmatpush2.bf16.msra.mxu0 0
        %1832 = vmatprep.subr.bf16.mxu0 0
        %1833 = vmatpush2.bf16.msra.mxu0 0
        %1834 = vmatprep.subr.bf16.mxu0 0
        %1835 = vmatpush2.bf16.msra.mxu0 0
        %1836 = vmatprep.subr.bf16.mxu0 0
        %1837 = vmatpush2.bf16.msra.mxu0 0
        %1838 = vmatprep.mubr.bf16.mxu0 0
        %1839 = vmatmul.mubr.bf16.gmra.mxu0 %v1719
        %v1840 = vpop.f32.mrf.mxu0
        %v1841 = vadd.f32 %v1756, %v1840
        %v1842 = vpop.f32.mrf.mxu0
        %v1843 = vpop.f32.mrf.mxu0
        %v1844 = vadd.f32 %v1756, %v1843
        %v1845 = vpop.f32.mrf.mxu0
        %1846 = vmatprep.mubr.bf16.mxu0 0
        %1847 = vmatmul.mubr.bf16.gmra.mxu0 %v1720
        %v1848 = vpop.f32.mrf.mxu0
        %v1849 = vadd.f32 %v1756, %v1848
        %v1850 = vpop.f32.mrf.mxu0
        %v1851 = vpop.f32.mrf.mxu0
        %v1852 = vadd.f32 %v1756, %v1851
        %v1853 = vpop.f32.mrf.mxu0
        %1854 = vmatprep.mubr.bf16.mxu0 0
        %1855 = vmatmul.mubr.bf16.gmra.mxu0 %v1721
        %v1856 = vpop.f32.mrf.mxu0
        %v1857 = vadd.f32 %v1756, %v1856
        %v1858 = vpop.f32.mrf.mxu0
        %v1859 = vpop.f32.mrf.mxu0
        %v1860 = vadd.f32 %v1756, %v1859
        %v1861 = vpop.f32.mrf.mxu0
        %1862 = vmatprep.mubr.bf16.mxu0 0
        %1863 = vmatmul.mubr.bf16.gmra.mxu0 %v1722
        %v1864 = vpop.f32.mrf.mxu0
        %v1865 = vadd.f32 %v1756, %v1864
        %v1866 = vpop.f32.mrf.mxu0
        %v1867 = vpop.f32.mrf.mxu0
        %v1868 = vadd.f32 %v1756, %v1867
        %v1869 = vpop.f32.mrf.mxu0
        %1870 = vmatprep.mubr.bf16.mxu0 0
        %1871 = vmatmul.mubr.bf16.gmra.mxu0 %v1723
        %v1872 = vpop.f32.mrf.mxu0
        %v1873 = vadd.f32 %v1756, %v1872
        %v1874 = vpop.f32.mrf.mxu0
        %v1875 = vpop.f32.mrf.mxu0
        %v1876 = vadd.f32 %v1756, %v1875
        %v1877 = vpop.f32.mrf.mxu0
        %1878 = vmatprep.mubr.bf16.mxu0 0
        %1879 = vmatmul.mubr.bf16.gmra.mxu0 %v1724
        %v1880 = vpop.f32.mrf.mxu0
        %v1881 = vadd.f32 %v1756, %v1880
        %v1882 = vpop.f32.mrf.mxu0
        %v1883 = vpop.f32.mrf.mxu0
        %v1884 = vadd.f32 %v1756, %v1883
        %v1885 = vpop.f32.mrf.mxu0
        %1886 = vmatprep.mubr.bf16.mxu0 0
        %1887 = vmatmul.mubr.bf16.gmra.mxu0 %v1725
        %v1888 = vpop.f32.mrf.mxu0
        %v1889 = vadd.f32 %v1756, %v1888
        %v1890 = vpop.f32.mrf.mxu0
        %v1891 = vpop.f32.mrf.mxu0
        %v1892 = vadd.f32 %v1756, %v1891
        %v1893 = vpop.f32.mrf.mxu0
        %1894 = vmatprep.mubr.bf16.mxu0 0
        %1895 = vmatmul.mubr.bf16.gmra.mxu0 %v1726
        %v1896 = vpop.f32.mrf.mxu0
        %v1897 = vadd.f32 %v1756, %v1896
        %v1898 = vpop.f32.mrf.mxu0
        %v1899 = vpop.f32.mrf.mxu0
        %v1900 = vadd.f32 %v1756, %v1899
        %v1901 = vpop.f32.mrf.mxu0
        %1902 = vmatprep.mubr.bf16.mxu0 0
        %1903 = vmatmul.mubr.bf16.gmra.mxu0 %v1727
        %v1904 = vpop.f32.mrf.mxu0
        %v1905 = vadd.f32 %v1756, %v1904
        %v1906 = vpop.f32.mrf.mxu0
        %v1907 = vpop.f32.mrf.mxu0
        %v1908 = vadd.f32 %v1756, %v1907
        %v1909 = vpop.f32.mrf.mxu0
        %1910 = vmatprep.mubr.bf16.mxu0 0
        %1911 = vmatmul.mubr.bf16.gmra.mxu0 %v1728
        %v1912 = vpop.f32.mrf.mxu0
        %v1913 = vadd.f32 %v1756, %v1912
        %v1914 = vpop.f32.mrf.mxu0
        %v1915 = vpop.f32.mrf.mxu0
        %v1916 = vadd.f32 %v1756, %v1915
        %v1917 = vpop.f32.mrf.mxu0
        %1918 = vmatprep.mubr.bf16.mxu0 0
        %1919 = vmatmul.mubr.bf16.gmra.mxu0 %v1729
        %v1920 = vpop.f32.mrf.mxu0
        %v1921 = vadd.f32 %v1756, %v1920
        %v1922 = vpop.f32.mrf.mxu0
        %v1923 = vpop.f32.mrf.mxu0
        %v1924 = vadd.f32 %v1756, %v1923
        %v1925 = vpop.f32.mrf.mxu0
        %1926 = vmatprep.mubr.bf16.mxu0 0
        %1927 = vmatmul.mubr.bf16.gmra.mxu0 %v1730
        %v1928 = vpop.f32.mrf.mxu0
        %v1929 = vadd.f32 %v1756, %v1928
        %v1930 = vpop.f32.mrf.mxu0
        %v1931 = vpop.f32.mrf.mxu0
        %v1932 = vadd.f32 %v1756, %v1931
        %v1933 = vpop.f32.mrf.mxu0
        %1934 = vmatprep.mubr.bf16.mxu0 0
        %1935 = vmatmul.mubr.bf16.gmra.mxu0 %v1731
        %v1936 = vpop.f32.mrf.mxu0
        %v1937 = vadd.f32 %v1756, %v1936
        %v1938 = vpop.f32.mrf.mxu0
        %v1939 = vpop.f32.mrf.mxu0
        %v1940 = vadd.f32 %v1756, %v1939
        %v1941 = vpop.f32.mrf.mxu0
        %1942 = vmatprep.mubr.bf16.mxu0 0
        %1943 = vmatmul.mubr.bf16.gmra.mxu0 %v1732
        %v1944 = vpop.f32.mrf.mxu0
        %v1945 = vadd.f32 %v1756, %v1944
        %v1946 = vpop.f32.mrf.mxu0
        %v1947 = vpop.f32.mrf.mxu0
        %v1948 = vadd.f32 %v1756, %v1947
        %v1949 = vpop.f32.mrf.mxu0
        %1950 = vmatprep.mubr.bf16.mxu0 0
        %1951 = vmatmul.mubr.bf16.gmra.mxu0 %v1733
        %v1952 = vpop.f32.mrf.mxu0
        %v1953 = vadd.f32 %v1756, %v1952
        %v1954 = vpop.f32.mrf.mxu0
        %v1955 = vpop.f32.mrf.mxu0
        %v1956 = vadd.f32 %v1756, %v1955
        %v1957 = vpop.f32.mrf.mxu0
        %1958 = vmatprep.mubr.bf16.mxu0 0
        %1959 = vmatmul.mubr.bf16.gmra.mxu0 %v1734
        %v1960 = vpop.f32.mrf.mxu0
        %v1961 = vadd.f32 %v1756, %v1960
        %v1962 = vpop.f32.mrf.mxu0
        %v1963 = vpop.f32.mrf.mxu0
        %v1964 = vadd.f32 %v1756, %v1963
        %v1965 = vpop.f32.mrf.mxu0
        %1966 = vdwg.mxu0
        %v1967 = vld [vmem:[%s10] sm:$0xf]
        %v1968 = vld [vmem:[%s10 + $0x4] sm:$0xf]
        %v1969 = vld [vmem:[%s10 + $0x8] sm:$0xf]
        %v1970 = vld [vmem:[%s10 + $0xc] sm:$0xf]
        %v1971 = vld [vmem:[%s10 + $0x10] sm:$0xf]
        %v1972 = vld [vmem:[%s10 + $0x14] sm:$0xf]
        %v1973 = vld [vmem:[%s10 + $0x18] sm:$0xf]
        %v1974 = vld [vmem:[%s10 + $0x1c] sm:$0xf]
        %v1975 = vld [vmem:[%s10 + $0x20] sm:$0xf]
        %v1976 = vld [vmem:[%s10 + $0x24] sm:$0xf]
        %v1977 = vld [vmem:[%s10 + $0x28] sm:$0xf]
        %v1978 = vld [vmem:[%s10 + $0x2c] sm:$0xf]
        %v1979 = vld [vmem:[%s10 + $0x30] sm:$0xf]
        %v1980 = vld [vmem:[%s10 + $0x34] sm:$0xf]
        %v1981 = vld [vmem:[%s10 + $0x38] sm:$0xf]
        %v1982 = vld [vmem:[%s10 + $0x3c] sm:$0xf]
        %v1983 = vld [vmem:[%s11] sm:$0x1]
        %v1985 = vlaneseq
        %v1986 = vshrl.u32 %v1985, 7
        %v1987 = vsub.s32 0, %v1986
        %v1988 = vrot.slane %v1983, %v1987
        %v2006 = vunpack.c.l.b16 %v1967
        %v2007 = vunpack.c.l.b16 %v1968
        %v2008 = vunpack.c.l.b16 %v1969
        %v2009 = vunpack.c.l.b16 %v1970
        %v2010 = vunpack.c.l.b16 %v1971
        %v2011 = vunpack.c.l.b16 %v1972
        %v2012 = vunpack.c.l.b16 %v1973
        %v2013 = vunpack.c.l.b16 %v1974
        %v2014 = vunpack.c.l.b16 %v1975
        %v2015 = vunpack.c.l.b16 %v1976
        %v2016 = vunpack.c.l.b16 %v1977
        %v2017 = vunpack.c.l.b16 %v1978
        %v2018 = vunpack.c.l.b16 %v1979
        %v2019 = vunpack.c.l.b16 %v1980
        %v2020 = vunpack.c.l.b16 %v1981
        %v2021 = vunpack.c.l.b16 %v1982
        %v2022 = vpack.c.b16 %v2007, %v2006
        %v2023 = vpack.c.b16 %v2009, %v2008
        %v2024 = vpack.c.b16 %v2011, %v2010
        %v2025 = vpack.c.b16 %v2013, %v2012
        %v2026 = vpack.c.b16 %v2015, %v2014
        %v2027 = vpack.c.b16 %v2017, %v2016
        %v2028 = vpack.c.b16 %v2019, %v2018
        %v2029 = vpack.c.b16 %v2021, %v2020
        %2038 = vmatprep.subr.bf16.mxu0 0
        %2039 = vmatpush1.bf16.msra.mxu0 %v2029
        %2040 = vmatprep.subr.bf16.mxu0 0
        %2041 = vmatpush1.bf16.msra.mxu0 %v2028
        %2042 = vmatprep.subr.bf16.mxu0 0
        %2043 = vmatpush1.bf16.msra.mxu0 %v2027
        %2044 = vmatprep.subr.bf16.mxu0 0
        %2045 = vmatpush1.bf16.msra.mxu0 %v2026
        %2046 = vmatprep.subr.bf16.mxu0 0
        %2047 = vmatpush1.bf16.msra.mxu0 %v2025
        %2048 = vmatprep.subr.bf16.mxu0 0
        %2049 = vmatpush1.bf16.msra.mxu0 %v2024
        %2050 = vmatprep.subr.bf16.mxu0 0
        %2051 = vmatpush1.bf16.msra.mxu0 %v2023
        %2052 = vmatprep.subr.bf16.mxu0 0
        %2053 = vmatpush1.bf16.msra.mxu0 %v2022
        %2054 = vmatprep.subr.bf16.mxu0 0
        %2055 = vmatpush2.bf16.msra.mxu0 0
        %2056 = vmatprep.subr.bf16.mxu0 0
        %2057 = vmatpush2.bf16.msra.mxu0 0
        %2058 = vmatprep.subr.bf16.mxu0 0
        %2059 = vmatpush2.bf16.msra.mxu0 0
        %2060 = vmatprep.subr.bf16.mxu0 0
        %2061 = vmatpush2.bf16.msra.mxu0 0
        %2062 = vmatprep.subr.bf16.mxu0 0
        %2063 = vmatpush2.bf16.msra.mxu0 0
        %2064 = vmatprep.subr.bf16.mxu0 0
        %2065 = vmatpush2.bf16.msra.mxu0 0
        %2066 = vmatprep.subr.bf16.mxu0 0
        %2067 = vmatpush2.bf16.msra.mxu0 0
        %2068 = vmatprep.subr.bf16.mxu0 0
        %2069 = vmatpush2.bf16.msra.mxu0 0
        %2070 = vmatprep.mubr.bf16.mxu0 0
        %2071 = vmatmul.mubr.bf16.gmra.mxu0 %v1719
        %v2072 = vpop.f32.mrf.mxu0
        %v2073 = vadd.f32 %v1988, %v2072
        %v2074 = vpop.f32.mrf.mxu0
        %v2075 = vpop.f32.mrf.mxu0
        %v2076 = vadd.f32 %v1988, %v2075
        %v2077 = vpop.f32.mrf.mxu0
        %2078 = vmatprep.mubr.bf16.mxu0 0
        %2079 = vmatmul.mubr.bf16.gmra.mxu0 %v1720
        %v2080 = vpop.f32.mrf.mxu0
        %v2081 = vadd.f32 %v1988, %v2080
        %v2082 = vpop.f32.mrf.mxu0
        %v2083 = vpop.f32.mrf.mxu0
        %v2084 = vadd.f32 %v1988, %v2083
        %v2085 = vpop.f32.mrf.mxu0
        %2086 = vmatprep.mubr.bf16.mxu0 0
        %2087 = vmatmul.mubr.bf16.gmra.mxu0 %v1721
        %v2088 = vpop.f32.mrf.mxu0
        %v2089 = vadd.f32 %v1988, %v2088
        %v2090 = vpop.f32.mrf.mxu0
        %v2091 = vpop.f32.mrf.mxu0
        %v2092 = vadd.f32 %v1988, %v2091
        %v2093 = vpop.f32.mrf.mxu0
        %2094 = vmatprep.mubr.bf16.mxu0 0
        %2095 = vmatmul.mubr.bf16.gmra.mxu0 %v1722
        %v2096 = vpop.f32.mrf.mxu0
        %v2097 = vadd.f32 %v1988, %v2096
        %v2098 = vpop.f32.mrf.mxu0
        %v2099 = vpop.f32.mrf.mxu0
        %v2100 = vadd.f32 %v1988, %v2099
        %v2101 = vpop.f32.mrf.mxu0
        %2102 = vmatprep.mubr.bf16.mxu0 0
        %2103 = vmatmul.mubr.bf16.gmra.mxu0 %v1723
        %v2104 = vpop.f32.mrf.mxu0
        %v2105 = vadd.f32 %v1988, %v2104
        %v2106 = vpop.f32.mrf.mxu0
        %v2107 = vpop.f32.mrf.mxu0
        %v2108 = vadd.f32 %v1988, %v2107
        %v2109 = vpop.f32.mrf.mxu0
        %2110 = vmatprep.mubr.bf16.mxu0 0
        %2111 = vmatmul.mubr.bf16.gmra.mxu0 %v1724
        %v2112 = vpop.f32.mrf.mxu0
        %v2113 = vadd.f32 %v1988, %v2112
        %v2114 = vpop.f32.mrf.mxu0
        %v2115 = vpop.f32.mrf.mxu0
        %v2116 = vadd.f32 %v1988, %v2115
        %v2117 = vpop.f32.mrf.mxu0
        %2118 = vmatprep.mubr.bf16.mxu0 0
        %2119 = vmatmul.mubr.bf16.gmra.mxu0 %v1725
        %v2120 = vpop.f32.mrf.mxu0
        %v2121 = vadd.f32 %v1988, %v2120
        %v2122 = vpop.f32.mrf.mxu0
        %v2123 = vpop.f32.mrf.mxu0
        %v2124 = vadd.f32 %v1988, %v2123
        %v2125 = vpop.f32.mrf.mxu0
        %2126 = vmatprep.mubr.bf16.mxu0 0
        %2127 = vmatmul.mubr.bf16.gmra.mxu0 %v1726
        %v2128 = vpop.f32.mrf.mxu0
        %v2129 = vadd.f32 %v1988, %v2128
        %v2130 = vpop.f32.mrf.mxu0
        %v2131 = vpop.f32.mrf.mxu0
        %v2132 = vadd.f32 %v1988, %v2131
        %v2133 = vpop.f32.mrf.mxu0
        %2134 = vmatprep.mubr.bf16.mxu0 0
        %2135 = vmatmul.mubr.bf16.gmra.mxu0 %v1727
        %v2136 = vpop.f32.mrf.mxu0
        %v2137 = vadd.f32 %v1988, %v2136
        %v2138 = vpop.f32.mrf.mxu0
        %v2139 = vpop.f32.mrf.mxu0
        %v2140 = vadd.f32 %v1988, %v2139
        %v2141 = vpop.f32.mrf.mxu0
        %2142 = vmatprep.mubr.bf16.mxu0 0
        %2143 = vmatmul.mubr.bf16.gmra.mxu0 %v1728
        %v2144 = vpop.f32.mrf.mxu0
        %v2145 = vadd.f32 %v1988, %v2144
        %v2146 = vpop.f32.mrf.mxu0
        %v2147 = vpop.f32.mrf.mxu0
        %v2148 = vadd.f32 %v1988, %v2147
        %v2149 = vpop.f32.mrf.mxu0
        %2150 = vmatprep.mubr.bf16.mxu0 0
        %2151 = vmatmul.mubr.bf16.gmra.mxu0 %v1729
        %v2152 = vpop.f32.mrf.mxu0
        %v2153 = vadd.f32 %v1988, %v2152
        %v2154 = vpop.f32.mrf.mxu0
        %v2155 = vpop.f32.mrf.mxu0
        %v2156 = vadd.f32 %v1988, %v2155
        %v2157 = vpop.f32.mrf.mxu0
        %2158 = vmatprep.mubr.bf16.mxu0 0
        %2159 = vmatmul.mubr.bf16.gmra.mxu0 %v1730
        %v2160 = vpop.f32.mrf.mxu0
        %v2161 = vadd.f32 %v1988, %v2160
        %v2162 = vpop.f32.mrf.mxu0
        %v2163 = vpop.f32.mrf.mxu0
        %v2164 = vadd.f32 %v1988, %v2163
        %v2165 = vpop.f32.mrf.mxu0
        %2166 = vmatprep.mubr.bf16.mxu0 0
        %2167 = vmatmul.mubr.bf16.gmra.mxu0 %v1731
        %v2168 = vpop.f32.mrf.mxu0
        %v2169 = vadd.f32 %v1988, %v2168
        %v2170 = vpop.f32.mrf.mxu0
        %v2171 = vpop.f32.mrf.mxu0
        %v2172 = vadd.f32 %v1988, %v2171
        %v2173 = vpop.f32.mrf.mxu0
        %2174 = vmatprep.mubr.bf16.mxu0 0
        %2175 = vmatmul.mubr.bf16.gmra.mxu0 %v1732
        %v2176 = vpop.f32.mrf.mxu0
        %v2177 = vadd.f32 %v1988, %v2176
        %v2178 = vpop.f32.mrf.mxu0
        %v2179 = vpop.f32.mrf.mxu0
        %v2180 = vadd.f32 %v1988, %v2179
        %v2181 = vpop.f32.mrf.mxu0
        %2182 = vmatprep.mubr.bf16.mxu0 0
        %2183 = vmatmul.mubr.bf16.gmra.mxu0 %v1733
        %v2184 = vpop.f32.mrf.mxu0
        %v2185 = vadd.f32 %v1988, %v2184
        %v2186 = vpop.f32.mrf.mxu0
        %v2187 = vpop.f32.mrf.mxu0
        %v2188 = vadd.f32 %v1988, %v2187
        %v2189 = vpop.f32.mrf.mxu0
        %2190 = vmatprep.mubr.bf16.mxu0 0
        %2191 = vmatmul.mubr.bf16.gmra.mxu0 %v1734
        %v2192 = vpop.f32.mrf.mxu0
        %v2193 = vadd.f32 %v1988, %v2192
        %v2194 = vpop.f32.mrf.mxu0
        %v2195 = vpop.f32.mrf.mxu0
        %v2196 = vadd.f32 %v1988, %v2195
        %v2197 = vpop.f32.mrf.mxu0
        %2198 = vdwg.mxu0
        %v2199 = vmul.f32 %v2073, 0.5
        %v2200 = vmul.f32 %v2076, 0.5
        %v2201 = vmul.f32 %v2081, 0.5
        %v2202 = vmul.f32 %v2084, 0.5
        %v2203 = vmul.f32 %v2089, 0.5
        %v2204 = vmul.f32 %v2092, 0.5
        %v2205 = vmul.f32 %v2097, 0.5
        %v2206 = vmul.f32 %v2100, 0.5
        %v2207 = vmul.f32 %v2105, 0.5
        %v2208 = vmul.f32 %v2108, 0.5
        %v2209 = vmul.f32 %v2113, 0.5
        %v2210 = vmul.f32 %v2116, 0.5
        %v2211 = vmul.f32 %v2121, 0.5
        %v2212 = vmul.f32 %v2124, 0.5
        %v2213 = vmul.f32 %v2129, 0.5
        %v2214 = vmul.f32 %v2132, 0.5
        %v2215 = vmul.f32 %v2137, 0.5
        %v2216 = vmul.f32 %v2140, 0.5
        %v2217 = vmul.f32 %v2145, 0.5
        %v2218 = vmul.f32 %v2148, 0.5
        %v2219 = vmul.f32 %v2153, 0.5
        %v2220 = vmul.f32 %v2156, 0.5
        %v2221 = vmul.f32 %v2161, 0.5
        %v2222 = vmul.f32 %v2164, 0.5
        %v2223 = vmul.f32 %v2169, 0.5
        %v2224 = vmul.f32 %v2172, 0.5
        %v2225 = vmul.f32 %v2177, 0.5
        %v2226 = vmul.f32 %v2180, 0.5
        %v2227 = vmul.f32 %v2185, 0.5
        %v2228 = vmul.f32 %v2188, 0.5
        %v2229 = vmul.f32 %v2193, 0.5
        %v2230 = vmul.f32 %v2196, 0.5
        %v2231 = vmul.f32 %v2199, 1.442695
        %v2232 = vpow.pop %v2231
        %v2233 = vmul.f32 %v2200, 1.442695
        %v2234 = vpow.pop %v2233
        %v2235 = vmul.f32 %v2201, 1.442695
        %v2236 = vpow.pop %v2235
        %v2237 = vmul.f32 %v2202, 1.442695
        %v2238 = vpow.pop %v2237
        %v2239 = vmul.f32 %v2203, 1.442695
        %v2240 = vpow.pop %v2239
        %v2241 = vmul.f32 %v2204, 1.442695
        %v2242 = vpow.pop %v2241
        %v2243 = vmul.f32 %v2205, 1.442695
        %v2244 = vpow.pop %v2243
        %v2245 = vmul.f32 %v2206, 1.442695
        %v2246 = vpow.pop %v2245
        %v2247 = vmul.f32 %v2207, 1.442695
        %v2248 = vpow.pop %v2247
        %v2249 = vmul.f32 %v2208, 1.442695
        %v2250 = vpow.pop %v2249
        %v2251 = vmul.f32 %v2209, 1.442695
        %v2252 = vpow.pop %v2251
        %v2253 = vmul.f32 %v2210, 1.442695
        %v2254 = vpow.pop %v2253
        %v2255 = vmul.f32 %v2211, 1.442695
        %v2256 = vpow.pop %v2255
        %v2257 = vmul.f32 %v2212, 1.442695
        %v2258 = vpow.pop %v2257
        %v2259 = vmul.f32 %v2213, 1.442695
        %v2260 = vpow.pop %v2259
        %v2261 = vmul.f32 %v2214, 1.442695
        %v2262 = vpow.pop %v2261
        %v2263 = vmul.f32 %v2215, 1.442695
        %v2264 = vpow.pop %v2263
        %v2265 = vmul.f32 %v2216, 1.442695
        %v2266 = vpow.pop %v2265
        %v2267 = vmul.f32 %v2217, 1.442695
        %v2268 = vpow.pop %v2267
        %v2269 = vmul.f32 %v2218, 1.442695
        %v2270 = vpow.pop %v2269
        %v2271 = vmul.f32 %v2219, 1.442695
        %v2272 = vpow.pop %v2271
        %v2273 = vmul.f32 %v2220, 1.442695
        %v2274 = vpow.pop %v2273
        %v2275 = vmul.f32 %v2221, 1.442695
        %v2276 = vpow.pop %v2275
        %v2277 = vmul.f32 %v2222, 1.442695
        %v2278 = vpow.pop %v2277
        %v2279 = vmul.f32 %v2223, 1.442695
        %v2280 = vpow.pop %v2279
        %v2281 = vmul.f32 %v2224, 1.442695
        %v2282 = vpow.pop %v2281
        %v2283 = vmul.f32 %v2225, 1.442695
        %v2284 = vpow.pop %v2283
        %v2285 = vmul.f32 %v2226, 1.442695
        %v2286 = vpow.pop %v2285
        %v2287 = vmul.f32 %v2227, 1.442695
        %v2288 = vpow.pop %v2287
        %v2289 = vmul.f32 %v2228, 1.442695
        %v2290 = vpow.pop %v2289
        %v2291 = vmul.f32 %v2229, 1.442695
        %v2292 = vpow.pop %v2291
        %v2293 = vmul.f32 %v2230, 1.442695
        %v2294 = vpow.pop %v2293
        %v2295 = vmul.f32 %v713, %v2232
        %v2296 = vmul.f32 %v714, %v2234
        %v2297 = vmul.f32 %v715, %v2236
        %v2298 = vmul.f32 %v716, %v2238
        %v2299 = vmul.f32 %v717, %v2240
        %v2300 = vmul.f32 %v718, %v2242
        %v2301 = vmul.f32 %v719, %v2244
        %v2302 = vmul.f32 %v720, %v2246
        %v2303 = vmul.f32 %v721, %v2248
        %v2304 = vmul.f32 %v722, %v2250
        %v2305 = vmul.f32 %v723, %v2252
        %v2306 = vmul.f32 %v724, %v2254
        %v2307 = vmul.f32 %v725, %v2256
        %v2308 = vmul.f32 %v726, %v2258
        %v2309 = vmul.f32 %v727, %v2260
        %v2310 = vmul.f32 %v728, %v2262
        %v2311 = vmul.f32 %v729, %v2264
        %v2312 = vmul.f32 %v730, %v2266
        %v2313 = vmul.f32 %v731, %v2268
        %v2314 = vmul.f32 %v732, %v2270
        %v2315 = vmul.f32 %v733, %v2272
        %v2316 = vmul.f32 %v734, %v2274
        %v2317 = vmul.f32 %v735, %v2276
        %v2318 = vmul.f32 %v736, %v2278
        %v2319 = vmul.f32 %v737, %v2280
        %v2320 = vmul.f32 %v738, %v2282
        %v2321 = vmul.f32 %v739, %v2284
        %v2322 = vmul.f32 %v740, %v2286
        %v2323 = vmul.f32 %v741, %v2288
        %v2324 = vmul.f32 %v742, %v2290
        %v2325 = vmul.f32 %v743, %v2292
        %v2326 = vmul.f32 %v744, %v2294
        %v2327 = vadd.f32 %v1841, %v2295
        %v2328 = vadd.f32 %v1844, %v2296
        %v2329 = vadd.f32 %v1849, %v2297
        %v2330 = vadd.f32 %v1852, %v2298
        %v2331 = vadd.f32 %v1857, %v2299
        %v2332 = vadd.f32 %v1860, %v2300
        %v2333 = vadd.f32 %v1865, %v2301
        %v2334 = vadd.f32 %v1868, %v2302
        %v2335 = vadd.f32 %v1873, %v2303
        %v2336 = vadd.f32 %v1876, %v2304
        %v2337 = vadd.f32 %v1881, %v2305
        %v2338 = vadd.f32 %v1884, %v2306
        %v2339 = vadd.f32 %v1889, %v2307
        %v2340 = vadd.f32 %v1892, %v2308
        %v2341 = vadd.f32 %v1897, %v2309
        %v2342 = vadd.f32 %v1900, %v2310
        %v2343 = vadd.f32 %v1905, %v2311
        %v2344 = vadd.f32 %v1908, %v2312
        %v2345 = vadd.f32 %v1913, %v2313
        %v2346 = vadd.f32 %v1916, %v2314
        %v2347 = vadd.f32 %v1921, %v2315
        %v2348 = vadd.f32 %v1924, %v2316
        %v2349 = vadd.f32 %v1929, %v2317
        %v2350 = vadd.f32 %v1932, %v2318
        %v2351 = vadd.f32 %v1937, %v2319
        %v2352 = vadd.f32 %v1940, %v2320
        %v2353 = vadd.f32 %v1945, %v2321
        %v2354 = vadd.f32 %v1948, %v2322
        %v2355 = vadd.f32 %v1953, %v2323
        %v2356 = vadd.f32 %v1956, %v2324
        %v2357 = vadd.f32 %v1961, %v2325
        %v2358 = vadd.f32 %v1964, %v2326
        %v2359 = vpack.c.bf16 %v2328, %v2327
        %v2360 = vpack.c.bf16 %v2330, %v2329
        %v2361 = vpack.c.bf16 %v2332, %v2331
        %v2362 = vpack.c.bf16 %v2334, %v2333
        %v2363 = vpack.c.bf16 %v2336, %v2335
        %v2364 = vpack.c.bf16 %v2338, %v2337
        %v2365 = vpack.c.bf16 %v2340, %v2339
        %v2366 = vpack.c.bf16 %v2342, %v2341
        %v2367 = vpack.c.bf16 %v2344, %v2343
        %v2368 = vpack.c.bf16 %v2346, %v2345
        %v2369 = vpack.c.bf16 %v2348, %v2347
        %v2370 = vpack.c.bf16 %v2350, %v2349
        %v2371 = vpack.c.bf16 %v2352, %v2351
        %v2372 = vpack.c.bf16 %v2354, %v2353
        %v2373 = vpack.c.bf16 %v2356, %v2355
        %v2374 = vpack.c.bf16 %v2358, %v2357
        %v2375 = vld [vmem:[%s12] sm:$0xf]
        %v2376 = vld [vmem:[%s12 + $0x4] sm:$0xf]
        %v2377 = vld [vmem:[%s13] sm:$0xf]
        %v2378 = vld [vmem:[%s13 + $0x4] sm:$0x1]
        %v2381 = vunpack.c.l.b16 %v2377
        %v2382 = vunpack.c.l.b16 %v2378
        %v2383 = vpack.c.b16 %v2382, %v2381
        %v2385 = vsel %vm889, %v2383, 0
        %2387 = vmatprep.subr.bf16.mxu0 0
        %2388 = vmatpush1.bf16.msra.mxu0 0
        %2389 = vmatprep.subr.bf16.mxu0 0
        %2390 = vmatpush1.bf16.msra.mxu0 0
        %2391 = vmatprep.subr.bf16.mxu0 0
        %2392 = vmatpush1.bf16.msra.mxu0 0
        %2393 = vmatprep.subr.bf16.mxu0 0
        %2394 = vmatpush1.bf16.msra.mxu0 0
        %2395 = vmatprep.subr.bf16.mxu0 0
        %2396 = vmatpush1.bf16.msra.mxu0 0
        %2397 = vmatprep.subr.bf16.mxu0 0
        %2398 = vmatpush1.bf16.msra.mxu0 0
        %2399 = vmatprep.subr.bf16.mxu0 0
        %2400 = vmatpush1.bf16.msra.mxu0 0
        %2401 = vmatprep.subr.bf16.mxu0 0
        %2402 = vmatpush1.bf16.msra.mxu0 %v2385
        %2403 = vmatprep.subr.bf16.mxu0 0
        %2404 = vmatpush2.bf16.msra.mxu0 0
        %2405 = vmatprep.subr.bf16.mxu0 0
        %2406 = vmatpush2.bf16.msra.mxu0 0
        %2407 = vmatprep.subr.bf16.mxu0 0
        %2408 = vmatpush2.bf16.msra.mxu0 0
        %2409 = vmatprep.subr.bf16.mxu0 0
        %2410 = vmatpush2.bf16.msra.mxu0 0
        %2411 = vmatprep.subr.bf16.mxu0 0
        %2412 = vmatpush2.bf16.msra.mxu0 0
        %2413 = vmatprep.subr.bf16.mxu0 0
        %2414 = vmatpush2.bf16.msra.mxu0 0
        %2415 = vmatprep.subr.bf16.mxu0 0
        %2416 = vmatpush2.bf16.msra.mxu0 0
        %2417 = vmatprep.subr.bf16.mxu0 0
        %2418 = vmatpush2.bf16.msra.mxu0 0
        %2419 = vmatprep.mubr.bf16.mxu0 0
        %2420 = vmatmul.mubr.bf16.gmra.mxu0 %v842
        %v2421 = vpop.f32.mrf.mxu0
        %v2422 = vadd.f32 0.0, %v2421
        %v2423 = vpop.f32.mrf.mxu0
        %v2424 = vpop.f32.mrf.mxu0
        %v2425 = vadd.f32 0.0, %v2424
        %v2426 = vpop.f32.mrf.mxu0
        %2427 = vmatprep.mubr.bf16.mxu0 0
        %2428 = vmatmul.mubr.bf16.gmra.mxu0 %v845
        %v2429 = vpop.f32.mrf.mxu0
        %v2430 = vadd.f32 0.0, %v2429
        %v2431 = vpop.f32.mrf.mxu0
        %v2432 = vpop.f32.mrf.mxu0
        %v2433 = vadd.f32 0.0, %v2432
        %v2434 = vpop.f32.mrf.mxu0
        %2435 = vmatprep.mubr.bf16.mxu0 0
        %2436 = vmatmul.mubr.bf16.gmra.mxu0 %v848
        %v2437 = vpop.f32.mrf.mxu0
        %v2438 = vadd.f32 0.0, %v2437
        %v2439 = vpop.f32.mrf.mxu0
        %v2440 = vpop.f32.mrf.mxu0
        %v2441 = vadd.f32 0.0, %v2440
        %v2442 = vpop.f32.mrf.mxu0
        %2443 = vmatprep.mubr.bf16.mxu0 0
        %2444 = vmatmul.mubr.bf16.gmra.mxu0 %v851
        %v2445 = vpop.f32.mrf.mxu0
        %v2446 = vadd.f32 0.0, %v2445
        %v2447 = vpop.f32.mrf.mxu0
        %v2448 = vpop.f32.mrf.mxu0
        %v2449 = vadd.f32 0.0, %v2448
        %v2450 = vpop.f32.mrf.mxu0
        %2451 = vmatprep.mubr.bf16.mxu0 0
        %2452 = vmatmul.mubr.bf16.gmra.mxu0 %v854
        %v2453 = vpop.f32.mrf.mxu0
        %v2454 = vadd.f32 0.0, %v2453
        %v2455 = vpop.f32.mrf.mxu0
        %v2456 = vpop.f32.mrf.mxu0
        %v2457 = vadd.f32 0.0, %v2456
        %v2458 = vpop.f32.mrf.mxu0
        %2459 = vmatprep.mubr.bf16.mxu0 0
        %2460 = vmatmul.mubr.bf16.gmra.mxu0 %v857
        %v2461 = vpop.f32.mrf.mxu0
        %v2462 = vadd.f32 0.0, %v2461
        %v2463 = vpop.f32.mrf.mxu0
        %v2464 = vpop.f32.mrf.mxu0
        %v2465 = vadd.f32 0.0, %v2464
        %v2466 = vpop.f32.mrf.mxu0
        %2467 = vmatprep.mubr.bf16.mxu0 0
        %2468 = vmatmul.mubr.bf16.gmra.mxu0 %v860
        %v2469 = vpop.f32.mrf.mxu0
        %v2470 = vadd.f32 0.0, %v2469
        %v2471 = vpop.f32.mrf.mxu0
        %v2472 = vpop.f32.mrf.mxu0
        %v2473 = vadd.f32 0.0, %v2472
        %v2474 = vpop.f32.mrf.mxu0
        %2475 = vmatprep.mubr.bf16.mxu0 0
        %2476 = vmatmul.mubr.bf16.gmra.mxu0 %v863
        %v2477 = vpop.f32.mrf.mxu0
        %v2478 = vadd.f32 0.0, %v2477
        %v2479 = vpop.f32.mrf.mxu0
        %v2480 = vpop.f32.mrf.mxu0
        %v2481 = vadd.f32 0.0, %v2480
        %v2482 = vpop.f32.mrf.mxu0
        %2483 = vmatprep.mubr.bf16.mxu0 0
        %2484 = vmatmul.mubr.bf16.gmra.mxu0 %v866
        %v2485 = vpop.f32.mrf.mxu0
        %v2486 = vadd.f32 0.0, %v2485
        %v2487 = vpop.f32.mrf.mxu0
        %v2488 = vpop.f32.mrf.mxu0
        %v2489 = vadd.f32 0.0, %v2488
        %v2490 = vpop.f32.mrf.mxu0
        %2491 = vmatprep.mubr.bf16.mxu0 0
        %2492 = vmatmul.mubr.bf16.gmra.mxu0 %v869
        %v2493 = vpop.f32.mrf.mxu0
        %v2494 = vadd.f32 0.0, %v2493
        %v2495 = vpop.f32.mrf.mxu0
        %v2496 = vpop.f32.mrf.mxu0
        %v2497 = vadd.f32 0.0, %v2496
        %v2498 = vpop.f32.mrf.mxu0
        %2499 = vmatprep.mubr.bf16.mxu0 0
        %2500 = vmatmul.mubr.bf16.gmra.mxu0 %v872
        %v2501 = vpop.f32.mrf.mxu0
        %v2502 = vadd.f32 0.0, %v2501
        %v2503 = vpop.f32.mrf.mxu0
        %v2504 = vpop.f32.mrf.mxu0
        %v2505 = vadd.f32 0.0, %v2504
        %v2506 = vpop.f32.mrf.mxu0
        %2507 = vmatprep.mubr.bf16.mxu0 0
        %2508 = vmatmul.mubr.bf16.gmra.mxu0 %v875
        %v2509 = vpop.f32.mrf.mxu0
        %v2510 = vadd.f32 0.0, %v2509
        %v2511 = vpop.f32.mrf.mxu0
        %v2512 = vpop.f32.mrf.mxu0
        %v2513 = vadd.f32 0.0, %v2512
        %v2514 = vpop.f32.mrf.mxu0
        %2515 = vmatprep.mubr.bf16.mxu0 0
        %2516 = vmatmul.mubr.bf16.gmra.mxu0 %v878
        %v2517 = vpop.f32.mrf.mxu0
        %v2518 = vadd.f32 0.0, %v2517
        %v2519 = vpop.f32.mrf.mxu0
        %v2520 = vpop.f32.mrf.mxu0
        %v2521 = vadd.f32 0.0, %v2520
        %v2522 = vpop.f32.mrf.mxu0
        %2523 = vmatprep.mubr.bf16.mxu0 0
        %2524 = vmatmul.mubr.bf16.gmra.mxu0 %v881
        %v2525 = vpop.f32.mrf.mxu0
        %v2526 = vadd.f32 0.0, %v2525
        %v2527 = vpop.f32.mrf.mxu0
        %v2528 = vpop.f32.mrf.mxu0
        %v2529 = vadd.f32 0.0, %v2528
        %v2530 = vpop.f32.mrf.mxu0
        %2531 = vmatprep.mubr.bf16.mxu0 0
        %2532 = vmatmul.mubr.bf16.gmra.mxu0 %v884
        %v2533 = vpop.f32.mrf.mxu0
        %v2534 = vadd.f32 0.0, %v2533
        %v2535 = vpop.f32.mrf.mxu0
        %v2536 = vpop.f32.mrf.mxu0
        %v2537 = vadd.f32 0.0, %v2536
        %v2538 = vpop.f32.mrf.mxu0
        %2539 = vmatprep.mubr.bf16.mxu0 0
        %2540 = vmatmul.mubr.bf16.gmra.mxu0 %v887
        %v2541 = vpop.f32.mrf.mxu0
        %v2542 = vadd.f32 0.0, %v2541
        %v2543 = vpop.f32.mrf.mxu0
        %v2544 = vpop.f32.mrf.mxu0
        %v2545 = vadd.f32 0.0, %v2544
        %v2546 = vpop.f32.mrf.mxu0
        %2547 = vdwg.mxu0
        %v2550 = vunpack.c.l.b16 %v2375
        %v2551 = vunpack.c.l.b16 %v2376
        %v2552 = vpack.c.b16 %v2551, %v2550
        %vm2554 = vcmask 130048
        %v2556 = vsel %vm2554, %v2359, 0
        %v2559 = vsel %vm2554, %v2360, 0
        %v2562 = vsel %vm2554, %v2361, 0
        %v2565 = vsel %vm2554, %v2362, 0
        %v2568 = vsel %vm2554, %v2363, 0
        %v2571 = vsel %vm2554, %v2364, 0
        %v2574 = vsel %vm2554, %v2365, 0
        %v2577 = vsel %vm2554, %v2366, 0
        %v2580 = vsel %vm2554, %v2367, 0
        %v2583 = vsel %vm2554, %v2368, 0
        %v2586 = vsel %vm2554, %v2369, 0
        %v2589 = vsel %vm2554, %v2370, 0
        %v2592 = vsel %vm2554, %v2371, 0
        %v2595 = vsel %vm2554, %v2372, 0
        %v2598 = vsel %vm2554, %v2373, 0
        %v2601 = vsel %vm2554, %v2374, 0
        %2603 = vmatprep.subr.bf16.mxu0 0
        %2604 = vmatpush1.bf16.msra.mxu0 0
        %2605 = vmatprep.subr.bf16.mxu0 0
        %2606 = vmatpush1.bf16.msra.mxu0 0
        %2607 = vmatprep.subr.bf16.mxu0 0
        %2608 = vmatpush1.bf16.msra.mxu0 0
        %2609 = vmatprep.subr.bf16.mxu0 0
        %2610 = vmatpush1.bf16.msra.mxu0 0
        %2611 = vmatprep.subr.bf16.mxu0 0
        %2612 = vmatpush1.bf16.msra.mxu0 0
        %2613 = vmatprep.subr.bf16.mxu0 0
        %2614 = vmatpush1.bf16.msra.mxu0 0
        %2615 = vmatprep.subr.bf16.mxu0 0
        %2616 = vmatpush1.bf16.msra.mxu0 0
        %2617 = vmatprep.subr.bf16.mxu0 0
        %2618 = vmatpush1.bf16.msra.mxu0 %v2552
        %2619 = vmatprep.subr.bf16.mxu0 0
        %2620 = vmatpush2.bf16.msra.mxu0 0
        %2621 = vmatprep.subr.bf16.mxu0 0
        %2622 = vmatpush2.bf16.msra.mxu0 0
        %2623 = vmatprep.subr.bf16.mxu0 0
        %2624 = vmatpush2.bf16.msra.mxu0 0
        %2625 = vmatprep.subr.bf16.mxu0 0
        %2626 = vmatpush2.bf16.msra.mxu0 0
        %2627 = vmatprep.subr.bf16.mxu0 0
        %2628 = vmatpush2.bf16.msra.mxu0 0
        %2629 = vmatprep.subr.bf16.mxu0 0
        %2630 = vmatpush2.bf16.msra.mxu0 0
        %2631 = vmatprep.subr.bf16.mxu0 0
        %2632 = vmatpush2.bf16.msra.mxu0 0
        %2633 = vmatprep.subr.bf16.mxu0 0
        %2634 = vmatpush2.bf16.msra.mxu0 0
        %2635 = vmatprep.mubr.bf16.mxu0 0
        %2636 = vmatmul.mubr.bf16.gmra.mxu0 %v2556
        %v2637 = vpop.f32.mrf.mxu0
        %v2638 = vadd.f32 %v2422, %v2637
        %v2639 = vpop.f32.mrf.mxu0
        %v2640 = vpop.f32.mrf.mxu0
        %v2641 = vadd.f32 %v2425, %v2640
        %v2642 = vpop.f32.mrf.mxu0
        %2643 = vmatprep.mubr.bf16.mxu0 0
        %2644 = vmatmul.mubr.bf16.gmra.mxu0 %v2559
        %v2645 = vpop.f32.mrf.mxu0
        %v2646 = vadd.f32 %v2430, %v2645
        %v2647 = vpop.f32.mrf.mxu0
        %v2648 = vpop.f32.mrf.mxu0
        %v2649 = vadd.f32 %v2433, %v2648
        %v2650 = vpop.f32.mrf.mxu0
        %2651 = vmatprep.mubr.bf16.mxu0 0
        %2652 = vmatmul.mubr.bf16.gmra.mxu0 %v2562
        %v2653 = vpop.f32.mrf.mxu0
        %v2654 = vadd.f32 %v2438, %v2653
        %v2655 = vpop.f32.mrf.mxu0
        %v2656 = vpop.f32.mrf.mxu0
        %v2657 = vadd.f32 %v2441, %v2656
        %v2658 = vpop.f32.mrf.mxu0
        %2659 = vmatprep.mubr.bf16.mxu0 0
        %2660 = vmatmul.mubr.bf16.gmra.mxu0 %v2565
        %v2661 = vpop.f32.mrf.mxu0
        %v2662 = vadd.f32 %v2446, %v2661
        %v2663 = vpop.f32.mrf.mxu0
        %v2664 = vpop.f32.mrf.mxu0
        %v2665 = vadd.f32 %v2449, %v2664
        %v2666 = vpop.f32.mrf.mxu0
        %2667 = vmatprep.mubr.bf16.mxu0 0
        %2668 = vmatmul.mubr.bf16.gmra.mxu0 %v2568
        %v2669 = vpop.f32.mrf.mxu0
        %v2670 = vadd.f32 %v2454, %v2669
        %v2671 = vpop.f32.mrf.mxu0
        %v2672 = vpop.f32.mrf.mxu0
        %v2673 = vadd.f32 %v2457, %v2672
        %v2674 = vpop.f32.mrf.mxu0
        %2675 = vmatprep.mubr.bf16.mxu0 0
        %2676 = vmatmul.mubr.bf16.gmra.mxu0 %v2571
        %v2677 = vpop.f32.mrf.mxu0
        %v2678 = vadd.f32 %v2462, %v2677
        %v2679 = vpop.f32.mrf.mxu0
        %v2680 = vpop.f32.mrf.mxu0
        %v2681 = vadd.f32 %v2465, %v2680
        %v2682 = vpop.f32.mrf.mxu0
        %2683 = vmatprep.mubr.bf16.mxu0 0
        %2684 = vmatmul.mubr.bf16.gmra.mxu0 %v2574
        %v2685 = vpop.f32.mrf.mxu0
        %v2686 = vadd.f32 %v2470, %v2685
        %v2687 = vpop.f32.mrf.mxu0
        %v2688 = vpop.f32.mrf.mxu0
        %v2689 = vadd.f32 %v2473, %v2688
        %v2690 = vpop.f32.mrf.mxu0
        %2691 = vmatprep.mubr.bf16.mxu0 0
        %2692 = vmatmul.mubr.bf16.gmra.mxu0 %v2577
        %v2693 = vpop.f32.mrf.mxu0
        %v2694 = vadd.f32 %v2478, %v2693
        %v2695 = vpop.f32.mrf.mxu0
        %v2696 = vpop.f32.mrf.mxu0
        %v2697 = vadd.f32 %v2481, %v2696
        %v2698 = vpop.f32.mrf.mxu0
        %2699 = vmatprep.mubr.bf16.mxu0 0
        %2700 = vmatmul.mubr.bf16.gmra.mxu0 %v2580
        %v2701 = vpop.f32.mrf.mxu0
        %v2702 = vadd.f32 %v2486, %v2701
        %v2703 = vpop.f32.mrf.mxu0
        %v2704 = vpop.f32.mrf.mxu0
        %v2705 = vadd.f32 %v2489, %v2704
        %v2706 = vpop.f32.mrf.mxu0
        %2707 = vmatprep.mubr.bf16.mxu0 0
        %2708 = vmatmul.mubr.bf16.gmra.mxu0 %v2583
        %v2709 = vpop.f32.mrf.mxu0
        %v2710 = vadd.f32 %v2494, %v2709
        %v2711 = vpop.f32.mrf.mxu0
        %v2712 = vpop.f32.mrf.mxu0
        %v2713 = vadd.f32 %v2497, %v2712
        %v2714 = vpop.f32.mrf.mxu0
        %2715 = vmatprep.mubr.bf16.mxu0 0
        %2716 = vmatmul.mubr.bf16.gmra.mxu0 %v2586
        %v2717 = vpop.f32.mrf.mxu0
        %v2718 = vadd.f32 %v2502, %v2717
        %v2719 = vpop.f32.mrf.mxu0
        %v2720 = vpop.f32.mrf.mxu0
        %v2721 = vadd.f32 %v2505, %v2720
        %v2722 = vpop.f32.mrf.mxu0
        %2723 = vmatprep.mubr.bf16.mxu0 0
        %2724 = vmatmul.mubr.bf16.gmra.mxu0 %v2589
        %v2725 = vpop.f32.mrf.mxu0
        %v2726 = vadd.f32 %v2510, %v2725
        %v2727 = vpop.f32.mrf.mxu0
        %v2728 = vpop.f32.mrf.mxu0
        %v2729 = vadd.f32 %v2513, %v2728
        %v2730 = vpop.f32.mrf.mxu0
        %2731 = vmatprep.mubr.bf16.mxu0 0
        %2732 = vmatmul.mubr.bf16.gmra.mxu0 %v2592
        %v2733 = vpop.f32.mrf.mxu0
        %v2734 = vadd.f32 %v2518, %v2733
        %v2735 = vpop.f32.mrf.mxu0
        %v2736 = vpop.f32.mrf.mxu0
        %v2737 = vadd.f32 %v2521, %v2736
        %v2738 = vpop.f32.mrf.mxu0
        %2739 = vmatprep.mubr.bf16.mxu0 0
        %2740 = vmatmul.mubr.bf16.gmra.mxu0 %v2595
        %v2741 = vpop.f32.mrf.mxu0
        %v2742 = vadd.f32 %v2526, %v2741
        %v2743 = vpop.f32.mrf.mxu0
        %v2744 = vpop.f32.mrf.mxu0
        %v2745 = vadd.f32 %v2529, %v2744
        %v2746 = vpop.f32.mrf.mxu0
        %2747 = vmatprep.mubr.bf16.mxu0 0
        %2748 = vmatmul.mubr.bf16.gmra.mxu0 %v2598
        %v2749 = vpop.f32.mrf.mxu0
        %v2750 = vadd.f32 %v2534, %v2749
        %v2751 = vpop.f32.mrf.mxu0
        %v2752 = vpop.f32.mrf.mxu0
        %v2753 = vadd.f32 %v2537, %v2752
        %v2754 = vpop.f32.mrf.mxu0
        %2755 = vmatprep.mubr.bf16.mxu0 0
        %2756 = vmatmul.mubr.bf16.gmra.mxu0 %v2601
        %v2757 = vpop.f32.mrf.mxu0
        %v2758 = vadd.f32 %v2542, %v2757
        %v2759 = vpop.f32.mrf.mxu0
        %v2760 = vpop.f32.mrf.mxu0
        %v2761 = vadd.f32 %v2545, %v2760
        %v2762 = vpop.f32.mrf.mxu0
        %2763 = vdwg.mxu0
        %v2764 = vld [vmem:[%s14] sm:$0x1]
        %v2766 = vlaneseq
        %v2767 = vshrl.u32 %v2766, 7
        %v2768 = vsub.s32 0, %v2767
        %v2769 = vrot.slane %v2764, %v2768
        %v2771 = vadd.f32 %v2638, %v2769
        %v2772 = vadd.f32 %v2641, %v2769
        %v2773 = vadd.f32 %v2646, %v2769
        %v2774 = vadd.f32 %v2649, %v2769
        %v2775 = vadd.f32 %v2654, %v2769
        %v2776 = vadd.f32 %v2657, %v2769
        %v2777 = vadd.f32 %v2662, %v2769
        %v2778 = vadd.f32 %v2665, %v2769
        %v2779 = vadd.f32 %v2670, %v2769
        %v2780 = vadd.f32 %v2673, %v2769
        %v2781 = vadd.f32 %v2678, %v2769
        %v2782 = vadd.f32 %v2681, %v2769
        %v2783 = vadd.f32 %v2686, %v2769
        %v2784 = vadd.f32 %v2689, %v2769
        %v2785 = vadd.f32 %v2694, %v2769
        %v2786 = vadd.f32 %v2697, %v2769
        %v2787 = vadd.f32 %v2702, %v2769
        %v2788 = vadd.f32 %v2705, %v2769
        %v2789 = vadd.f32 %v2710, %v2769
        %v2790 = vadd.f32 %v2713, %v2769
        %v2791 = vadd.f32 %v2718, %v2769
        %v2792 = vadd.f32 %v2721, %v2769
        %v2793 = vadd.f32 %v2726, %v2769
        %v2794 = vadd.f32 %v2729, %v2769
        %v2795 = vadd.f32 %v2734, %v2769
        %v2796 = vadd.f32 %v2737, %v2769
        %v2797 = vadd.f32 %v2742, %v2769
        %v2798 = vadd.f32 %v2745, %v2769
        %v2799 = vadd.f32 %v2750, %v2769
        %v2800 = vadd.f32 %v2753, %v2769
        %v2801 = vadd.f32 %v2758, %v2769
        %v2802 = vadd.f32 %v2761, %v2769
        %v2803 = vmax.f32 %v2771, 0.0
        %v2804 = vmax.f32 %v2772, 0.0
        %v2805 = vmax.f32 %v2773, 0.0
        %v2806 = vmax.f32 %v2774, 0.0
        %v2807 = vmax.f32 %v2775, 0.0
        %v2808 = vmax.f32 %v2776, 0.0
        %v2809 = vmax.f32 %v2777, 0.0
        %v2810 = vmax.f32 %v2778, 0.0
        %v2811 = vmax.f32 %v2779, 0.0
        %v2812 = vmax.f32 %v2780, 0.0
        %v2813 = vmax.f32 %v2781, 0.0
        %v2814 = vmax.f32 %v2782, 0.0
        %v2815 = vmax.f32 %v2783, 0.0
        %v2816 = vmax.f32 %v2784, 0.0
        %v2817 = vmax.f32 %v2785, 0.0
        %v2818 = vmax.f32 %v2786, 0.0
        %v2819 = vmax.f32 %v2787, 0.0
        %v2820 = vmax.f32 %v2788, 0.0
        %v2821 = vmax.f32 %v2789, 0.0
        %v2822 = vmax.f32 %v2790, 0.0
        %v2823 = vmax.f32 %v2791, 0.0
        %v2824 = vmax.f32 %v2792, 0.0
        %v2825 = vmax.f32 %v2793, 0.0
        %v2826 = vmax.f32 %v2794, 0.0
        %v2827 = vmax.f32 %v2795, 0.0
        %v2828 = vmax.f32 %v2796, 0.0
        %v2829 = vmax.f32 %v2797, 0.0
        %v2830 = vmax.f32 %v2798, 0.0
        %v2831 = vmax.f32 %v2799, 0.0
        %v2832 = vmax.f32 %v2800, 0.0
        %v2833 = vmax.f32 %v2801, 0.0
        %v2834 = vmax.f32 %v2802, 0.0
        %v2835 = vpack.c.bf16 %v2804, %v2803
        %v2836 = vpack.c.bf16 %v2806, %v2805
        %v2837 = vpack.c.bf16 %v2808, %v2807
        %v2838 = vpack.c.bf16 %v2810, %v2809
        %v2839 = vpack.c.bf16 %v2812, %v2811
        %v2840 = vpack.c.bf16 %v2814, %v2813
        %v2841 = vpack.c.bf16 %v2816, %v2815
        %v2842 = vpack.c.bf16 %v2818, %v2817
        %v2843 = vpack.c.bf16 %v2820, %v2819
        %v2844 = vpack.c.bf16 %v2822, %v2821
        %v2845 = vpack.c.bf16 %v2824, %v2823
        %v2846 = vpack.c.bf16 %v2826, %v2825
        %v2847 = vpack.c.bf16 %v2828, %v2827
        %v2848 = vpack.c.bf16 %v2830, %v2829
        %v2849 = vpack.c.bf16 %v2832, %v2831
        %v2850 = vpack.c.bf16 %v2834, %v2833
        %v2851 = vld [vmem:[%s15] sm:$0xf]
        %v2852 = vld [vmem:[%s15 + $0x4] sm:$0xf]
        %v2853 = vld [vmem:[%s15 + $0x8] sm:$0xf]
        %v2854 = vld [vmem:[%s15 + $0xc] sm:$0xf]
        %v2855 = vld [vmem:[%s15 + $0x10] sm:$0xf]
        %v2856 = vld [vmem:[%s15 + $0x14] sm:$0xf]
        %v2857 = vld [vmem:[%s15 + $0x18] sm:$0xf]
        %v2858 = vld [vmem:[%s15 + $0x1c] sm:$0xf]
        %v2859 = vld [vmem:[%s15 + $0x20] sm:$0xf]
        %v2860 = vld [vmem:[%s15 + $0x24] sm:$0xf]
        %v2861 = vld [vmem:[%s15 + $0x28] sm:$0xf]
        %v2862 = vld [vmem:[%s15 + $0x2c] sm:$0xf]
        %v2863 = vld [vmem:[%s15 + $0x30] sm:$0xf]
        %v2864 = vld [vmem:[%s15 + $0x34] sm:$0xf]
        %v2865 = vld [vmem:[%s15 + $0x38] sm:$0xf]
        %v2866 = vld [vmem:[%s15 + $0x3c] sm:$0xf]
        %v2867 = vld [vmem:[%s16] sm:$0x1]
        %v2869 = vlaneseq
        %v2870 = vshrl.u32 %v2869, 7
        %v2871 = vsub.s32 0, %v2870
        %v2872 = vrot.slane %v2867, %v2871
        %v2890 = vunpack.c.l.b16 %v2851
        %v2891 = vunpack.c.l.b16 %v2852
        %v2892 = vunpack.c.l.b16 %v2853
        %v2893 = vunpack.c.l.b16 %v2854
        %v2894 = vunpack.c.l.b16 %v2855
        %v2895 = vunpack.c.l.b16 %v2856
        %v2896 = vunpack.c.l.b16 %v2857
        %v2897 = vunpack.c.l.b16 %v2858
        %v2898 = vunpack.c.l.b16 %v2859
        %v2899 = vunpack.c.l.b16 %v2860
        %v2900 = vunpack.c.l.b16 %v2861
        %v2901 = vunpack.c.l.b16 %v2862
        %v2902 = vunpack.c.l.b16 %v2863
        %v2903 = vunpack.c.l.b16 %v2864
        %v2904 = vunpack.c.l.b16 %v2865
        %v2905 = vunpack.c.l.b16 %v2866
        %v2906 = vpack.c.b16 %v2891, %v2890
        %v2907 = vpack.c.b16 %v2893, %v2892
        %v2908 = vpack.c.b16 %v2895, %v2894
        %v2909 = vpack.c.b16 %v2897, %v2896
        %v2910 = vpack.c.b16 %v2899, %v2898
        %v2911 = vpack.c.b16 %v2901, %v2900
        %v2912 = vpack.c.b16 %v2903, %v2902
        %v2913 = vpack.c.b16 %v2905, %v2904
        %2922 = vmatprep.subr.bf16.mxu0 0
        %2923 = vmatpush1.bf16.msra.mxu0 %v2913
        %2924 = vmatprep.subr.bf16.mxu0 0
        %2925 = vmatpush1.bf16.msra.mxu0 %v2912
        %2926 = vmatprep.subr.bf16.mxu0 0
        %2927 = vmatpush1.bf16.msra.mxu0 %v2911
        %2928 = vmatprep.subr.bf16.mxu0 0
        %2929 = vmatpush1.bf16.msra.mxu0 %v2910
        %2930 = vmatprep.subr.bf16.mxu0 0
        %2931 = vmatpush1.bf16.msra.mxu0 %v2909
        %2932 = vmatprep.subr.bf16.mxu0 0
        %2933 = vmatpush1.bf16.msra.mxu0 %v2908
        %2934 = vmatprep.subr.bf16.mxu0 0
        %2935 = vmatpush1.bf16.msra.mxu0 %v2907
        %2936 = vmatprep.subr.bf16.mxu0 0
        %2937 = vmatpush1.bf16.msra.mxu0 %v2906
        %2938 = vmatprep.subr.bf16.mxu0 0
        %2939 = vmatpush2.bf16.msra.mxu0 0
        %2940 = vmatprep.subr.bf16.mxu0 0
        %2941 = vmatpush2.bf16.msra.mxu0 0
        %2942 = vmatprep.subr.bf16.mxu0 0
        %2943 = vmatpush2.bf16.msra.mxu0 0
        %2944 = vmatprep.subr.bf16.mxu0 0
        %2945 = vmatpush2.bf16.msra.mxu0 0
        %2946 = vmatprep.subr.bf16.mxu0 0
        %2947 = vmatpush2.bf16.msra.mxu0 0
        %2948 = vmatprep.subr.bf16.mxu0 0
        %2949 = vmatpush2.bf16.msra.mxu0 0
        %2950 = vmatprep.subr.bf16.mxu0 0
        %2951 = vmatpush2.bf16.msra.mxu0 0
        %2952 = vmatprep.subr.bf16.mxu0 0
        %2953 = vmatpush2.bf16.msra.mxu0 0
        %2954 = vmatprep.mubr.bf16.mxu0 0
        %2955 = vmatmul.mubr.bf16.gmra.mxu0 %v2835
        %v2956 = vpop.f32.mrf.mxu0
        %v2957 = vadd.f32 %v2872, %v2956
        %v2958 = vpop.f32.mrf.mxu0
        %v2959 = vpop.f32.mrf.mxu0
        %v2960 = vadd.f32 %v2872, %v2959
        %v2961 = vpop.f32.mrf.mxu0
        %2962 = vmatprep.mubr.bf16.mxu0 0
        %2963 = vmatmul.mubr.bf16.gmra.mxu0 %v2836
        %v2964 = vpop.f32.mrf.mxu0
        %v2965 = vadd.f32 %v2872, %v2964
        %v2966 = vpop.f32.mrf.mxu0
        %v2967 = vpop.f32.mrf.mxu0
        %v2968 = vadd.f32 %v2872, %v2967
        %v2969 = vpop.f32.mrf.mxu0
        %2970 = vmatprep.mubr.bf16.mxu0 0
        %2971 = vmatmul.mubr.bf16.gmra.mxu0 %v2837
        %v2972 = vpop.f32.mrf.mxu0
        %v2973 = vadd.f32 %v2872, %v2972
        %v2974 = vpop.f32.mrf.mxu0
        %v2975 = vpop.f32.mrf.mxu0
        %v2976 = vadd.f32 %v2872, %v2975
        %v2977 = vpop.f32.mrf.mxu0
        %2978 = vmatprep.mubr.bf16.mxu0 0
        %2979 = vmatmul.mubr.bf16.gmra.mxu0 %v2838
        %v2980 = vpop.f32.mrf.mxu0
        %v2981 = vadd.f32 %v2872, %v2980
        %v2982 = vpop.f32.mrf.mxu0
        %v2983 = vpop.f32.mrf.mxu0
        %v2984 = vadd.f32 %v2872, %v2983
        %v2985 = vpop.f32.mrf.mxu0
        %2986 = vmatprep.mubr.bf16.mxu0 0
        %2987 = vmatmul.mubr.bf16.gmra.mxu0 %v2839
        %v2988 = vpop.f32.mrf.mxu0
        %v2989 = vadd.f32 %v2872, %v2988
        %v2990 = vpop.f32.mrf.mxu0
        %v2991 = vpop.f32.mrf.mxu0
        %v2992 = vadd.f32 %v2872, %v2991
        %v2993 = vpop.f32.mrf.mxu0
        %2994 = vmatprep.mubr.bf16.mxu0 0
        %2995 = vmatmul.mubr.bf16.gmra.mxu0 %v2840
        %v2996 = vpop.f32.mrf.mxu0
        %v2997 = vadd.f32 %v2872, %v2996
        %v2998 = vpop.f32.mrf.mxu0
        %v2999 = vpop.f32.mrf.mxu0
        %v3000 = vadd.f32 %v2872, %v2999
        %v3001 = vpop.f32.mrf.mxu0
        %3002 = vmatprep.mubr.bf16.mxu0 0
        %3003 = vmatmul.mubr.bf16.gmra.mxu0 %v2841
        %v3004 = vpop.f32.mrf.mxu0
        %v3005 = vadd.f32 %v2872, %v3004
        %v3006 = vpop.f32.mrf.mxu0
        %v3007 = vpop.f32.mrf.mxu0
        %v3008 = vadd.f32 %v2872, %v3007
        %v3009 = vpop.f32.mrf.mxu0
        %3010 = vmatprep.mubr.bf16.mxu0 0
        %3011 = vmatmul.mubr.bf16.gmra.mxu0 %v2842
        %v3012 = vpop.f32.mrf.mxu0
        %v3013 = vadd.f32 %v2872, %v3012
        %v3014 = vpop.f32.mrf.mxu0
        %v3015 = vpop.f32.mrf.mxu0
        %v3016 = vadd.f32 %v2872, %v3015
        %v3017 = vpop.f32.mrf.mxu0
        %3018 = vmatprep.mubr.bf16.mxu0 0
        %3019 = vmatmul.mubr.bf16.gmra.mxu0 %v2843
        %v3020 = vpop.f32.mrf.mxu0
        %v3021 = vadd.f32 %v2872, %v3020
        %v3022 = vpop.f32.mrf.mxu0
        %v3023 = vpop.f32.mrf.mxu0
        %v3024 = vadd.f32 %v2872, %v3023
        %v3025 = vpop.f32.mrf.mxu0
        %3026 = vmatprep.mubr.bf16.mxu0 0
        %3027 = vmatmul.mubr.bf16.gmra.mxu0 %v2844
        %v3028 = vpop.f32.mrf.mxu0
        %v3029 = vadd.f32 %v2872, %v3028
        %v3030 = vpop.f32.mrf.mxu0
        %v3031 = vpop.f32.mrf.mxu0
        %v3032 = vadd.f32 %v2872, %v3031
        %v3033 = vpop.f32.mrf.mxu0
        %3034 = vmatprep.mubr.bf16.mxu0 0
        %3035 = vmatmul.mubr.bf16.gmra.mxu0 %v2845
        %v3036 = vpop.f32.mrf.mxu0
        %v3037 = vadd.f32 %v2872, %v3036
        %v3038 = vpop.f32.mrf.mxu0
        %v3039 = vpop.f32.mrf.mxu0
        %v3040 = vadd.f32 %v2872, %v3039
        %v3041 = vpop.f32.mrf.mxu0
        %3042 = vmatprep.mubr.bf16.mxu0 0
        %3043 = vmatmul.mubr.bf16.gmra.mxu0 %v2846
        %v3044 = vpop.f32.mrf.mxu0
        %v3045 = vadd.f32 %v2872, %v3044
        %v3046 = vpop.f32.mrf.mxu0
        %v3047 = vpop.f32.mrf.mxu0
        %v3048 = vadd.f32 %v2872, %v3047
        %v3049 = vpop.f32.mrf.mxu0
        %3050 = vmatprep.mubr.bf16.mxu0 0
        %3051 = vmatmul.mubr.bf16.gmra.mxu0 %v2847
        %v3052 = vpop.f32.mrf.mxu0
        %v3053 = vadd.f32 %v2872, %v3052
        %v3054 = vpop.f32.mrf.mxu0
        %v3055 = vpop.f32.mrf.mxu0
        %v3056 = vadd.f32 %v2872, %v3055
        %v3057 = vpop.f32.mrf.mxu0
        %3058 = vmatprep.mubr.bf16.mxu0 0
        %3059 = vmatmul.mubr.bf16.gmra.mxu0 %v2848
        %v3060 = vpop.f32.mrf.mxu0
        %v3061 = vadd.f32 %v2872, %v3060
        %v3062 = vpop.f32.mrf.mxu0
        %v3063 = vpop.f32.mrf.mxu0
        %v3064 = vadd.f32 %v2872, %v3063
        %v3065 = vpop.f32.mrf.mxu0
        %3066 = vmatprep.mubr.bf16.mxu0 0
        %3067 = vmatmul.mubr.bf16.gmra.mxu0 %v2849
        %v3068 = vpop.f32.mrf.mxu0
        %v3069 = vadd.f32 %v2872, %v3068
        %v3070 = vpop.f32.mrf.mxu0
        %v3071 = vpop.f32.mrf.mxu0
        %v3072 = vadd.f32 %v2872, %v3071
        %v3073 = vpop.f32.mrf.mxu0
        %3074 = vmatprep.mubr.bf16.mxu0 0
        %3075 = vmatmul.mubr.bf16.gmra.mxu0 %v2850
        %v3076 = vpop.f32.mrf.mxu0
        %v3077 = vadd.f32 %v2872, %v3076
        %v3078 = vpop.f32.mrf.mxu0
        %v3079 = vpop.f32.mrf.mxu0
        %v3080 = vadd.f32 %v2872, %v3079
        %v3081 = vpop.f32.mrf.mxu0
        %3082 = vdwg.mxu0
        %v3083 = vmax.f32 %v2957, 0.0
        %v3084 = vmax.f32 %v2960, 0.0
        %v3085 = vmax.f32 %v2965, 0.0
        %v3086 = vmax.f32 %v2968, 0.0
        %v3087 = vmax.f32 %v2973, 0.0
        %v3088 = vmax.f32 %v2976, 0.0
        %v3089 = vmax.f32 %v2981, 0.0
        %v3090 = vmax.f32 %v2984, 0.0
        %v3091 = vmax.f32 %v2989, 0.0
        %v3092 = vmax.f32 %v2992, 0.0
        %v3093 = vmax.f32 %v2997, 0.0
        %v3094 = vmax.f32 %v3000, 0.0
        %v3095 = vmax.f32 %v3005, 0.0
        %v3096 = vmax.f32 %v3008, 0.0
        %v3097 = vmax.f32 %v3013, 0.0
        %v3098 = vmax.f32 %v3016, 0.0
        %v3099 = vmax.f32 %v3021, 0.0
        %v3100 = vmax.f32 %v3024, 0.0
        %v3101 = vmax.f32 %v3029, 0.0
        %v3102 = vmax.f32 %v3032, 0.0
        %v3103 = vmax.f32 %v3037, 0.0
        %v3104 = vmax.f32 %v3040, 0.0
        %v3105 = vmax.f32 %v3045, 0.0
        %v3106 = vmax.f32 %v3048, 0.0
        %v3107 = vmax.f32 %v3053, 0.0
        %v3108 = vmax.f32 %v3056, 0.0
        %v3109 = vmax.f32 %v3061, 0.0
        %v3110 = vmax.f32 %v3064, 0.0
        %v3111 = vmax.f32 %v3069, 0.0
        %v3112 = vmax.f32 %v3072, 0.0
        %v3113 = vmax.f32 %v3077, 0.0
        %v3114 = vmax.f32 %v3080, 0.0
        %v3115 = vpack.c.bf16 %v3084, %v3083
        %v3116 = vpack.c.bf16 %v3086, %v3085
        %v3117 = vpack.c.bf16 %v3088, %v3087
        %v3118 = vpack.c.bf16 %v3090, %v3089
        %v3119 = vpack.c.bf16 %v3092, %v3091
        %v3120 = vpack.c.bf16 %v3094, %v3093
        %v3121 = vpack.c.bf16 %v3096, %v3095
        %v3122 = vpack.c.bf16 %v3098, %v3097
        %v3123 = vpack.c.bf16 %v3100, %v3099
        %v3124 = vpack.c.bf16 %v3102, %v3101
        %v3125 = vpack.c.bf16 %v3104, %v3103
        %v3126 = vpack.c.bf16 %v3106, %v3105
        %v3127 = vpack.c.bf16 %v3108, %v3107
        %v3128 = vpack.c.bf16 %v3110, %v3109
        %v3129 = vpack.c.bf16 %v3112, %v3111
        %v3130 = vpack.c.bf16 %v3114, %v3113
        %v3131 = vld [vmem:[%s17] sm:$0xf]
        %v3132 = vld [vmem:[%s17 + $0x4] sm:$0xf]
        %v3133 = vld [vmem:[%s17 + $0x8] sm:$0xf]
        %v3134 = vld [vmem:[%s17 + $0xc] sm:$0xf]
        %v3135 = vld [vmem:[%s17 + $0x10] sm:$0xf]
        %v3136 = vld [vmem:[%s17 + $0x14] sm:$0xf]
        %v3137 = vld [vmem:[%s17 + $0x18] sm:$0xf]
        %v3138 = vld [vmem:[%s17 + $0x1c] sm:$0xf]
        %v3139 = vld [vmem:[%s17 + $0x20] sm:$0xf]
        %v3140 = vld [vmem:[%s17 + $0x24] sm:$0xf]
        %v3141 = vld [vmem:[%s17 + $0x28] sm:$0xf]
        %v3142 = vld [vmem:[%s17 + $0x2c] sm:$0xf]
        %v3143 = vld [vmem:[%s17 + $0x30] sm:$0xf]
        %v3144 = vld [vmem:[%s17 + $0x34] sm:$0xf]
        %v3145 = vld [vmem:[%s17 + $0x38] sm:$0xf]
        %v3146 = vld [vmem:[%s17 + $0x3c] sm:$0xf]
        %v3147 = vld [vmem:[%s18] sm:$0x1]
        %v3149 = vlaneseq
        %v3150 = vshrl.u32 %v3149, 7
        %v3151 = vsub.s32 0, %v3150
        %v3152 = vrot.slane %v3147, %v3151
        %v3170 = vunpack.c.l.b16 %v3131
        %v3171 = vunpack.c.l.b16 %v3132
        %v3172 = vunpack.c.l.b16 %v3133
        %v3173 = vunpack.c.l.b16 %v3134
        %v3174 = vunpack.c.l.b16 %v3135
        %v3175 = vunpack.c.l.b16 %v3136
        %v3176 = vunpack.c.l.b16 %v3137
        %v3177 = vunpack.c.l.b16 %v3138
        %v3178 = vunpack.c.l.b16 %v3139
        %v3179 = vunpack.c.l.b16 %v3140
        %v3180 = vunpack.c.l.b16 %v3141
        %v3181 = vunpack.c.l.b16 %v3142
        %v3182 = vunpack.c.l.b16 %v3143
        %v3183 = vunpack.c.l.b16 %v3144
        %v3184 = vunpack.c.l.b16 %v3145
        %v3185 = vunpack.c.l.b16 %v3146
        %v3186 = vpack.c.b16 %v3171, %v3170
        %v3187 = vpack.c.b16 %v3173, %v3172
        %v3188 = vpack.c.b16 %v3175, %v3174
        %v3189 = vpack.c.b16 %v3177, %v3176
        %v3190 = vpack.c.b16 %v3179, %v3178
        %v3191 = vpack.c.b16 %v3181, %v3180
        %v3192 = vpack.c.b16 %v3183, %v3182
        %v3193 = vpack.c.b16 %v3185, %v3184
        %3202 = vmatprep.subr.bf16.mxu0 0
        %3203 = vmatpush1.bf16.msra.mxu0 %v3193
        %3204 = vmatprep.subr.bf16.mxu0 0
        %3205 = vmatpush1.bf16.msra.mxu0 %v3192
        %3206 = vmatprep.subr.bf16.mxu0 0
        %3207 = vmatpush1.bf16.msra.mxu0 %v3191
        %3208 = vmatprep.subr.bf16.mxu0 0
        %3209 = vmatpush1.bf16.msra.mxu0 %v3190
        %3210 = vmatprep.subr.bf16.mxu0 0
        %3211 = vmatpush1.bf16.msra.mxu0 %v3189
        %3212 = vmatprep.subr.bf16.mxu0 0
        %3213 = vmatpush1.bf16.msra.mxu0 %v3188
        %3214 = vmatprep.subr.bf16.mxu0 0
        %3215 = vmatpush1.bf16.msra.mxu0 %v3187
        %3216 = vmatprep.subr.bf16.mxu0 0
        %3217 = vmatpush1.bf16.msra.mxu0 %v3186
        %3218 = vmatprep.subr.bf16.mxu0 0
        %3219 = vmatpush2.bf16.msra.mxu0 0
        %3220 = vmatprep.subr.bf16.mxu0 0
        %3221 = vmatpush2.bf16.msra.mxu0 0
        %3222 = vmatprep.subr.bf16.mxu0 0
        %3223 = vmatpush2.bf16.msra.mxu0 0
        %3224 = vmatprep.subr.bf16.mxu0 0
        %3225 = vmatpush2.bf16.msra.mxu0 0
        %3226 = vmatprep.subr.bf16.mxu0 0
        %3227 = vmatpush2.bf16.msra.mxu0 0
        %3228 = vmatprep.subr.bf16.mxu0 0
        %3229 = vmatpush2.bf16.msra.mxu0 0
        %3230 = vmatprep.subr.bf16.mxu0 0
        %3231 = vmatpush2.bf16.msra.mxu0 0
        %3232 = vmatprep.subr.bf16.mxu0 0
        %3233 = vmatpush2.bf16.msra.mxu0 0
        %3234 = vmatprep.mubr.bf16.mxu0 0
        %3235 = vmatmul.mubr.bf16.gmra.mxu0 %v3115
        %v3236 = vpop.f32.mrf.mxu0
        %v3237 = vadd.f32 %v3152, %v3236
        %v3238 = vpop.f32.mrf.mxu0
        %v3239 = vpop.f32.mrf.mxu0
        %v3240 = vadd.f32 %v3152, %v3239
        %v3241 = vpop.f32.mrf.mxu0
        %3242 = vmatprep.mubr.bf16.mxu0 0
        %3243 = vmatmul.mubr.bf16.gmra.mxu0 %v3116
        %v3244 = vpop.f32.mrf.mxu0
        %v3245 = vadd.f32 %v3152, %v3244
        %v3246 = vpop.f32.mrf.mxu0
        %v3247 = vpop.f32.mrf.mxu0
        %v3248 = vadd.f32 %v3152, %v3247
        %v3249 = vpop.f32.mrf.mxu0
        %3250 = vmatprep.mubr.bf16.mxu0 0
        %3251 = vmatmul.mubr.bf16.gmra.mxu0 %v3117
        %v3252 = vpop.f32.mrf.mxu0
        %v3253 = vadd.f32 %v3152, %v3252
        %v3254 = vpop.f32.mrf.mxu0
        %v3255 = vpop.f32.mrf.mxu0
        %v3256 = vadd.f32 %v3152, %v3255
        %v3257 = vpop.f32.mrf.mxu0
        %3258 = vmatprep.mubr.bf16.mxu0 0
        %3259 = vmatmul.mubr.bf16.gmra.mxu0 %v3118
        %v3260 = vpop.f32.mrf.mxu0
        %v3261 = vadd.f32 %v3152, %v3260
        %v3262 = vpop.f32.mrf.mxu0
        %v3263 = vpop.f32.mrf.mxu0
        %v3264 = vadd.f32 %v3152, %v3263
        %v3265 = vpop.f32.mrf.mxu0
        %3266 = vmatprep.mubr.bf16.mxu0 0
        %3267 = vmatmul.mubr.bf16.gmra.mxu0 %v3119
        %v3268 = vpop.f32.mrf.mxu0
        %v3269 = vadd.f32 %v3152, %v3268
        %v3270 = vpop.f32.mrf.mxu0
        %v3271 = vpop.f32.mrf.mxu0
        %v3272 = vadd.f32 %v3152, %v3271
        %v3273 = vpop.f32.mrf.mxu0
        %3274 = vmatprep.mubr.bf16.mxu0 0
        %3275 = vmatmul.mubr.bf16.gmra.mxu0 %v3120
        %v3276 = vpop.f32.mrf.mxu0
        %v3277 = vadd.f32 %v3152, %v3276
        %v3278 = vpop.f32.mrf.mxu0
        %v3279 = vpop.f32.mrf.mxu0
        %v3280 = vadd.f32 %v3152, %v3279
        %v3281 = vpop.f32.mrf.mxu0
        %3282 = vmatprep.mubr.bf16.mxu0 0
        %3283 = vmatmul.mubr.bf16.gmra.mxu0 %v3121
        %v3284 = vpop.f32.mrf.mxu0
        %v3285 = vadd.f32 %v3152, %v3284
        %v3286 = vpop.f32.mrf.mxu0
        %v3287 = vpop.f32.mrf.mxu0
        %v3288 = vadd.f32 %v3152, %v3287
        %v3289 = vpop.f32.mrf.mxu0
        %3290 = vmatprep.mubr.bf16.mxu0 0
        %3291 = vmatmul.mubr.bf16.gmra.mxu0 %v3122
        %v3292 = vpop.f32.mrf.mxu0
        %v3293 = vadd.f32 %v3152, %v3292
        %v3294 = vpop.f32.mrf.mxu0
        %v3295 = vpop.f32.mrf.mxu0
        %v3296 = vadd.f32 %v3152, %v3295
        %v3297 = vpop.f32.mrf.mxu0
        %3298 = vmatprep.mubr.bf16.mxu0 0
        %3299 = vmatmul.mubr.bf16.gmra.mxu0 %v3123
        %v3300 = vpop.f32.mrf.mxu0
        %v3301 = vadd.f32 %v3152, %v3300
        %v3302 = vpop.f32.mrf.mxu0
        %v3303 = vpop.f32.mrf.mxu0
        %v3304 = vadd.f32 %v3152, %v3303
        %v3305 = vpop.f32.mrf.mxu0
        %3306 = vmatprep.mubr.bf16.mxu0 0
        %3307 = vmatmul.mubr.bf16.gmra.mxu0 %v3124
        %v3308 = vpop.f32.mrf.mxu0
        %v3309 = vadd.f32 %v3152, %v3308
        %v3310 = vpop.f32.mrf.mxu0
        %v3311 = vpop.f32.mrf.mxu0
        %v3312 = vadd.f32 %v3152, %v3311
        %v3313 = vpop.f32.mrf.mxu0
        %3314 = vmatprep.mubr.bf16.mxu0 0
        %3315 = vmatmul.mubr.bf16.gmra.mxu0 %v3125
        %v3316 = vpop.f32.mrf.mxu0
        %v3317 = vadd.f32 %v3152, %v3316
        %v3318 = vpop.f32.mrf.mxu0
        %v3319 = vpop.f32.mrf.mxu0
        %v3320 = vadd.f32 %v3152, %v3319
        %v3321 = vpop.f32.mrf.mxu0
        %3322 = vmatprep.mubr.bf16.mxu0 0
        %3323 = vmatmul.mubr.bf16.gmra.mxu0 %v3126
        %v3324 = vpop.f32.mrf.mxu0
        %v3325 = vadd.f32 %v3152, %v3324
        %v3326 = vpop.f32.mrf.mxu0
        %v3327 = vpop.f32.mrf.mxu0
        %v3328 = vadd.f32 %v3152, %v3327
        %v3329 = vpop.f32.mrf.mxu0
        %3330 = vmatprep.mubr.bf16.mxu0 0
        %3331 = vmatmul.mubr.bf16.gmra.mxu0 %v3127
        %v3332 = vpop.f32.mrf.mxu0
        %v3333 = vadd.f32 %v3152, %v3332
        %v3334 = vpop.f32.mrf.mxu0
        %v3335 = vpop.f32.mrf.mxu0
        %v3336 = vadd.f32 %v3152, %v3335
        %v3337 = vpop.f32.mrf.mxu0
        %3338 = vmatprep.mubr.bf16.mxu0 0
        %3339 = vmatmul.mubr.bf16.gmra.mxu0 %v3128
        %v3340 = vpop.f32.mrf.mxu0
        %v3341 = vadd.f32 %v3152, %v3340
        %v3342 = vpop.f32.mrf.mxu0
        %v3343 = vpop.f32.mrf.mxu0
        %v3344 = vadd.f32 %v3152, %v3343
        %v3345 = vpop.f32.mrf.mxu0
        %3346 = vmatprep.mubr.bf16.mxu0 0
        %3347 = vmatmul.mubr.bf16.gmra.mxu0 %v3129
        %v3348 = vpop.f32.mrf.mxu0
        %v3349 = vadd.f32 %v3152, %v3348
        %v3350 = vpop.f32.mrf.mxu0
        %v3351 = vpop.f32.mrf.mxu0
        %v3352 = vadd.f32 %v3152, %v3351
        %v3353 = vpop.f32.mrf.mxu0
        %3354 = vmatprep.mubr.bf16.mxu0 0
        %3355 = vmatmul.mubr.bf16.gmra.mxu0 %v3130
        %v3356 = vpop.f32.mrf.mxu0
        %v3357 = vadd.f32 %v3152, %v3356
        %v3358 = vpop.f32.mrf.mxu0
        %v3359 = vpop.f32.mrf.mxu0
        %v3360 = vadd.f32 %v3152, %v3359
        %v3361 = vpop.f32.mrf.mxu0
        %3362 = vdwg.mxu0
        %v3363 = vxor.u32 %v3237, 2147483648
        %v3364 = vxor.u32 %v3240, 2147483648
        %v3365 = vxor.u32 %v3245, 2147483648
        %v3366 = vxor.u32 %v3248, 2147483648
        %v3367 = vxor.u32 %v3253, 2147483648
        %v3368 = vxor.u32 %v3256, 2147483648
        %v3369 = vxor.u32 %v3261, 2147483648
        %v3370 = vxor.u32 %v3264, 2147483648
        %v3371 = vxor.u32 %v3269, 2147483648
        %v3372 = vxor.u32 %v3272, 2147483648
        %v3373 = vxor.u32 %v3277, 2147483648
        %v3374 = vxor.u32 %v3280, 2147483648
        %v3375 = vxor.u32 %v3285, 2147483648
        %v3376 = vxor.u32 %v3288, 2147483648
        %v3377 = vxor.u32 %v3293, 2147483648
        %v3378 = vxor.u32 %v3296, 2147483648
        %v3379 = vxor.u32 %v3301, 2147483648
        %v3380 = vxor.u32 %v3304, 2147483648
        %v3381 = vxor.u32 %v3309, 2147483648
        %v3382 = vxor.u32 %v3312, 2147483648
        %v3383 = vxor.u32 %v3317, 2147483648
        %v3384 = vxor.u32 %v3320, 2147483648
        %v3385 = vxor.u32 %v3325, 2147483648
        %v3386 = vxor.u32 %v3328, 2147483648
        %v3387 = vxor.u32 %v3333, 2147483648
        %v3388 = vxor.u32 %v3336, 2147483648
        %v3389 = vxor.u32 %v3341, 2147483648
        %v3390 = vxor.u32 %v3344, 2147483648
        %v3391 = vxor.u32 %v3349, 2147483648
        %v3392 = vxor.u32 %v3352, 2147483648
        %v3393 = vxor.u32 %v3357, 2147483648
        %v3394 = vxor.u32 %v3360, 2147483648
        %v3395 = vmul.f32 %v3363, 1.442695
        %v3396 = vpow.pop %v3395
        %v3397 = vmul.f32 %v3364, 1.442695
        %v3398 = vpow.pop %v3397
        %v3399 = vmul.f32 %v3365, 1.442695
        %v3400 = vpow.pop %v3399
        %v3401 = vmul.f32 %v3366, 1.442695
        %v3402 = vpow.pop %v3401
        %v3403 = vmul.f32 %v3367, 1.442695
        %v3404 = vpow.pop %v3403
        %v3405 = vmul.f32 %v3368, 1.442695
        %v3406 = vpow.pop %v3405
        %v3407 = vmul.f32 %v3369, 1.442695
        %v3408 = vpow.pop %v3407
        %v3409 = vmul.f32 %v3370, 1.442695
        %v3410 = vpow.pop %v3409
        %v3411 = vmul.f32 %v3371, 1.442695
        %v3412 = vpow.pop %v3411
        %v3413 = vmul.f32 %v3372, 1.442695
        %v3414 = vpow.pop %v3413
        %v3415 = vmul.f32 %v3373, 1.442695
        %v3416 = vpow.pop %v3415
        %v3417 = vmul.f32 %v3374, 1.442695
        %v3418 = vpow.pop %v3417
        %v3419 = vmul.f32 %v3375, 1.442695
        %v3420 = vpow.pop %v3419
        %v3421 = vmul.f32 %v3376, 1.442695
        %v3422 = vpow.pop %v3421
        %v3423 = vmul.f32 %v3377, 1.442695
        %v3424 = vpow.pop %v3423
        %v3425 = vmul.f32 %v3378, 1.442695
        %v3426 = vpow.pop %v3425
        %v3427 = vmul.f32 %v3379, 1.442695
        %v3428 = vpow.pop %v3427
        %v3429 = vmul.f32 %v3380, 1.442695
        %v3430 = vpow.pop %v3429
        %v3431 = vmul.f32 %v3381, 1.442695
        %v3432 = vpow.pop %v3431
        %v3433 = vmul.f32 %v3382, 1.442695
        %v3434 = vpow.pop %v3433
        %v3435 = vmul.f32 %v3383, 1.442695
        %v3436 = vpow.pop %v3435
        %v3437 = vmul.f32 %v3384, 1.442695
        %v3438 = vpow.pop %v3437
        %v3439 = vmul.f32 %v3385, 1.442695
        %v3440 = vpow.pop %v3439
        %v3441 = vmul.f32 %v3386, 1.442695
        %v3442 = vpow.pop %v3441
        %v3443 = vmul.f32 %v3387, 1.442695
        %v3444 = vpow.pop %v3443
        %v3445 = vmul.f32 %v3388, 1.442695
        %v3446 = vpow.pop %v3445
        %v3447 = vmul.f32 %v3389, 1.442695
        %v3448 = vpow.pop %v3447
        %v3449 = vmul.f32 %v3390, 1.442695
        %v3450 = vpow.pop %v3449
        %v3451 = vmul.f32 %v3391, 1.442695
        %v3452 = vpow.pop %v3451
        %v3453 = vmul.f32 %v3392, 1.442695
        %v3454 = vpow.pop %v3453
        %v3455 = vmul.f32 %v3393, 1.442695
        %v3456 = vpow.pop %v3455
        %v3457 = vmul.f32 %v3394, 1.442695
        %v3458 = vpow.pop %v3457
        %v3459 = vadd.f32 %v3396, 1.0
        %v3460 = vadd.f32 %v3398, 1.0
        %v3461 = vadd.f32 %v3400, 1.0
        %v3462 = vadd.f32 %v3402, 1.0
        %v3463 = vadd.f32 %v3404, 1.0
        %v3464 = vadd.f32 %v3406, 1.0
        %v3465 = vadd.f32 %v3408, 1.0
        %v3466 = vadd.f32 %v3410, 1.0
        %v3467 = vadd.f32 %v3412, 1.0
        %v3468 = vadd.f32 %v3414, 1.0
        %v3469 = vadd.f32 %v3416, 1.0
        %v3470 = vadd.f32 %v3418, 1.0
        %v3471 = vadd.f32 %v3420, 1.0
        %v3472 = vadd.f32 %v3422, 1.0
        %v3473 = vadd.f32 %v3424, 1.0
        %v3474 = vadd.f32 %v3426, 1.0
        %v3475 = vadd.f32 %v3428, 1.0
        %v3476 = vadd.f32 %v3430, 1.0
        %v3477 = vadd.f32 %v3432, 1.0
        %v3478 = vadd.f32 %v3434, 1.0
        %v3479 = vadd.f32 %v3436, 1.0
        %v3480 = vadd.f32 %v3438, 1.0
        %v3481 = vadd.f32 %v3440, 1.0
        %v3482 = vadd.f32 %v3442, 1.0
        %v3483 = vadd.f32 %v3444, 1.0
        %v3484 = vadd.f32 %v3446, 1.0
        %v3485 = vadd.f32 %v3448, 1.0
        %v3486 = vadd.f32 %v3450, 1.0
        %v3487 = vadd.f32 %v3452, 1.0
        %v3488 = vadd.f32 %v3454, 1.0
        %v3489 = vadd.f32 %v3456, 1.0
        %v3490 = vadd.f32 %v3458, 1.0
        %v3491 = vrcp.pop %v3459
        %v3492 = vmul.f32 1.0, %v3491
        %v3493 = vrcp.pop %v3460
        %v3494 = vmul.f32 1.0, %v3493
        %v3495 = vrcp.pop %v3461
        %v3496 = vmul.f32 1.0, %v3495
        %v3497 = vrcp.pop %v3462
        %v3498 = vmul.f32 1.0, %v3497
        %v3499 = vrcp.pop %v3463
        %v3500 = vmul.f32 1.0, %v3499
        %v3501 = vrcp.pop %v3464
        %v3502 = vmul.f32 1.0, %v3501
        %v3503 = vrcp.pop %v3465
        %v3504 = vmul.f32 1.0, %v3503
        %v3505 = vrcp.pop %v3466
        %v3506 = vmul.f32 1.0, %v3505
        %v3507 = vrcp.pop %v3467
        %v3508 = vmul.f32 1.0, %v3507
        %v3509 = vrcp.pop %v3468
        %v3510 = vmul.f32 1.0, %v3509
        %v3511 = vrcp.pop %v3469
        %v3512 = vmul.f32 1.0, %v3511
        %v3513 = vrcp.pop %v3470
        %v3514 = vmul.f32 1.0, %v3513
        %v3515 = vrcp.pop %v3471
        %v3516 = vmul.f32 1.0, %v3515
        %v3517 = vrcp.pop %v3472
        %v3518 = vmul.f32 1.0, %v3517
        %v3519 = vrcp.pop %v3473
        %v3520 = vmul.f32 1.0, %v3519
        %v3521 = vrcp.pop %v3474
        %v3522 = vmul.f32 1.0, %v3521
        %v3523 = vrcp.pop %v3475
        %v3524 = vmul.f32 1.0, %v3523
        %v3525 = vrcp.pop %v3476
        %v3526 = vmul.f32 1.0, %v3525
        %v3527 = vrcp.pop %v3477
        %v3528 = vmul.f32 1.0, %v3527
        %v3529 = vrcp.pop %v3478
        %v3530 = vmul.f32 1.0, %v3529
        %v3531 = vrcp.pop %v3479
        %v3532 = vmul.f32 1.0, %v3531
        %v3533 = vrcp.pop %v3480
        %v3534 = vmul.f32 1.0, %v3533
        %v3535 = vrcp.pop %v3481
        %v3536 = vmul.f32 1.0, %v3535
        %v3537 = vrcp.pop %v3482
        %v3538 = vmul.f32 1.0, %v3537
        %v3539 = vrcp.pop %v3483
        %v3540 = vmul.f32 1.0, %v3539
        %v3541 = vrcp.pop %v3484
        %v3542 = vmul.f32 1.0, %v3541
        %v3543 = vrcp.pop %v3485
        %v3544 = vmul.f32 1.0, %v3543
        %v3545 = vrcp.pop %v3486
        %v3546 = vmul.f32 1.0, %v3545
        %v3547 = vrcp.pop %v3487
        %v3548 = vmul.f32 1.0, %v3547
        %v3549 = vrcp.pop %v3488
        %v3550 = vmul.f32 1.0, %v3549
        %v3551 = vrcp.pop %v3489
        %v3552 = vmul.f32 1.0, %v3551
        %v3553 = vrcp.pop %v3490
        %v3554 = vmul.f32 1.0, %v3553
        %3587 = vrot.lane.b32.xlu0 %v1841, 64
        %v3588 = vpop.permute.xlu0 %3587
        %3589 = vrot.lane.b32.xlu0 %v1844, 64
        %v3590 = vpop.permute.xlu0 %3589
        %3591 = vrot.lane.b32.xlu0 %v1849, 64
        %v3592 = vpop.permute.xlu0 %3591
        %3593 = vrot.lane.b32.xlu0 %v1852, 64
        %v3594 = vpop.permute.xlu0 %3593
        %3595 = vrot.lane.b32.xlu0 %v1857, 64
        %v3596 = vpop.permute.xlu0 %3595
        %3597 = vrot.lane.b32.xlu0 %v1860, 64
        %v3598 = vpop.permute.xlu0 %3597
        %3599 = vrot.lane.b32.xlu0 %v1865, 64
        %v3600 = vpop.permute.xlu0 %3599
        %3601 = vrot.lane.b32.xlu0 %v1868, 64
        %v3602 = vpop.permute.xlu0 %3601
        %3603 = vrot.lane.b32.xlu0 %v1873, 64
        %v3604 = vpop.permute.xlu0 %3603
        %3605 = vrot.lane.b32.xlu0 %v1876, 64
        %v3606 = vpop.permute.xlu0 %3605
        %3607 = vrot.lane.b32.xlu0 %v1881, 64
        %v3608 = vpop.permute.xlu0 %3607
        %3609 = vrot.lane.b32.xlu0 %v1884, 64
        %v3610 = vpop.permute.xlu0 %3609
        %3611 = vrot.lane.b32.xlu0 %v1889, 64
        %v3612 = vpop.permute.xlu0 %3611
        %3613 = vrot.lane.b32.xlu0 %v1892, 64
        %v3614 = vpop.permute.xlu0 %3613
        %3615 = vrot.lane.b32.xlu0 %v1897, 64
        %v3616 = vpop.permute.xlu0 %3615
        %3617 = vrot.lane.b32.xlu0 %v1900, 64
        %v3618 = vpop.permute.xlu0 %3617
        %3619 = vrot.lane.b32.xlu0 %v1905, 64
        %v3620 = vpop.permute.xlu0 %3619
        %3621 = vrot.lane.b32.xlu0 %v1908, 64
        %v3622 = vpop.permute.xlu0 %3621
        %3623 = vrot.lane.b32.xlu0 %v1913, 64
        %v3624 = vpop.permute.xlu0 %3623
        %3625 = vrot.lane.b32.xlu0 %v1916, 64
        %v3626 = vpop.permute.xlu0 %3625
        %3627 = vrot.lane.b32.xlu0 %v1921, 64
        %v3628 = vpop.permute.xlu0 %3627
        %3629 = vrot.lane.b32.xlu0 %v1924, 64
        %v3630 = vpop.permute.xlu0 %3629
        %3631 = vrot.lane.b32.xlu0 %v1929, 64
        %v3632 = vpop.permute.xlu0 %3631
        %3633 = vrot.lane.b32.xlu0 %v1932, 64
        %v3634 = vpop.permute.xlu0 %3633
        %3635 = vrot.lane.b32.xlu0 %v1937, 64
        %v3636 = vpop.permute.xlu0 %3635
        %3637 = vrot.lane.b32.xlu0 %v1940, 64
        %v3638 = vpop.permute.xlu0 %3637
        %3639 = vrot.lane.b32.xlu0 %v1945, 64
        %v3640 = vpop.permute.xlu0 %3639
        %3641 = vrot.lane.b32.xlu0 %v1948, 64
        %v3642 = vpop.permute.xlu0 %3641
        %3643 = vrot.lane.b32.xlu0 %v1953, 64
        %v3644 = vpop.permute.xlu0 %3643
        %3645 = vrot.lane.b32.xlu0 %v1956, 64
        %v3646 = vpop.permute.xlu0 %3645
        %3647 = vrot.lane.b32.xlu0 %v1961, 64
        %v3648 = vpop.permute.xlu0 %3647
        %3649 = vrot.lane.b32.xlu0 %v1964, 64
        %v3650 = vpop.permute.xlu0 %3649
        %3715 = vrot.lane.b32.xlu0 %v2073, 80
        %v3716 = vpop.permute.xlu0 %3715
        %3717 = vrot.lane.b32.xlu0 %v2076, 80
        %v3718 = vpop.permute.xlu0 %3717
        %3719 = vrot.lane.b32.xlu0 %v2081, 80
        %v3720 = vpop.permute.xlu0 %3719
        %3721 = vrot.lane.b32.xlu0 %v2084, 80
        %v3722 = vpop.permute.xlu0 %3721
        %3723 = vrot.lane.b32.xlu0 %v2089, 80
        %v3724 = vpop.permute.xlu0 %3723
        %3725 = vrot.lane.b32.xlu0 %v2092, 80
        %v3726 = vpop.permute.xlu0 %3725
        %3727 = vrot.lane.b32.xlu0 %v2097, 80
        %v3728 = vpop.permute.xlu0 %3727
        %3729 = vrot.lane.b32.xlu0 %v2100, 80
        %v3730 = vpop.permute.xlu0 %3729
        %3731 = vrot.lane.b32.xlu0 %v2105, 80
        %v3732 = vpop.permute.xlu0 %3731
        %3733 = vrot.lane.b32.xlu0 %v2108, 80
        %v3734 = vpop.permute.xlu0 %3733
        %3735 = vrot.lane.b32.xlu0 %v2113, 80
        %v3736 = vpop.permute.xlu0 %3735
        %3737 = vrot.lane.b32.xlu0 %v2116, 80
        %v3738 = vpop.permute.xlu0 %3737
        %3739 = vrot.lane.b32.xlu0 %v2121, 80
        %v3740 = vpop.permute.xlu0 %3739
        %3741 = vrot.lane.b32.xlu0 %v2124, 80
        %v3742 = vpop.permute.xlu0 %3741
        %3743 = vrot.lane.b32.xlu0 %v2129, 80
        %v3744 = vpop.permute.xlu0 %3743
        %3745 = vrot.lane.b32.xlu0 %v2132, 80
        %v3746 = vpop.permute.xlu0 %3745
        %3747 = vrot.lane.b32.xlu0 %v2137, 80
        %v3748 = vpop.permute.xlu0 %3747
        %3749 = vrot.lane.b32.xlu0 %v2140, 80
        %v3750 = vpop.permute.xlu0 %3749
        %3751 = vrot.lane.b32.xlu0 %v2145, 80
        %v3752 = vpop.permute.xlu0 %3751
        %3753 = vrot.lane.b32.xlu0 %v2148, 80
        %v3754 = vpop.permute.xlu0 %3753
        %3755 = vrot.lane.b32.xlu0 %v2153, 80
        %v3756 = vpop.permute.xlu0 %3755
        %3757 = vrot.lane.b32.xlu0 %v2156, 80
        %v3758 = vpop.permute.xlu0 %3757
        %3759 = vrot.lane.b32.xlu0 %v2161, 80
        %v3760 = vpop.permute.xlu0 %3759
        %3761 = vrot.lane.b32.xlu0 %v2164, 80
        %v3762 = vpop.permute.xlu0 %3761
        %3763 = vrot.lane.b32.xlu0 %v2169, 80
        %v3764 = vpop.permute.xlu0 %3763
        %3765 = vrot.lane.b32.xlu0 %v2172, 80
        %v3766 = vpop.permute.xlu0 %3765
        %3767 = vrot.lane.b32.xlu0 %v2177, 80
        %v3768 = vpop.permute.xlu0 %3767
        %3769 = vrot.lane.b32.xlu0 %v2180, 80
        %v3770 = vpop.permute.xlu0 %3769
        %3771 = vrot.lane.b32.xlu0 %v2185, 80
        %v3772 = vpop.permute.xlu0 %3771
        %3773 = vrot.lane.b32.xlu0 %v2188, 80
        %v3774 = vpop.permute.xlu0 %3773
        %3775 = vrot.lane.b32.xlu0 %v2193, 80
        %v3776 = vpop.permute.xlu0 %3775
        %3777 = vrot.lane.b32.xlu0 %v2196, 80
        %v3778 = vpop.permute.xlu0 %3777
        %v3811 = vsel %vm1158, %v3492, %v3588
        %v3812 = vsel %vm1158, %v3494, %v3590
        %v3813 = vsel %vm1158, %v3496, %v3592
        %v3814 = vsel %vm1158, %v3498, %v3594
        %v3815 = vsel %vm1158, %v3500, %v3596
        %v3816 = vsel %vm1158, %v3502, %v3598
        %v3817 = vsel %vm1158, %v3504, %v3600
        %v3818 = vsel %vm1158, %v3506, %v3602
        %v3819 = vsel %vm1158, %v3508, %v3604
        %v3820 = vsel %vm1158, %v3510, %v3606
        %v3821 = vsel %vm1158, %v3512, %v3608
        %v3822 = vsel %vm1158, %v3514, %v3610
        %v3823 = vsel %vm1158, %v3516, %v3612
        %v3824 = vsel %vm1158, %v3518, %v3614
        %v3825 = vsel %vm1158, %v3520, %v3616
        %v3826 = vsel %vm1158, %v3522, %v3618
        %v3827 = vsel %vm1158, %v3524, %v3620
        %v3828 = vsel %vm1158, %v3526, %v3622
        %v3829 = vsel %vm1158, %v3528, %v3624
        %v3830 = vsel %vm1158, %v3530, %v3626
        %v3831 = vsel %vm1158, %v3532, %v3628
        %v3832 = vsel %vm1158, %v3534, %v3630
        %v3833 = vsel %vm1158, %v3536, %v3632
        %v3834 = vsel %vm1158, %v3538, %v3634
        %v3835 = vsel %vm1158, %v3540, %v3636
        %v3836 = vsel %vm1158, %v3542, %v3638
        %v3837 = vsel %vm1158, %v3544, %v3640
        %v3838 = vsel %vm1158, %v3546, %v3642
        %v3839 = vsel %vm1158, %v3548, %v3644
        %v3840 = vsel %vm1158, %v3550, %v3646
        %v3841 = vsel %vm1158, %v3552, %v3648
        %v3842 = vsel %vm1158, %v3554, %v3650
        %vm3843 = vcmask 654336
        %v3844 = vsel %vm3843, %v3811, %v3716
        %v3845 = vsel %vm3843, %v3812, %v3718
        %v3846 = vsel %vm3843, %v3813, %v3720
        %v3847 = vsel %vm3843, %v3814, %v3722
        %v3848 = vsel %vm3843, %v3815, %v3724
        %v3849 = vsel %vm3843, %v3816, %v3726
        %v3850 = vsel %vm3843, %v3817, %v3728
        %v3851 = vsel %vm3843, %v3818, %v3730
        %v3852 = vsel %vm3843, %v3819, %v3732
        %v3853 = vsel %vm3843, %v3820, %v3734
        %v3854 = vsel %vm3843, %v3821, %v3736
        %v3855 = vsel %vm3843, %v3822, %v3738
        %v3856 = vsel %vm3843, %v3823, %v3740
        %v3857 = vsel %vm3843, %v3824, %v3742
        %v3858 = vsel %vm3843, %v3825, %v3744
        %v3859 = vsel %vm3843, %v3826, %v3746
        %v3860 = vsel %vm3843, %v3827, %v3748
        %v3861 = vsel %vm3843, %v3828, %v3750
        %v3862 = vsel %vm3843, %v3829, %v3752
        %v3863 = vsel %vm3843, %v3830, %v3754
        %v3864 = vsel %vm3843, %v3831, %v3756
        %v3865 = vsel %vm3843, %v3832, %v3758
        %v3866 = vsel %vm3843, %v3833, %v3760
        %v3867 = vsel %vm3843, %v3834, %v3762
        %v3868 = vsel %vm3843, %v3835, %v3764
        %v3869 = vsel %vm3843, %v3836, %v3766
        %v3870 = vsel %vm3843, %v3837, %v3768
        %v3871 = vsel %vm3843, %v3838, %v3770
        %v3872 = vsel %vm3843, %v3839, %v3772
        %v3873 = vsel %vm3843, %v3840, %v3774
        %v3874 = vsel %vm3843, %v3841, %v3776
        %v3875 = vsel %vm3843, %v3842, %v3778
        %vm3876 = vcmask 785408
        %v3877 = vsel %vm3876, %v3844, 0.0
        %v3878 = vsel %vm3876, %v3845, 0.0
        %v3879 = vsel %vm3876, %v3846, 0.0
        %v3880 = vsel %vm3876, %v3847, 0.0
        %v3881 = vsel %vm3876, %v3848, 0.0
        %v3882 = vsel %vm3876, %v3849, 0.0
        %v3883 = vsel %vm3876, %v3850, 0.0
        %v3884 = vsel %vm3876, %v3851, 0.0
        %v3885 = vsel %vm3876, %v3852, 0.0
        %v3886 = vsel %vm3876, %v3853, 0.0
        %v3887 = vsel %vm3876, %v3854, 0.0
        %v3888 = vsel %vm3876, %v3855, 0.0
        %v3889 = vsel %vm3876, %v3856, 0.0
        %v3890 = vsel %vm3876, %v3857, 0.0
        %v3891 = vsel %vm3876, %v3858, 0.0
        %v3892 = vsel %vm3876, %v3859, 0.0
        %v3893 = vsel %vm3876, %v3860, 0.0
        %v3894 = vsel %vm3876, %v3861, 0.0
        %v3895 = vsel %vm3876, %v3862, 0.0
        %v3896 = vsel %vm3876, %v3863, 0.0
        %v3897 = vsel %vm3876, %v3864, 0.0
        %v3898 = vsel %vm3876, %v3865, 0.0
        %v3899 = vsel %vm3876, %v3866, 0.0
        %v3900 = vsel %vm3876, %v3867, 0.0
        %v3901 = vsel %vm3876, %v3868, 0.0
        %v3902 = vsel %vm3876, %v3869, 0.0
        %v3903 = vsel %vm3876, %v3870, 0.0
        %v3904 = vsel %vm3876, %v3871, 0.0
        %v3905 = vsel %vm3876, %v3872, 0.0
        %v3906 = vsel %vm3876, %v3873, 0.0
        %v3907 = vsel %vm3876, %v3874, 0.0
        %v3908 = vsel %vm3876, %v3875, 0.0
        %3909 = vst [vmem:[%s628] sm:$0xff] %v3877
        %3910 = vst [vmem:[%s628 + $0x8] sm:$0xff] %v3878
        %3911 = vst [vmem:[%s628 + $0x10] sm:$0xff] %v3879
        %3912 = vst [vmem:[%s628 + $0x18] sm:$0xff] %v3880
        %3913 = vst [vmem:[%s628 + $0x20] sm:$0xff] %v3881
        %3914 = vst [vmem:[%s628 + $0x28] sm:$0xff] %v3882
        %3915 = vst [vmem:[%s628 + $0x30] sm:$0xff] %v3883
        %3916 = vst [vmem:[%s628 + $0x38] sm:$0xff] %v3884
        %3917 = vst [vmem:[%s628 + $0x40] sm:$0xff] %v3885
        %3918 = vst [vmem:[%s628 + $0x48] sm:$0xff] %v3886
        %3919 = vst [vmem:[%s628 + $0x50] sm:$0xff] %v3887
        %3920 = vst [vmem:[%s628 + $0x58] sm:$0xff] %v3888
        %3921 = vst [vmem:[%s628 + $0x60] sm:$0xff] %v3889
        %3922 = vst [vmem:[%s628 + $0x68] sm:$0xff] %v3890
        %3923 = vst [vmem:[%s628 + $0x70] sm:$0xff] %v3891
        %3924 = vst [vmem:[%s628 + $0x78] sm:$0xff] %v3892
        %3925 = vst [vmem:[%s628 + $0x80] sm:$0xff] %v3893
        %3926 = vst [vmem:[%s628 + $0x88] sm:$0xff] %v3894
        %3927 = vst [vmem:[%s628 + $0x90] sm:$0xff] %v3895
        %3928 = vst [vmem:[%s628 + $0x98] sm:$0xff] %v3896
        %3929 = vst [vmem:[%s628 + $0xa0] sm:$0xff] %v3897
        %3930 = vst [vmem:[%s628 + $0xa8] sm:$0xff] %v3898
        %3931 = vst [vmem:[%s628 + $0xb0] sm:$0xff] %v3899
        %3932 = vst [vmem:[%s628 + $0xb8] sm:$0xff] %v3900
        %3933 = vst [vmem:[%s628 + $0xc0] sm:$0xff] %v3901
        %3934 = vst [vmem:[%s628 + $0xc8] sm:$0xff] %v3902
        %3935 = vst [vmem:[%s628 + $0xd0] sm:$0xff] %v3903
        %3936 = vst [vmem:[%s628 + $0xd8] sm:$0xff] %v3904
        %3937 = vst [vmem:[%s628 + $0xe0] sm:$0xff] %v3905
        %3938 = vst [vmem:[%s628 + $0xe8] sm:$0xff] %v3906
        %3939 = vst [vmem:[%s628 + $0xf0] sm:$0xff] %v3907
        %3940 = vst [vmem:[%s628 + $0xf8] sm:$0xff] %v3908
        %s3941 = sand.u32 %s455, 1
        %s3942 = scalar_lea.sflag [#allocation3], %s3941
        %s3943 = sand.u32 %s455, 1
        %s3944 = smul.addr %s3943, 256
        %s3945 = scalar_lea.vmem [#allocation2], %s3944
        // Predicated region
        $region97: #{tpu_custom_call.1} parent=95 // pred_check
          %p3946 = pneg %p465
        $region98: #{tpu_custom_call.1} parent=95 // pred_check_branch
          %3948 = sbr.rel (%p3946) target = $region100
        $region99: #{tpu_custom_call.1} parent=95 // pred_region
          %s3949 = smul.u32 32, %s33
          %s3951 = ssub.s32 4096, 4096
          %3952 = vsyncadd %s3942, %s3951
          %s3953 = smul.addr %s3949, 128
          %s3954 = scalar_lea.hbm %s19, %s3953
          %s3955 = sshll.u32 %s3945, 4
          %s3956 = int_to_ptr.vmem [resolvable:$true] %s3955
          %3961 = dma.vmem_to_hbm [thread:$0]  %s3956, 4096, %s3954, %s3942, 128, 128, 8
        $region100: #{tpu_custom_call.1} parent=95 // pred_fallthru
          _
      $region96: #{tpu_custom_call.1} parent=5 // pred_fallthru
        _
      %p3962 = scmp.le.s32.totalorder 2, %s28
      // Predicated region
      $region101: #{tpu_custom_call.1} parent=5 // pred_check
        %p3963 = pneg %p3962
      $region102: #{tpu_custom_call.1} parent=5 // pred_check_branch
        %3965 = sbr.rel (%p3963) target = $region104
      $region103: #{tpu_custom_call.1} parent=5 // pred_region
        %s3966 = ssub.s32 %s28, 2
        // Predicated region
        $region105: #{tpu_custom_call.1} parent=103 // pred_check
          %p3967 = pneg %p471
        $region106: #{tpu_custom_call.1} parent=103 // pred_check_branch
          %3969 = sbr.rel (%p3967) target = $region108
        $region107: #{tpu_custom_call.1} parent=103 // pred_region
          %s3970 = sand.u32 %s456, 1
          %s3971 = scalar_lea.sflag [#allocation3], %s3970
          %s3972 = sand.u32 %s456, 1
          %s3973 = smul.addr %s3972, 256
          %s3974 = scalar_lea.vmem [#allocation2], %s3973
          %3975 = dma.done %s3971, 4096
        $region108: #{tpu_custom_call.1} parent=103 // pred_fallthru
          _
      $region104: #{tpu_custom_call.1} parent=5 // pred_fallthru
        _
    $region6: #{tpu_custom_call.1} parent=1 // loop_footer
      %s32 = sadd.s32 1, %s28
    $region7: #{tpu_custom_call.1} parent=1 // loop_footer_branch
      %27 = sbr.rel target = $region3
    $region8: #{tpu_custom_call.1} parent=1 // loop_exit
      _
    %3976 = vsyncpa [#allocation3], 1
    %s3977 = scalar_lea.sflag [#allocation3], 1
    %3978 = vsyncpa %s3977, 1

</llo_original>
